<compile_context>
chip_gen: v5e
topology: v5e:2x2
jax: 0.10.0
libtpu: 0.0.40
codegen_flags: <defaults>
</compile_context>

<pallas_src>
import jax
import jax.numpy as jnp
from jax.experimental import pallas as pl
from jax.experimental.pallas import tpu as pltpu


# --------------------------------------------------------------------------- #
# Kernel
# --------------------------------------------------------------------------- #
def _gate_kernel(x_ref, y_ref, wi_ref, wh_ref, bi_ref, bhn_ref, o_ref):
    D = x_ref.shape[-1]
    w_dtype = wi_ref.dtype

    x = x_ref[...]                       # (TM, D) hidden / residual, native dtype
    y = y_ref[...]                       # (TM, D) sublayer output (GRU "input")

    # Two fused MXU matmuls with f32 accumulation. Columns are [r | z | n].
    # Operands are cast to the weight dtype in-vreg (cheap VPU cast, no extra
    # HBM pass); bi already contains (b_ir + b_hr, b_iz + b_hz, b_in).
    i = jnp.dot(y.astype(w_dtype), wi_ref[...],
                preferred_element_type=jnp.float32) + bi_ref[...]
    h = jnp.dot(x.astype(w_dtype), wh_ref[...],
                preferred_element_type=jnp.float32)

    # Lane-aligned column slices (D is a multiple of 128 by construction).
    r = jax.nn.sigmoid(i[:, :D] + h[:, :D])
    z = jax.nn.sigmoid(i[:, D:2 * D] + h[:, D:2 * D])
    n = jnp.tanh(i[:, 2 * D:] + r * (h[:, 2 * D:] + bhn_ref[...]))

    # out = (1 - z) * n + z * x, rewritten as n + z * (x - n) to save a VALU op.
    x_f32 = x.astype(jnp.float32)
    o_ref[...] = (n + z * (x_f32 - n)).astype(o_ref.dtype)


# --------------------------------------------------------------------------- #
# Wrapper
# --------------------------------------------------------------------------- #
def _vmem_limit_bytes(row_tile, D, weight_dtype, io_dtype, out_dtype,
                      single_buffer_weights):
    wb = jnp.dtype(weight_dtype).itemsize
    iob = jnp.dtype(io_dtype).itemsize
    ob = jnp.dtype(out_dtype).itemsize
    n_wbuf = 1 if single_buffer_weights else 2
    weights = 2 * (D * 3 * D) * wb * n_wbuf           # W_i, W_h
    biases = (4 * D) * 4 * n_wbuf                     # b_i (3D) + b_hn (D), f32
    io_tiles = 2 * (2 * row_tile * D * iob)           # x, y tiles, double-buffered
    io_tiles += 2 * (row_tile * D * ob)               # out tile, double-buffered
    interm = 32 * row_tile * D                        # i/h (TM,3D) + r/z/n/x (TM,D) f32
    est = (weights + biases + io_tiles + interm) * 3 // 2
    try:
        cap = int(pltpu.get_tpu_info().vmem_capacity_bytes) * 4 // 5   # ~20% headroom
    except Exception:
        cap = 48 * 1024 * 1024                         # conservative (fits v7x 64 MiB/TC)
    floor = 32 * 1024 * 1024                           # lift the default scoped limit
    return int(min(max(est, floor), cap))


def _run_gate_call(xf, yf, params, N, D, row_tile, single_buffer_weights):
    grid_m = pl.cdiv(N, row_tile)
    w_dtype = params["w_i"].dtype

    # Constant-index-map blocks: single-buffering halves their resident VMEM.
    w_kwargs = (
        {"pipeline_mode": pl.Buffered(1)} if single_buffer_weights else {}
    )

    in_specs = [
        pl.BlockSpec((row_tile, D), lambda i: (i, 0)),              # x tile
        pl.BlockSpec((row_tile, D), lambda i: (i, 0)),              # y tile
        pl.BlockSpec((D, 3 * D), lambda i: (0, 0), **w_kwargs),     # W_i = [w_ir|w_iz|w_in]
        pl.BlockSpec((D, 3 * D), lambda i: (0, 0), **w_kwargs),     # W_h = [w_hr|w_hz|w_hn]
        pl.BlockSpec((1, 3 * D), lambda i: (0, 0), **w_kwargs),     # fused input-side bias
        pl.BlockSpec((1, D), lambda i: (0, 0), **w_kwargs),         # b_hn
    ]

    io_bytes = jnp.dtype(xf.dtype).itemsize
    cost = pl.CostEstimate(
        flops=int(12 * N * D * D),                    # two (N,D)x(D,3D) matmuls
        transcendentals=int(3 * N * D),               # 2 sigmoid + 1 tanh / element
        bytes_accessed=int(3 * N * D * io_bytes
                           + 6 * D * D * jnp.dtype(w_dtype).itemsize
                           + 4 * D * 4),
    )

    return pl.pallas_call(
        _gate_kernel,
        out_shape=jax.ShapeDtypeStruct((N, D), xf.dtype),
        grid_spec=pltpu.PrefetchScalarGridSpec(
            num_scalar_prefetch=0,
            grid=(grid_m,),
            in_specs=in_specs,
            out_specs=pl.BlockSpec((row_tile, D), lambda i: (i, 0)),
        ),
        compiler_params=pltpu.CompilerParams(
            dimension_semantics=("parallel",),
            vmem_limit_bytes=_vmem_limit_bytes(
                row_tile, D, w_dtype, xf.dtype, xf.dtype, single_buffer_weights
            ),
        ),
        cost_estimate=cost,
    )(xf, yf, params["w_i"], params["w_h"], params["b_i"], params["b_hn"])


def gate_forward(x, y, params, *, row_tile=256, single_buffer_weights=True):
    """x, y: (batch, seq, embed_dim). Returns same shape/dtype as x.

    params: packed dict from `pack_gate_params` (fused weights w_i/w_h of shape
    (D, 3D), fused bias b_i of shape (1, 3D), and b_hn of shape (1, D)).
    On v7x prefer row_tile=512 (VMEM permitting); keep batch*seq large enough
    that pl.cdiv(N, row_tile) >= 2 so both TensorCores get work.
    """
    B, S, D = x.shape
    # TODO(synk): if D % 128 != 0, fall back to three separate (D, D) outputs
    # instead of lane-slicing the fused (TM, 3D) result.
    assert D % 128 == 0, "embed_dim must be a multiple of 128 for the fused layout"
    assert row_tile % 16 == 0, "row_tile must be a multiple of 16 (sublane packing)"

    N = B * S
    # No padding / dtype casts here: reshape is a free view, Pallas masks the
    # ragged final block, and operand casts happen inside the kernel.
    xf = x.reshape(N, D)
    yf = y.reshape(N, D)
    eff_tile = min(row_tile, max(16, (N + 15) // 16 * 16))  # don't over-tile tiny inputs

    try:
        out = _run_gate_call(xf, yf, params, N, D, eff_tile, single_buffer_weights)
    except Exception:
        if not single_buffer_weights:
            raise
        # Fallback for JAX versions where pl.Buffered(1) on a top-level
        # pallas_call BlockSpec is not supported: use default double-buffering.
        out = _run_gate_call(xf, yf, params, N, D, eff_tile, False)

    return out.reshape(B, S, D)


# --------------------------------------------------------------------------- #
# Parameter construction
# --------------------------------------------------------------------------- #
def init_gate_params(key, embed_dim, dtype=jnp.float32):
    """Deterministic init matching torch.nn.GRUCell: U(-1/sqrt(H), 1/sqrt(H)).

    Returns the six unfused weights/biases (weights stored as (D_in, D_out),
    i.e. already transposed for `v @ W`).
    """
    bound = 1.0 / jnp.sqrt(jnp.float32(embed_dim))
    names_w = ["w_ir", "w_iz", "w_in", "w_hr", "w_hz", "w_hn"]
    names_b = ["b_ir", "b_iz", "b_in", "b_hr", "b_hz", "b_hn"]
    keys = jax.random.split(key, len(names_w) + len(names_b))
    params = {}
    for n, k in zip(names_w, keys[: len(names_w)]):
        params[n] = jax.random.uniform(
            k, (embed_dim, embed_dim), dtype, minval=-bound, maxval=bound
        )
    for n, k in zip(names_b, keys[len(names_w):]):
        params[n] = jax.random.uniform(
            k, (1, embed_dim), dtype, minval=-bound, maxval=bound
        )
    return params


def pack_gate_params(params, weight_dtype=None):
    """Fuse the six GRU-gate weights/biases for the kernel.

    w_i = [w_ir | w_iz | w_in], w_h = [w_hr | w_hz | w_hn]  -> (D, 3D)
    b_i = [b_ir + b_hr | b_iz + b_hz | b_in]                -> (1, 3D)
    b_hn kept separate because of r * (x @ w_hn + b_hn).
    Set weight_dtype=jnp.bfloat16 to run the matmuls at full MXU rate and halve
    weight bytes read (recommended on v5e where the kernel is HBM-bound).
    """
    w_i = jnp.concatenate([params["w_ir"], params["w_iz"], params["w_in"]], axis=1)
    w_h = jnp.concatenate([params["w_hr"], params["w_hz"], params["w_hn"]], axis=1)
    if weight_dtype is not None:
        w_i = w_i.astype(weight_dtype)
        w_h = w_h.astype(weight_dtype)
    b_i = jnp.concatenate(
        [
            params["b_ir"] + params["b_hr"],
            params["b_iz"] + params["b_hz"],
            params["b_in"],
        ],
        axis=1,
    ).astype(jnp.float32)
    b_hn = params["b_hn"].astype(jnp.float32)
    return {"w_i": w_i, "w_h": w_h, "b_i": b_i, "b_hn": b_hn}


# --------------------------------------------------------------------------- #
# Pure-JAX reference (unfused math, no Pallas)
# --------------------------------------------------------------------------- #
def gate_reference(x, y, params):
    B, S, D = x.shape
    xf = x.reshape(-1, D).astype(jnp.float32)
    yf = y.reshape(-1, D).astype(jnp.float32)
    i_r = yf @ params["w_ir"] + params["b_ir"]
    i_z = yf @ params["w_iz"] + params["b_iz"]
    i_n = yf @ params["w_in"] + params["b_in"]
    h_r = xf @ params["w_hr"] + params["b_hr"]
    h_z = xf @ params["w_hz"] + params["b_hz"]
    h_n = xf @ params["w_hn"] + params["b_hn"]
    r = jax.nn.sigmoid(i_r + h_r)
    z = jax.nn.sigmoid(i_z + h_z)
    n = jnp.tanh(i_n + r * h_n)
    out = (1.0 - z) * n + z * xf
    return out.reshape(B, S, D).astype(x.dtype)


if __name__ == "__main__":
    # Small but lane-dense test: embed_dim=128 fills the 128-lane axis,
    # batch*seq = 144 is NOT a multiple of row_tile so the ragged final block
    # (Pallas-masked partial stores) is exercised.
    batch, seq, embed_dim = 2, 72, 128

    key = jax.random.PRNGKey(0)
    kx, ky, kp = jax.random.split(key, 3)
    x = jax.random.normal(kx, (batch, seq, embed_dim), jnp.float32)
    y = jax.random.normal(ky, (batch, seq, embed_dim), jnp.float32)

    raw_params = init_gate_params(kp, embed_dim)
    ref = gate_reference(x, y, raw_params)

    # f32-weight path: tight check against the unfused reference.
    packed_f32 = pack_gate_params(raw_params)
    out = gate_forward(x, y, packed_f32, row_tile=128)
    out = jax.block_until_ready(out)
    assert out.shape == (batch, seq, embed_dim)
    assert jnp.allclose(out, ref, atol=1e-4, rtol=1e-4)

    # bf16-weight path (prod config): exercises the in-kernel operand cast and
    # the full-precision residual/skip path; loose tolerance for bf16 rounding.
    packed_bf16 = pack_gate_params(raw_params, weight_dtype=jnp.bfloat16)
    out_bf16 = jax.block_until_ready(gate_forward(x, y, packed_bf16, row_tile=128))
    assert jnp.all(jnp.isfinite(out_bf16))
    assert jnp.allclose(out_bf16, ref, atol=5e-2, rtol=5e-2)

    print("KERNEL_OK")
</pallas_src>

<mosaic_0001>
module attributes {stable_mosaic.version = 11 : i64} {
  func.func @_gate_kernel(%arg0: i32, %arg1: memref<128x128xf32, #tpu.memory_space<vmem>>, %arg2: memref<128x128xf32, #tpu.memory_space<vmem>>, %arg3: memref<128x384xf32, #tpu.memory_space<vmem>>, %arg4: memref<128x384xf32, #tpu.memory_space<vmem>>, %arg5: memref<1x384xf32, #tpu.memory_space<vmem>>, %arg6: memref<1x128xf32, #tpu.memory_space<vmem>>, %arg7: memref<128x128xf32, #tpu.memory_space<vmem>>) attributes {dimension_semantics = [#tpu.dimension_semantics<parallel>], iteration_bounds = array<i64: 2>, scalar_prefetch = 0 : i64, scratch_operands = 0 : i64, tpu.core_type = #tpu.core_type<tc>, window_params = [{transform_indices = @transform_0, window_bounds = array<i64: 128, 128>}, {transform_indices = @transform_1, window_bounds = array<i64: 128, 128>}, {pipeline_mode = #tpu.pipeline_mode<synchronous>, transform_indices = @transform_2, window_bounds = array<i64: 128, 384>}, {pipeline_mode = #tpu.pipeline_mode<synchronous>, transform_indices = @transform_3, window_bounds = array<i64: 128, 384>}, {pipeline_mode = #tpu.pipeline_mode<synchronous>, transform_indices = @transform_4, window_bounds = array<i64: 1, 384>}, {pipeline_mode = #tpu.pipeline_mode<synchronous>, transform_indices = @transform_5, window_bounds = array<i64: 1, 128>}, {transform_indices = @transform_6, window_bounds = array<i64: 128, 128>}]} {
    %c0 = arith.constant 0 : index
    %c0_0 = arith.constant 0 : index
    %0 = vector.load %arg1[%c0, %c0_0] : memref<128x128xf32, #tpu.memory_space<vmem>>, vector<128x128xf32>
    %c0_1 = arith.constant 0 : index
    %c0_2 = arith.constant 0 : index
    %1 = vector.load %arg2[%c0_1, %c0_2] : memref<128x128xf32, #tpu.memory_space<vmem>>, vector<128x128xf32>
    %c0_3 = arith.constant 0 : index
    %c0_4 = arith.constant 0 : index
    %2 = vector.load %arg3[%c0_3, %c0_4] : memref<128x384xf32, #tpu.memory_space<vmem>>, vector<128x384xf32>
    %cst = arith.constant dense<0.000000e+00> : vector<128x384xf32>
    %3 = tpu.matmul %1, %2, %cst {dimension_numbers = #tpu.dot_dimension_numbers<[1], [0], [0], [1], [0, 0, 1, 1], [], []>} : vector<128x128xf32>, vector<128x384xf32>, vector<128x384xf32> -> vector<128x384xf32>
    %c0_5 = arith.constant 0 : index
    %c0_6 = arith.constant 0 : index
    %4 = vector.load %arg5[%c0_5, %c0_6] : memref<1x384xf32, #tpu.memory_space<vmem>>, vector<1x384xf32>
    %5 = vector.broadcast %4 : vector<1x384xf32> to vector<128x384xf32>
    %6 = arith.addf %3, %5 : vector<128x384xf32>
    %c0_7 = arith.constant 0 : index
    %c0_8 = arith.constant 0 : index
    %7 = vector.load %arg4[%c0_7, %c0_8] : memref<128x384xf32, #tpu.memory_space<vmem>>, vector<128x384xf32>
    %cst_9 = arith.constant dense<0.000000e+00> : vector<128x384xf32>
    %8 = tpu.matmul %0, %7, %cst_9 {dimension_numbers = #tpu.dot_dimension_numbers<[1], [0], [0], [1], [0, 0, 1, 1], [], []>} : vector<128x128xf32>, vector<128x384xf32>, vector<128x384xf32> -> vector<128x384xf32>
    %9 = vector.extract_strided_slice %6 {offsets = [0, 0], sizes = [128, 128], strides = [1, 1]} : vector<128x384xf32> to vector<128x128xf32>
    %10 = vector.extract_strided_slice %8 {offsets = [0, 0], sizes = [128, 128], strides = [1, 1]} : vector<128x384xf32> to vector<128x128xf32>
    %11 = arith.addf %9, %10 : vector<128x128xf32>
    %12 = arith.negf %11 : vector<128x128xf32>
    %13 = math.exp %12 : vector<128x128xf32>
    %cst_10 = arith.constant 1.000000e+00 : f32
    %14 = vector.broadcast %cst_10 : f32 to vector<128x128xf32>
    %15 = arith.addf %14, %13 : vector<128x128xf32>
    %16 = arith.divf %14, %15 : vector<128x128xf32>
    %17 = vector.extract_strided_slice %6 {offsets = [0, 128], sizes = [128, 128], strides = [1, 1]} : vector<128x384xf32> to vector<128x128xf32>
    %18 = vector.extract_strided_slice %8 {offsets = [0, 128], sizes = [128, 128], strides = [1, 1]} : vector<128x384xf32> to vector<128x128xf32>
    %19 = arith.addf %17, %18 : vector<128x128xf32>
    %20 = arith.negf %19 : vector<128x128xf32>
    %21 = math.exp %20 : vector<128x128xf32>
    %cst_11 = arith.constant 1.000000e+00 : f32
    %22 = vector.broadcast %cst_11 : f32 to vector<128x128xf32>
    %23 = arith.addf %22, %21 : vector<128x128xf32>
    %24 = arith.divf %22, %23 : vector<128x128xf32>
    %25 = vector.extract_strided_slice %6 {offsets = [0, 256], sizes = [128, 128], strides = [1, 1]} : vector<128x384xf32> to vector<128x128xf32>
    %26 = vector.extract_strided_slice %8 {offsets = [0, 256], sizes = [128, 128], strides = [1, 1]} : vector<128x384xf32> to vector<128x128xf32>
    %c0_12 = arith.constant 0 : index
    %c0_13 = arith.constant 0 : index
    %27 = vector.load %arg6[%c0_12, %c0_13] : memref<1x128xf32, #tpu.memory_space<vmem>>, vector<1x128xf32>
    %28 = vector.broadcast %27 : vector<1x128xf32> to vector<128x128xf32>
    %29 = arith.addf %26, %28 : vector<128x128xf32>
    %30 = arith.mulf %16, %29 : vector<128x128xf32>
    %31 = arith.addf %25, %30 : vector<128x128xf32>
    %32 = math.tanh %31 : vector<128x128xf32>
    %33 = arith.subf %0, %32 : vector<128x128xf32>
    %34 = arith.mulf %24, %33 : vector<128x128xf32>
    %35 = arith.addf %32, %34 : vector<128x128xf32>
    %c0_14 = arith.constant 0 : index
    %c0_15 = arith.constant 0 : index
    %36 = vector.load %arg7[%c0_14, %c0_15] : memref<128x128xf32, #tpu.memory_space<vmem>>, vector<128x128xf32>
    tpu.vector_store %arg7[%c0_14, %c0_15], %35 {strides = array<i32>} : memref<128x128xf32, #tpu.memory_space<vmem>>, vector<128x128xf32>,
    return
  }
  func.func @transform_0(%arg0: i32) -> (i32, i32) {
    %c0_i32 = arith.constant 0 : i32
    %c0_i32_0 = arith.constant 0 : i32
    return %arg0, %c0_i32 : i32, i32
  }
  func.func @transform_1(%arg0: i32) -> (i32, i32) {
    %c0_i32 = arith.constant 0 : i32
    %c0_i32_0 = arith.constant 0 : i32
    return %arg0, %c0_i32 : i32, i32
  }
  func.func @transform_2(%arg0: i32) -> (i32, i32) {
    %c0_i32 = arith.constant 0 : i32
    %c0_i32_0 = arith.constant 0 : i32
    %c0_i32_1 = arith.constant 0 : i32
    return %c0_i32, %c0_i32_0 : i32, i32
  }
  func.func @transform_3(%arg0: i32) -> (i32, i32) {
    %c0_i32 = arith.constant 0 : i32
    %c0_i32_0 = arith.constant 0 : i32
    %c0_i32_1 = arith.constant 0 : i32
    return %c0_i32, %c0_i32_0 : i32, i32
  }
  func.func @transform_4(%arg0: i32) -> (i32, i32) {
    %c0_i32 = arith.constant 0 : i32
    %c0_i32_0 = arith.constant 0 : i32
    %c0_i32_1 = arith.constant 0 : i32
    return %c0_i32, %c0_i32_0 : i32, i32
  }
  func.func @transform_5(%arg0: i32) -> (i32, i32) {
    %c0_i32 = arith.constant 0 : i32
    %c0_i32_0 = arith.constant 0 : i32
    %c0_i32_1 = arith.constant 0 : i32
    return %c0_i32, %c0_i32_0 : i32, i32
  }
  func.func @transform_6(%arg0: i32) -> (i32, i32) {
    %c0_i32 = arith.constant 0 : i32
    %c0_i32_0 = arith.constant 0 : i32
    return %arg0, %c0_i32 : i32, i32
  }
}

module attributes {stable_mosaic.version = 11 : i64} {
  func.func @_gate_kernel(%arg0: i32, %arg1: memref<128x128xf32, #tpu.memory_space<vmem>>, %arg2: memref<128x128xf32, #tpu.memory_space<vmem>>, %arg3: memref<128x384xf32, #tpu.memory_space<vmem>>, %arg4: memref<128x384xf32, #tpu.memory_space<vmem>>, %arg5: memref<1x384xf32, #tpu.memory_space<vmem>>, %arg6: memref<1x128xf32, #tpu.memory_space<vmem>>, %arg7: memref<128x128xf32, #tpu.memory_space<vmem>>) attributes {dimension_semantics = [#tpu.dimension_semantics<parallel>], iteration_bounds = array<i64: 2>, scalar_prefetch = 0 : i64, scratch_operands = 0 : i64, tpu.core_type = #tpu.core_type<tc>, window_params = [{transform_indices = @transform_0, window_bounds = array<i64: 128, 128>}, {transform_indices = @transform_1, window_bounds = array<i64: 128, 128>}, {pipeline_mode = #tpu.pipeline_mode<synchronous>, transform_indices = @transform_2, window_bounds = array<i64: 128, 384>}, {pipeline_mode = #tpu.pipeline_mode<synchronous>, transform_indices = @transform_3, window_bounds = array<i64: 128, 384>}, {pipeline_mode = #tpu.pipeline_mode<synchronous>, transform_indices = @transform_4, window_bounds = array<i64: 1, 384>}, {pipeline_mode = #tpu.pipeline_mode<synchronous>, transform_indices = @transform_5, window_bounds = array<i64: 1, 128>}, {transform_indices = @transform_6, window_bounds = array<i64: 128, 128>}]} {
    %c0 = arith.constant 0 : index
    %c0_0 = arith.constant 0 : index
    %0 = vector.load %arg1[%c0, %c0_0] : memref<128x128xf32, #tpu.memory_space<vmem>>, vector<128x128xf32>
    %c0_1 = arith.constant 0 : index
    %c0_2 = arith.constant 0 : index
    %1 = vector.load %arg2[%c0_1, %c0_2] : memref<128x128xf32, #tpu.memory_space<vmem>>, vector<128x128xf32>
    %c0_3 = arith.constant 0 : index
    %c0_4 = arith.constant 0 : index
    %2 = vector.load %arg3[%c0_3, %c0_4] : memref<128x384xf32, #tpu.memory_space<vmem>>, vector<128x384xf32>
    %cst = arith.constant dense<0.000000e+00> : vector<128x384xf32>
    %3 = tpu.matmul %1, %2, %cst {dimension_numbers = #tpu.dot_dimension_numbers<[1], [0], [0], [1], [0, 0, 1, 1], [], []>} : vector<128x128xf32>, vector<128x384xf32>, vector<128x384xf32> -> vector<128x384xf32>
    %c0_5 = arith.constant 0 : index
    %c0_6 = arith.constant 0 : index
    %4 = vector.load %arg5[%c0_5, %c0_6] : memref<1x384xf32, #tpu.memory_space<vmem>>, vector<1x384xf32>
    %5 = vector.broadcast %4 : vector<1x384xf32> to vector<128x384xf32>
    %6 = arith.addf %3, %5 : vector<128x384xf32>
    %c0_7 = arith.constant 0 : index
    %c0_8 = arith.constant 0 : index
    %7 = vector.load %arg4[%c0_7, %c0_8] : memref<128x384xf32, #tpu.memory_space<vmem>>, vector<128x384xf32>
    %cst_9 = arith.constant dense<0.000000e+00> : vector<128x384xf32>
    %8 = tpu.matmul %0, %7, %cst_9 {dimension_numbers = #tpu.dot_dimension_numbers<[1], [0], [0], [1], [0, 0, 1, 1], [], []>} : vector<128x128xf32>, vector<128x384xf32>, vector<128x384xf32> -> vector<128x384xf32>
    %9 = vector.extract_strided_slice %6 {offsets = [0, 0], sizes = [128, 128], strides = [1, 1]} : vector<128x384xf32> to vector<128x128xf32>
    %10 = vector.extract_strided_slice %8 {offsets = [0, 0], sizes = [128, 128], strides = [1, 1]} : vector<128x384xf32> to vector<128x128xf32>
    %11 = arith.addf %9, %10 : vector<128x128xf32>
    %12 = arith.negf %11 : vector<128x128xf32>
    %13 = math.exp %12 : vector<128x128xf32>
    %cst_10 = arith.constant 1.000000e+00 : f32
    %14 = vector.broadcast %cst_10 : f32 to vector<128x128xf32>
    %15 = arith.addf %14, %13 : vector<128x128xf32>
    %16 = arith.divf %14, %15 : vector<128x128xf32>
    %17 = vector.extract_strided_slice %6 {offsets = [0, 128], sizes = [128, 128], strides = [1, 1]} : vector<128x384xf32> to vector<128x128xf32>
    %18 = vector.extract_strided_slice %8 {offsets = [0, 128], sizes = [128, 128], strides = [1, 1]} : vector<128x384xf32> to vector<128x128xf32>
    %19 = arith.addf %17, %18 : vector<128x128xf32>
    %20 = arith.negf %19 : vector<128x128xf32>
    %21 = math.exp %20 : vector<128x128xf32>
    %cst_11 = arith.constant 1.000000e+00 : f32
    %22 = vector.broadcast %cst_11 : f32 to vector<128x128xf32>
    %23 = arith.addf %22, %21 : vector<128x128xf32>
    %24 = arith.divf %22, %23 : vector<128x128xf32>
    %25 = vector.extract_strided_slice %6 {offsets = [0, 256], sizes = [128, 128], strides = [1, 1]} : vector<128x384xf32> to vector<128x128xf32>
    %26 = vector.extract_strided_slice %8 {offsets = [0, 256], sizes = [128, 128], strides = [1, 1]} : vector<128x384xf32> to vector<128x128xf32>
    %c0_12 = arith.constant 0 : index
    %c0_13 = arith.constant 0 : index
    %27 = vector.load %arg6[%c0_12, %c0_13] : memref<1x128xf32, #tpu.memory_space<vmem>>, vector<1x128xf32>
    %28 = vector.broadcast %27 : vector<1x128xf32> to vector<128x128xf32>
    %29 = arith.addf %26, %28 : vector<128x128xf32>
    %30 = arith.mulf %16, %29 : vector<128x128xf32>
    %31 = arith.addf %25, %30 : vector<128x128xf32>
    %32 = math.tanh %31 : vector<128x128xf32>
    %33 = arith.subf %0, %32 : vector<128x128xf32>
    %34 = arith.mulf %24, %33 : vector<128x128xf32>
    %35 = arith.addf %32, %34 : vector<128x128xf32>
    %c0_14 = arith.constant 0 : index
    %c0_15 = arith.constant 0 : index
    %36 = vector.load %arg7[%c0_14, %c0_15] : memref<128x128xf32, #tpu.memory_space<vmem>>, vector<128x128xf32>
    tpu.vector_store %arg7[%c0_14, %c0_15], %35 {strides = array<i32>} : memref<128x128xf32, #tpu.memory_space<vmem>>, vector<128x128xf32>,
    return
  }
  func.func @transform_0(%arg0: i32) -> (i32, i32) {
    %c0_i32 = arith.constant 0 : i32
    %c0_i32_0 = arith.constant 0 : i32
    return %arg0, %c0_i32 : i32, i32
  }
  func.func @transform_1(%arg0: i32) -> (i32, i32) {
    %c0_i32 = arith.constant 0 : i32
    %c0_i32_0 = arith.constant 0 : i32
    return %arg0, %c0_i32 : i32, i32
  }
  func.func @transform_2(%arg0: i32) -> (i32, i32) {
    %c0_i32 = arith.constant 0 : i32
    %c0_i32_0 = arith.constant 0 : i32
    %c0_i32_1 = arith.constant 0 : i32
    return %c0_i32, %c0_i32_0 : i32, i32
  }
  func.func @transform_3(%arg0: i32) -> (i32, i32) {
    %c0_i32 = arith.constant 0 : i32
    %c0_i32_0 = arith.constant 0 : i32
    %c0_i32_1 = arith.constant 0 : i32
    return %c0_i32, %c0_i32_0 : i32, i32
  }
  func.func @transform_4(%arg0: i32) -> (i32, i32) {
    %c0_i32 = arith.constant 0 : i32
    %c0_i32_0 = arith.constant 0 : i32
    %c0_i32_1 = arith.constant 0 : i32
    return %c0_i32, %c0_i32_0 : i32, i32
  }
  func.func @transform_5(%arg0: i32) -> (i32, i32) {
    %c0_i32 = arith.constant 0 : i32
    %c0_i32_0 = arith.constant 0 : i32
    %c0_i32_1 = arith.constant 0 : i32
    return %c0_i32, %c0_i32_0 : i32, i32
  }
  func.func @transform_6(%arg0: i32) -> (i32, i32) {
    %c0_i32 = arith.constant 0 : i32
    %c0_i32_0 = arith.constant 0 : i32
    return %arg0, %c0_i32 : i32, i32
  }
}

</mosaic_0001>

<llo_original>
// kernel: tpu_custom_call.1
$region0: #{tpu_custom_call.1}
  #allocation0 [shape = 'u32[]', space=smem, size = 0x4, offset = 0x4, fixed_abs, tag = 'smem constant byte address 0x4 - core index']
  #allocation1 [shape = 'u32[72,128]{1,0:T(1,128)}', space=vmem, size = 0x9000, scoped, tag = 'internal scratch']
  %s0 = inlined_call_operand.hbm [shape: f32[144,128], index: 0, kind: input, shape index: {}]
  %s1 = inlined_call_operand.hbm [shape: f32[144,128], index: 1, kind: input, shape index: {}]
  %s2 = inlined_call_operand.hbm [shape: f32[128,384], index: 2, kind: input, shape index: {}]
  %s3 = inlined_call_operand.hbm [shape: f32[128,384], index: 3, kind: input, shape index: {}]
  %s4 = inlined_call_operand.vmem [shape: f32[1,384], index: 4, kind: input, shape index: {}]
  %s5 = inlined_call_operand.vmem [shape: f32[1,128], index: 5, kind: input, shape index: {}]
  %s6 = inlined_call_operand.hbm [shape: f32[144,128], index: 6, kind: output, shape index: {}]
  %s7 = sld [smem:[#allocation0]]
  $region73: #{tpu_custom_call.1} parent=0
    _
  %s9 = ssub.s32 1, %s7
  %s10 = scalar_select 0, %s9, %s7
  $region1: #{tpu_custom_call.1} parent=0
    #allocation2 [shape = 'u8[131072]{0}', space=vmem, size = 0x20000, scoped, tag = 'input window, operand 0']
    #allocation3 [shape = 's32[2]{0}', space=sflag, size = 0x8, scoped, tag = 'scoped memory for tpu_custom_call.1']
    #allocation4 [shape = 's32[2]{0}', space=sflag, size = 0x8, scoped, tag = 'scoped memory for tpu_custom_call.1']
    #allocation5 [shape = 'u8[131072]{0}', space=vmem, size = 0x20000, scoped, tag = 'input window, operand 1']
    #allocation6 [shape = 's32[2]{0}', space=sflag, size = 0x8, scoped, tag = 'scoped memory for tpu_custom_call.1']
    #allocation7 [shape = 'u8[196608]{0}', space=vmem, size = 0x30000, scoped, tag = 'input window, operand 2, single buffered']
    #allocation8 [shape = 'u8[196608]{0}', space=vmem, size = 0x30000, scoped, tag = 'input window, operand 3, single buffered']
    #allocation9 [shape = 's32[1]{0}', space=sflag, size = 0x4, scoped, tag = 'scoped memory for tpu_custom_call.1']
    #allocation10 [shape = 'u8[131072]{0}', space=vmem, size = 0x20000, scoped, tag = 'output window, operand 0']
    %11 = vsyncpa [#allocation3], 0
    %s12 = scalar_lea.sflag [#allocation3], 1
    %13 = vsyncpa %s12, 0
    %14 = vsyncpa [#allocation6], 0
    %s15 = scalar_lea.sflag [#allocation6], 1
    %16 = vsyncpa %s15, 0
    %17 = vsyncpa [#allocation9], 0
    %18 = vsyncpa [#allocation4], 0
    %s19 = scalar_lea.sflag [#allocation4], 1
    %20 = vsyncpa %s19, 0
    loop: start=0, step=1, limit=4
    $region2: #{tpu_custom_call.1} parent=1 // loop_pre_header
      _
    $region3: #{tpu_custom_call.1} parent=1 // loop_header
      %s22 = sphi 0, %s26
      %p23 = scmp.ge.s32.totalorder %s22, 4
      %s32 = sphi 0, %s34
      %s35 = sphi 0, %s32
      %s36 = sphi 0, %s35
      %s52 = sphi 0, %s36
      %s58 = sphi 0, %s60
      %s61 = sphi 0, %s58
      %s62 = sphi 0, %s61
      %s78 = sphi 0, %s62
      %s82 = sphi 0, %s82
      %s84 = sphi 0, %s82
      %s85 = sphi 0, %s84
      %s99 = sphi 0, %s85
      %s103 = sphi 0, %s103
      %s105 = sphi 0, %s103
      %s106 = sphi 0, %s105
      %s120 = sphi 0, %s106
      %s124 = sphi 0, %s124
      %s126 = sphi 0, %s124
      %s127 = sphi 0, %s126
      %s141 = sphi 0, %s127
      %s145 = sphi 0, %s145
      %s147 = sphi 0, %s145
      %s148 = sphi 0, %s147
      %s162 = sphi 0, %s148
      %s168 = sphi 0, %s170
      %s171 = sphi 0, %s168
      %s172 = sphi 0, %s171
      %s188 = sphi 0, %s172
    $region4: #{tpu_custom_call.1} parent=1 // loop_header_branch
      %25 = sbr.rel (%p23) target = $region8
    $region5: #{tpu_custom_call.1} parent=1 // loop_body
      %s27 = ssub.s32 %s22, 1
      %s28 = ssub.s32 %s22, 2
      %s29 = sadd.s32 %s22, 1
      %s30 = ssub.s32 %s22, %s29
      %p31 = scmp.eq.s32.totalorder %s30, 0
      %s33 = sadd.s32 %s32, 1
      %s34 = scalar_select %p31, %s32, %s33
      %p37 = pneg %p31
      %p38 = scmp.eq.s32.totalorder %s22, 1
      %p39 = por %p37, %p38
      %p40 = scmp.ne.s32.totalorder %s32, %s35
      %p41 = scmp.eq.s32.totalorder %s22, 0
      %p42 = por %p40, %p41
      %p43 = scmp.ne.s32.totalorder %s32, %s35
      %p44 = scmp.eq.s32.totalorder %s27, 1
      %p45 = por %p43, %p44
      %p46 = scmp.ne.s32.totalorder %s35, %s36
      %p47 = scmp.eq.s32.totalorder %s27, 0
      %p48 = por %p46, %p47
      %p49 = scmp.ne.s32.totalorder %s35, %s36
      %p50 = scmp.eq.s32.totalorder %s28, 1
      %p51 = por %p49, %p50
      %p53 = scmp.ne.s32.totalorder %s36, %s52
      %p54 = scmp.eq.s32.totalorder %s28, 0
      %p55 = por %p53, %p54
      %s56 = ssub.s32 %s22, %s29
      %p57 = scmp.eq.s32.totalorder %s56, 0
      %s59 = sadd.s32 %s58, 1
      %s60 = scalar_select %p57, %s58, %s59
      %p63 = pneg %p57
      %p64 = scmp.eq.s32.totalorder %s22, 1
      %p65 = por %p63, %p64
      %p66 = scmp.ne.s32.totalorder %s58, %s61
      %p67 = scmp.eq.s32.totalorder %s22, 0
      %p68 = por %p66, %p67
      %p69 = scmp.ne.s32.totalorder %s58, %s61
      %p70 = scmp.eq.s32.totalorder %s27, 1
      %p71 = por %p69, %p70
      %p72 = scmp.ne.s32.totalorder %s61, %s62
      %p73 = scmp.eq.s32.totalorder %s27, 0
      %p74 = por %p72, %p73
      %p75 = scmp.ne.s32.totalorder %s61, %s62
      %p76 = scmp.eq.s32.totalorder %s28, 1
      %p77 = por %p75, %p76
      %p79 = scmp.ne.s32.totalorder %s62, %s78
      %p80 = scmp.eq.s32.totalorder %s28, 0
      %p81 = por %p79, %p80
      %s83 = sadd.s32 %s82, 1
      %p86 = scmp.eq.s32.totalorder %s22, 1
      %p87 = scmp.ne.s32.totalorder %s82, %s84
      %p88 = scmp.eq.s32.totalorder %s22, 0
      %p89 = por %p87, %p88
      %p90 = scmp.ne.s32.totalorder %s82, %s84
      %p91 = scmp.eq.s32.totalorder %s27, 1
      %p92 = por %p90, %p91
      %p93 = scmp.ne.s32.totalorder %s84, %s85
      %p94 = scmp.eq.s32.totalorder %s27, 0
      %p95 = por %p93, %p94
      %p96 = scmp.ne.s32.totalorder %s84, %s85
      %p97 = scmp.eq.s32.totalorder %s28, 1
      %p98 = por %p96, %p97
      %p100 = scmp.ne.s32.totalorder %s85, %s99
      %p101 = scmp.eq.s32.totalorder %s28, 0
      %p102 = por %p100, %p101
      %s104 = sadd.s32 %s103, 1
      %p107 = scmp.eq.s32.totalorder %s22, 1
      %p108 = scmp.ne.s32.totalorder %s103, %s105
      %p109 = scmp.eq.s32.totalorder %s22, 0
      %p110 = por %p108, %p109
      %p111 = scmp.ne.s32.totalorder %s103, %s105
      %p112 = scmp.eq.s32.totalorder %s27, 1
      %p113 = por %p111, %p112
      %p114 = scmp.ne.s32.totalorder %s105, %s106
      %p115 = scmp.eq.s32.totalorder %s27, 0
      %p116 = por %p114, %p115
      %p117 = scmp.ne.s32.totalorder %s105, %s106
      %p118 = scmp.eq.s32.totalorder %s28, 1
      %p119 = por %p117, %p118
      %p121 = scmp.ne.s32.totalorder %s106, %s120
      %p122 = scmp.eq.s32.totalorder %s28, 0
      %p123 = por %p121, %p122
      %s125 = sadd.s32 %s124, 1
      %p128 = scmp.eq.s32.totalorder %s22, 1
      %p129 = scmp.ne.s32.totalorder %s124, %s126
      %p130 = scmp.eq.s32.totalorder %s22, 0
      %p131 = por %p129, %p130
      %p132 = scmp.ne.s32.totalorder %s124, %s126
      %p133 = scmp.eq.s32.totalorder %s27, 1
      %p134 = por %p132, %p133
      %p135 = scmp.ne.s32.totalorder %s126, %s127
      %p136 = scmp.eq.s32.totalorder %s27, 0
      %p137 = por %p135, %p136
      %p138 = scmp.ne.s32.totalorder %s126, %s127
      %p139 = scmp.eq.s32.totalorder %s28, 1
      %p140 = por %p138, %p139
      %p142 = scmp.ne.s32.totalorder %s127, %s141
      %p143 = scmp.eq.s32.totalorder %s28, 0
      %p144 = por %p142, %p143
      %s146 = sadd.s32 %s145, 1
      %p149 = scmp.eq.s32.totalorder %s22, 1
      %p150 = scmp.ne.s32.totalorder %s145, %s147
      %p151 = scmp.eq.s32.totalorder %s22, 0
      %p152 = por %p150, %p151
      %p153 = scmp.ne.s32.totalorder %s145, %s147
      %p154 = scmp.eq.s32.totalorder %s27, 1
      %p155 = por %p153, %p154
      %p156 = scmp.ne.s32.totalorder %s147, %s148
      %p157 = scmp.eq.s32.totalorder %s27, 0
      %p158 = por %p156, %p157
      %p159 = scmp.ne.s32.totalorder %s147, %s148
      %p160 = scmp.eq.s32.totalorder %s28, 1
      %p161 = por %p159, %p160
      %p163 = scmp.ne.s32.totalorder %s148, %s162
      %p164 = scmp.eq.s32.totalorder %s28, 0
      %p165 = por %p163, %p164
      %s166 = ssub.s32 %s22, %s29
      %p167 = scmp.eq.s32.totalorder %s166, 0
      %s169 = sadd.s32 %s168, 1
      %s170 = scalar_select %p167, %s168, %s169
      %p173 = pneg %p167
      %p174 = scmp.eq.s32.totalorder %s22, 1
      %p175 = por %p173, %p174
      %p176 = scmp.ne.s32.totalorder %s168, %s171
      %p177 = scmp.eq.s32.totalorder %s22, 0
      %p178 = por %p176, %p177
      %p179 = scmp.ne.s32.totalorder %s168, %s171
      %p180 = scmp.eq.s32.totalorder %s27, 1
      %p181 = por %p179, %p180
      %p182 = scmp.ne.s32.totalorder %s171, %s172
      %p183 = scmp.eq.s32.totalorder %s27, 0
      %p184 = por %p182, %p183
      %p185 = scmp.ne.s32.totalorder %s171, %s172
      %p186 = scmp.eq.s32.totalorder %s28, 1
      %p187 = por %p185, %p186
      %p189 = scmp.ne.s32.totalorder %s172, %s188
      %p190 = scmp.eq.s32.totalorder %s28, 0
      %p191 = por %p189, %p190
      %p192 = scmp.le.s32.totalorder 1, %s22
      %p193 = scmp.lt.s32.totalorder %s22, 3
      %p194 = pnand %p192, %p193
      %p195 = pneg %p194
      // Predicated region
      $region9: #{tpu_custom_call.1} parent=5 // pred_check
        _
      $region10: #{tpu_custom_call.1} parent=5 // pred_check_branch
        %197 = sbr.rel (%p194) target = $region12
      $region11: #{tpu_custom_call.1} parent=5 // pred_region
        %s198 = ssub.s32 %s22, 1
        // Predicated region
        $region13: #{tpu_custom_call.1} parent=11 // pred_check
          %p199 = pneg %p95
        $region14: #{tpu_custom_call.1} parent=11 // pred_check_branch
          %201 = sbr.rel (%p199) target = $region16
        $region15: #{tpu_custom_call.1} parent=11 // pred_region
          %203 = vsyncadd [#allocation6], 0
          %s204 = sshll.u32 %s2, 4
          %s205 = int_to_ptr.hbm [resolvable:$true] %s204
          %s206 = sshll.u32 [#allocation7], 4
          %s207 = int_to_ptr.vmem [resolvable:$true] %s206
          %212 = dma.hbm_to_vmem [thread:$0]  %s205, 6144, %s207, [#allocation6], 384, 384, 24
        $region16: #{tpu_custom_call.1} parent=11 // pred_fallthru
          _
        // Predicated region
        $region17: #{tpu_custom_call.1} parent=11 // pred_check
          %p213 = pneg %p116
        $region18: #{tpu_custom_call.1} parent=11 // pred_check_branch
          %215 = sbr.rel (%p213) target = $region20
        $region19: #{tpu_custom_call.1} parent=11 // pred_region
          %217 = vsyncadd [#allocation9], 0
          %s218 = sshll.u32 %s3, 4
          %s219 = int_to_ptr.hbm [resolvable:$true] %s218
          %s220 = sshll.u32 [#allocation8], 4
          %s221 = int_to_ptr.vmem [resolvable:$true] %s220
          %226 = dma.hbm_to_vmem [thread:$0]  %s219, 6144, %s221, [#allocation9], 384, 384, 24
        $region20: #{tpu_custom_call.1} parent=11 // pred_fallthru
          _
        // Predicated region
        $region21: #{tpu_custom_call.1} parent=11 // pred_check
          %p227 = pneg %p137
        $region22: #{tpu_custom_call.1} parent=11 // pred_check_branch
          %229 = sbr.rel (%p227) target = $region24
        $region23: #{tpu_custom_call.1} parent=11 // pred_region
          _
        $region24: #{tpu_custom_call.1} parent=11 // pred_fallthru
          _
        // Predicated region
        $region25: #{tpu_custom_call.1} parent=11 // pred_check
          %p230 = pneg %p158
        $region26: #{tpu_custom_call.1} parent=11 // pred_check_branch
          %232 = sbr.rel (%p230) target = $region28
        $region27: #{tpu_custom_call.1} parent=11 // pred_region
          _
        $region28: #{tpu_custom_call.1} parent=11 // pred_fallthru
          _
      $region12: #{tpu_custom_call.1} parent=5 // pred_fallthru
        _
      %p233 = scmp.lt.s32.totalorder %s22, 2
      // Predicated region
      $region29: #{tpu_custom_call.1} parent=5 // pred_check
        %p234 = pneg %p233
      $region30: #{tpu_custom_call.1} parent=5 // pred_check_branch
        %236 = sbr.rel (%p234) target = $region32
      $region31: #{tpu_custom_call.1} parent=5 // pred_region
        // Predicated region
        $region33: #{tpu_custom_call.1} parent=31 // pred_check
          %p237 = pneg %p42
        $region34: #{tpu_custom_call.1} parent=31 // pred_check_branch
          %239 = sbr.rel (%p237) target = $region36
        $region35: #{tpu_custom_call.1} parent=31 // pred_region
          %s240 = sand.u32 %s32, 1
          %s241 = scalar_lea.sflag [#allocation3], %s240
          %s242 = sand.u32 %s32, 1
          %s243 = smul.addr %s242, 128
          %s244 = scalar_lea.vmem [#allocation2], %s243
          %s245 = smul.u32 16, %s22
          %s246 = ssub.s32 18, %s245
          %p247 = scmp.lt.s32.totalorder %s246, 16
          %s248 = scalar_select %p247, %s246, 16
          %s249 = smul.u32 8, %s248
          %s250 = ssub.s32 128, %s249
          %s251 = sshll.u32 %s250, 4
          %252 = vsyncadd %s241, %s251
          %p253 = scmp.ne.s32.totalorder 0, %s249
          %s254 = smul.addr %s245, 8
          %s255 = scalar_lea.hbm %s0, %s254
          %s256 = smul.u32 8, %s248
          %s257 = sshll.u32 %s255, 4
          %s258 = int_to_ptr.hbm [resolvable:$true] %s257
          %s259 = sshll.u32 %s244, 4
          %s260 = int_to_ptr.vmem [resolvable:$true] %s259
          %s261 = sshll.u32 %s256, 4
          %265 = dma.hbm_to_vmem [thread:$0]  (%p253), %s258, %s261, %s260, %s241, 128, 128, 8
        $region36: #{tpu_custom_call.1} parent=31 // pred_fallthru
          _
        // Predicated region
        $region37: #{tpu_custom_call.1} parent=31 // pred_check
          %p266 = pneg %p68
        $region38: #{tpu_custom_call.1} parent=31 // pred_check_branch
          %268 = sbr.rel (%p266) target = $region40
        $region39: #{tpu_custom_call.1} parent=31 // pred_region
          %s269 = sand.u32 %s22, 1
          %s270 = scalar_lea.sflag [#allocation6], %s269
          %s271 = sand.u32 %s58, 1
          %s272 = smul.addr %s271, 128
          %s273 = scalar_lea.vmem [#allocation5], %s272
          %s274 = smul.u32 16, %s22
          %s275 = ssub.s32 18, %s274
          %p276 = scmp.lt.s32.totalorder %s275, 16
          %s277 = scalar_select %p276, %s275, 16
          %s278 = smul.u32 8, %s277
          %s279 = ssub.s32 128, %s278
          %s280 = sshll.u32 %s279, 4
          %281 = vsyncadd %s270, %s280
          %p282 = scmp.ne.s32.totalorder 0, %s278
          %s283 = smul.addr %s274, 8
          %s284 = scalar_lea.hbm %s1, %s283
          %s285 = smul.u32 8, %s277
          %s286 = sshll.u32 %s284, 4
          %s287 = int_to_ptr.hbm [resolvable:$true] %s286
          %s288 = sshll.u32 %s273, 4
          %s289 = int_to_ptr.vmem [resolvable:$true] %s288
          %s290 = sshll.u32 %s285, 4
          %294 = dma.hbm_to_vmem [thread:$0]  (%p282), %s287, %s290, %s289, %s270, 128, 128, 8
        $region40: #{tpu_custom_call.1} parent=31 // pred_fallthru
          _
      $region32: #{tpu_custom_call.1} parent=5 // pred_fallthru
        _
      %p295 = scmp.le.s32.totalorder 1, %s22
      %p296 = scmp.lt.s32.totalorder %s22, 3
      %p297 = pnand %p295, %p296
      %p298 = pneg %p297
      // Predicated region
      $region41: #{tpu_custom_call.1} parent=5 // pred_check
        _
      $region42: #{tpu_custom_call.1} parent=5 // pred_check_branch
        %300 = sbr.rel (%p297) target = $region44
      $region43: #{tpu_custom_call.1} parent=5 // pred_region
        %s301 = ssub.s32 %s22, 1
        %s302 = sand.u32 %s35, 1
        %s303 = scalar_lea.sflag [#allocation3], %s302
        %s304 = sand.u32 %s35, 1
        %s305 = smul.addr %s304, 128
        %s306 = scalar_lea.vmem [#allocation2], %s305
        // Predicated region
        $region45: #{tpu_custom_call.1} parent=43 // pred_check
          %p307 = pneg %p48
        $region46: #{tpu_custom_call.1} parent=43 // pred_check_branch
          %309 = sbr.rel (%p307) target = $region48
        $region47: #{tpu_custom_call.1} parent=43 // pred_region
          %311 = dma.done %s303, 2048
        $region48: #{tpu_custom_call.1} parent=43 // pred_fallthru
          _
        %s312 = sand.u32 %s27, 1
        %s313 = scalar_lea.sflag [#allocation6], %s312
        %s314 = sand.u32 %s61, 1
        %s315 = smul.addr %s314, 128
        %s316 = scalar_lea.vmem [#allocation5], %s315
        // Predicated region
        $region49: #{tpu_custom_call.1} parent=43 // pred_check
          %p317 = pneg %p74
        $region50: #{tpu_custom_call.1} parent=43 // pred_check_branch
          %319 = sbr.rel (%p317) target = $region52
        $region51: #{tpu_custom_call.1} parent=43 // pred_region
          %321 = dma.done %s313, 2048
        $region52: #{tpu_custom_call.1} parent=43 // pred_fallthru
          _
        // Predicated region
        $region53: #{tpu_custom_call.1} parent=43 // pred_check
          %p322 = pneg %p95
        $region54: #{tpu_custom_call.1} parent=43 // pred_check_branch
          %324 = sbr.rel (%p322) target = $region56
        $region55: #{tpu_custom_call.1} parent=43 // pred_region
          %326 = dma.done [#allocation6], 6144
        $region56: #{tpu_custom_call.1} parent=43 // pred_fallthru
          _
        // Predicated region
        $region57: #{tpu_custom_call.1} parent=43 // pred_check
          %p327 = pneg %p116
        $region58: #{tpu_custom_call.1} parent=43 // pred_check_branch
          %329 = sbr.rel (%p327) target = $region60
        $region59: #{tpu_custom_call.1} parent=43 // pred_region
          %331 = dma.done [#allocation9], 6144
        $region60: #{tpu_custom_call.1} parent=43 // pred_fallthru
          _
        %s332 = sand.u32 %s35, 1
        %s333 = scalar_lea.sflag [#allocation3], %s332
        %s334 = sand.u32 %s35, 1
        %s335 = smul.addr %s334, 128
        %s336 = scalar_lea.vmem [#allocation2], %s335
        %p337 = pneg %p48
        %p338 = pneg %p45
        %s339 = sand.u32 %s27, 1
        %s340 = scalar_lea.sflag [#allocation6], %s339
        %s341 = sand.u32 %s61, 1
        %s342 = smul.addr %s341, 128
        %s343 = scalar_lea.vmem [#allocation5], %s342
        %p344 = pneg %p74
        %p345 = pneg %p71
        %p346 = pneg %p95
        %p347 = pneg %p92
        %p348 = pneg %p116
        %p349 = pneg %p113
        %p350 = pneg %p137
        %p351 = pneg %p134
        %p352 = pneg %p158
        %p353 = pneg %p155
        %p354 = pneg %p184
        %p355 = pneg %p181
        %s356 = sand.u32 %s171, 1
        %s357 = scalar_lea.sflag [#allocation4], %s356
        %s358 = sand.u32 %s171, 1
        %s359 = smul.addr %s358, 128
        %s360 = scalar_lea.vmem [#allocation10], %s359
        %s361 = smul.u32 16, %s27
        %s362 = ssub.s32 18, %s361
        %p363 = scmp.lt.s32.totalorder %s362, 16
        %s364 = scalar_select %p363, %s362, 16
        %s365 = smul.u32 8, %s364
        %s366 = smul.u32 16, %s27
        %s367 = ssub.s32 18, %s366
        %p368 = scmp.lt.s32.totalorder %s367, 16
        %s369 = scalar_select %p368, %s367, 16
        %s370 = smul.u32 8, %s369
        %s371 = smul.u32 16, %s27
        %s372 = ssub.s32 18, %s371
        %p373 = scmp.lt.s32.totalorder %s372, 16
        %s374 = scalar_select %p373, %s372, 16
        %s375 = smul.u32 8, %s374
        %v376 = vld [vmem:[%s306] sm:$0xff]
        %v377 = vld [vmem:[%s306 + $0x8] sm:$0xff]
        %v378 = vld [vmem:[%s306 + $0x10] sm:$0xff]
        %v379 = vld [vmem:[%s306 + $0x18] sm:$0xff]
        %v380 = vld [vmem:[%s306 + $0x20] sm:$0xff]
        %v381 = vld [vmem:[%s306 + $0x28] sm:$0xff]
        %v382 = vld [vmem:[%s306 + $0x30] sm:$0xff]
        %v383 = vld [vmem:[%s306 + $0x38] sm:$0xff]
        %v384 = vld [vmem:[%s306 + $0x40] sm:$0xff]
        %v385 = vld [vmem:[%s306 + $0x48] sm:$0xff]
        %v386 = vld [vmem:[%s306 + $0x50] sm:$0xff]
        %v387 = vld [vmem:[%s306 + $0x58] sm:$0xff]
        %v388 = vld [vmem:[%s306 + $0x60] sm:$0xff]
        %v389 = vld [vmem:[%s306 + $0x68] sm:$0xff]
        %v390 = vld [vmem:[%s306 + $0x70] sm:$0xff]
        %v391 = vld [vmem:[%s306 + $0x78] sm:$0xff]
        %v392 = vld [vmem:[%s316] sm:$0xff]
        %v393 = vld [vmem:[%s316 + $0x8] sm:$0xff]
        %v394 = vld [vmem:[%s316 + $0x10] sm:$0xff]
        %v395 = vld [vmem:[%s316 + $0x18] sm:$0xff]
        %v396 = vld [vmem:[%s316 + $0x20] sm:$0xff]
        %v397 = vld [vmem:[%s316 + $0x28] sm:$0xff]
        %v398 = vld [vmem:[%s316 + $0x30] sm:$0xff]
        %v399 = vld [vmem:[%s316 + $0x38] sm:$0xff]
        %v400 = vld [vmem:[%s316 + $0x40] sm:$0xff]
        %v401 = vld [vmem:[%s316 + $0x48] sm:$0xff]
        %v402 = vld [vmem:[%s316 + $0x50] sm:$0xff]
        %v403 = vld [vmem:[%s316 + $0x58] sm:$0xff]
        %v404 = vld [vmem:[%s316 + $0x60] sm:$0xff]
        %v405 = vld [vmem:[%s316 + $0x68] sm:$0xff]
        %v406 = vld [vmem:[%s316 + $0x70] sm:$0xff]
        %v407 = vld [vmem:[%s316 + $0x78] sm:$0xff]
        %v408 = vld [vmem:[#allocation7] sm:$0xff]
        %v409 = vld [vmem:[#allocation7 + $0x8] sm:$0xff]
        %v410 = vld [vmem:[#allocation7 + $0x10] sm:$0xff]
        %v411 = vld [vmem:[#allocation7 + $0x18] sm:$0xff]
        %v412 = vld [vmem:[#allocation7 + $0x20] sm:$0xff]
        %v413 = vld [vmem:[#allocation7 + $0x28] sm:$0xff]
        %v414 = vld [vmem:[#allocation7 + $0x30] sm:$0xff]
        %v415 = vld [vmem:[#allocation7 + $0x38] sm:$0xff]
        %v416 = vld [vmem:[#allocation7 + $0x40] sm:$0xff]
        %v417 = vld [vmem:[#allocation7 + $0x48] sm:$0xff]
        %v418 = vld [vmem:[#allocation7 + $0x50] sm:$0xff]
        %v419 = vld [vmem:[#allocation7 + $0x58] sm:$0xff]
        %v420 = vld [vmem:[#allocation7 + $0x60] sm:$0xff]
        %v421 = vld [vmem:[#allocation7 + $0x68] sm:$0xff]
        %v422 = vld [vmem:[#allocation7 + $0x70] sm:$0xff]
        %v423 = vld [vmem:[#allocation7 + $0x78] sm:$0xff]
        %v424 = vld [vmem:[#allocation7 + $0x80] sm:$0xff]
        %v425 = vld [vmem:[#allocation7 + $0x88] sm:$0xff]
        %v426 = vld [vmem:[#allocation7 + $0x90] sm:$0xff]
        %v427 = vld [vmem:[#allocation7 + $0x98] sm:$0xff]
        %v428 = vld [vmem:[#allocation7 + $0xa0] sm:$0xff]
        %v429 = vld [vmem:[#allocation7 + $0xa8] sm:$0xff]
        %v430 = vld [vmem:[#allocation7 + $0xb0] sm:$0xff]
        %v431 = vld [vmem:[#allocation7 + $0xb8] sm:$0xff]
        %v432 = vld [vmem:[#allocation7 + $0xc0] sm:$0xff]
        %v433 = vld [vmem:[#allocation7 + $0xc8] sm:$0xff]
        %v434 = vld [vmem:[#allocation7 + $0xd0] sm:$0xff]
        %v435 = vld [vmem:[#allocation7 + $0xd8] sm:$0xff]
        %v436 = vld [vmem:[#allocation7 + $0xe0] sm:$0xff]
        %v437 = vld [vmem:[#allocation7 + $0xe8] sm:$0xff]
        %v438 = vld [vmem:[#allocation7 + $0xf0] sm:$0xff]
        %v439 = vld [vmem:[#allocation7 + $0xf8] sm:$0xff]
        %v440 = vld [vmem:[#allocation7 + $0x100] sm:$0xff]
        %v441 = vld [vmem:[#allocation7 + $0x108] sm:$0xff]
        %v442 = vld [vmem:[#allocation7 + $0x110] sm:$0xff]
        %v443 = vld [vmem:[#allocation7 + $0x118] sm:$0xff]
        %v444 = vld [vmem:[#allocation7 + $0x120] sm:$0xff]
        %v445 = vld [vmem:[#allocation7 + $0x128] sm:$0xff]
        %v446 = vld [vmem:[#allocation7 + $0x130] sm:$0xff]
        %v447 = vld [vmem:[#allocation7 + $0x138] sm:$0xff]
        %v448 = vld [vmem:[#allocation7 + $0x140] sm:$0xff]
        %v449 = vld [vmem:[#allocation7 + $0x148] sm:$0xff]
        %v450 = vld [vmem:[#allocation7 + $0x150] sm:$0xff]
        %v451 = vld [vmem:[#allocation7 + $0x158] sm:$0xff]
        %v452 = vld [vmem:[#allocation7 + $0x160] sm:$0xff]
        %v453 = vld [vmem:[#allocation7 + $0x168] sm:$0xff]
        %v454 = vld [vmem:[#allocation7 + $0x170] sm:$0xff]
        %v455 = vld [vmem:[#allocation7 + $0x178] sm:$0xff]
        %v456 = vld [vmem:[%s4] sm:$0x7]
        %v458 = vperm.slane %v456, 0
        %v459 = vperm.slane %v456, 1
        %v460 = vperm.slane %v456, 2
        %464 = vmatpush.msra.mxu0 %v453
        %465 = vmatpush.msra.mxu0 %v450
        %466 = vmatpush.msra.mxu0 %v447
        %467 = vmatpush.msra.mxu0 %v444
        %468 = vmatpush.msra.mxu0 %v441
        %469 = vmatpush.msra.mxu0 %v438
        %470 = vmatpush.msra.mxu0 %v435
        %471 = vmatpush.msra.mxu0 %v432
        %472 = vmatpush.msra.mxu0 %v429
        %473 = vmatpush.msra.mxu0 %v426
        %474 = vmatpush.msra.mxu0 %v423
        %475 = vmatpush.msra.mxu0 %v420
        %476 = vmatpush.msra.mxu0 %v417
        %477 = vmatpush.msra.mxu0 %v414
        %478 = vmatpush.msra.mxu0 %v411
        %479 = vmatpush.msra.mxu0 %v408
        %480 = vmatmul.f32.gmra.mxu0 %v392
        %v481 = vpop.f32.mrf.mxu0
        %v482 = vadd.f32 %v458, %v481
        %483 = vmatmul.f32.gmra.mxu0 %v393
        %v484 = vpop.f32.mrf.mxu0
        %v485 = vadd.f32 %v458, %v484
        %486 = vmatmul.f32.gmra.mxu0 %v394
        %v487 = vpop.f32.mrf.mxu0
        %v488 = vadd.f32 %v458, %v487
        %489 = vmatmul.f32.gmra.mxu0 %v395
        %v490 = vpop.f32.mrf.mxu0
        %v491 = vadd.f32 %v458, %v490
        %492 = vmatmul.f32.gmra.mxu0 %v396
        %v493 = vpop.f32.mrf.mxu0
        %v494 = vadd.f32 %v458, %v493
        %495 = vmatmul.f32.gmra.mxu0 %v397
        %v496 = vpop.f32.mrf.mxu0
        %v497 = vadd.f32 %v458, %v496
        %498 = vmatmul.f32.gmra.mxu0 %v398
        %v499 = vpop.f32.mrf.mxu0
        %v500 = vadd.f32 %v458, %v499
        %501 = vmatmul.f32.gmra.mxu0 %v399
        %v502 = vpop.f32.mrf.mxu0
        %v503 = vadd.f32 %v458, %v502
        %504 = vmatmul.f32.gmra.mxu0 %v400
        %v505 = vpop.f32.mrf.mxu0
        %v506 = vadd.f32 %v458, %v505
        %507 = vmatmul.f32.gmra.mxu0 %v401
        %v508 = vpop.f32.mrf.mxu0
        %v509 = vadd.f32 %v458, %v508
        %510 = vmatmul.f32.gmra.mxu0 %v402
        %v511 = vpop.f32.mrf.mxu0
        %v512 = vadd.f32 %v458, %v511
        %513 = vmatmul.f32.gmra.mxu0 %v403
        %v514 = vpop.f32.mrf.mxu0
        %v515 = vadd.f32 %v458, %v514
        %516 = vmatmul.f32.gmra.mxu0 %v404
        %v517 = vpop.f32.mrf.mxu0
        %v518 = vadd.f32 %v458, %v517
        %519 = vmatmul.f32.gmra.mxu0 %v405
        %v520 = vpop.f32.mrf.mxu0
        %v521 = vadd.f32 %v458, %v520
        %522 = vmatmul.f32.gmra.mxu0 %v406
        %v523 = vpop.f32.mrf.mxu0
        %v524 = vadd.f32 %v458, %v523
        %525 = vmatmul.f32.gmra.mxu0 %v407
        %v526 = vpop.f32.mrf.mxu0
        %v527 = vadd.f32 %v458, %v526
        %528 = vdwg.mxu0
        %529 = vmatpush.msra.mxu0 %v454
        %530 = vmatpush.msra.mxu0 %v451
        %531 = vmatpush.msra.mxu0 %v448
        %532 = vmatpush.msra.mxu0 %v445
        %533 = vmatpush.msra.mxu0 %v442
        %534 = vmatpush.msra.mxu0 %v439
        %535 = vmatpush.msra.mxu0 %v436
        %536 = vmatpush.msra.mxu0 %v433
        %537 = vmatpush.msra.mxu0 %v430
        %538 = vmatpush.msra.mxu0 %v427
        %539 = vmatpush.msra.mxu0 %v424
        %540 = vmatpush.msra.mxu0 %v421
        %541 = vmatpush.msra.mxu0 %v418
        %542 = vmatpush.msra.mxu0 %v415
        %543 = vmatpush.msra.mxu0 %v412
        %544 = vmatpush.msra.mxu0 %v409
        %545 = vmatmul.f32.gmra.mxu0 %v392
        %v546 = vpop.f32.mrf.mxu0
        %v547 = vadd.f32 %v459, %v546
        %548 = vmatmul.f32.gmra.mxu0 %v393
        %v549 = vpop.f32.mrf.mxu0
        %v550 = vadd.f32 %v459, %v549
        %551 = vmatmul.f32.gmra.mxu0 %v394
        %v552 = vpop.f32.mrf.mxu0
        %v553 = vadd.f32 %v459, %v552
        %554 = vmatmul.f32.gmra.mxu0 %v395
        %v555 = vpop.f32.mrf.mxu0
        %v556 = vadd.f32 %v459, %v555
        %557 = vmatmul.f32.gmra.mxu0 %v396
        %v558 = vpop.f32.mrf.mxu0
        %v559 = vadd.f32 %v459, %v558
        %560 = vmatmul.f32.gmra.mxu0 %v397
        %v561 = vpop.f32.mrf.mxu0
        %v562 = vadd.f32 %v459, %v561
        %563 = vmatmul.f32.gmra.mxu0 %v398
        %v564 = vpop.f32.mrf.mxu0
        %v565 = vadd.f32 %v459, %v564
        %566 = vmatmul.f32.gmra.mxu0 %v399
        %v567 = vpop.f32.mrf.mxu0
        %v568 = vadd.f32 %v459, %v567
        %569 = vmatmul.f32.gmra.mxu0 %v400
        %v570 = vpop.f32.mrf.mxu0
        %v571 = vadd.f32 %v459, %v570
        %572 = vmatmul.f32.gmra.mxu0 %v401
        %v573 = vpop.f32.mrf.mxu0
        %v574 = vadd.f32 %v459, %v573
        %575 = vmatmul.f32.gmra.mxu0 %v402
        %v576 = vpop.f32.mrf.mxu0
        %v577 = vadd.f32 %v459, %v576
        %578 = vmatmul.f32.gmra.mxu0 %v403
        %v579 = vpop.f32.mrf.mxu0
        %v580 = vadd.f32 %v459, %v579
        %581 = vmatmul.f32.gmra.mxu0 %v404
        %v582 = vpop.f32.mrf.mxu0
        %v583 = vadd.f32 %v459, %v582
        %584 = vmatmul.f32.gmra.mxu0 %v405
        %v585 = vpop.f32.mrf.mxu0
        %v586 = vadd.f32 %v459, %v585
        %587 = vmatmul.f32.gmra.mxu0 %v406
        %v588 = vpop.f32.mrf.mxu0
        %v589 = vadd.f32 %v459, %v588
        %590 = vmatmul.f32.gmra.mxu0 %v407
        %v591 = vpop.f32.mrf.mxu0
        %v592 = vadd.f32 %v459, %v591
        %593 = vdwg.mxu0
        %594 = vmatpush.msra.mxu0 %v455
        %595 = vmatpush.msra.mxu0 %v452
        %596 = vmatpush.msra.mxu0 %v449
        %597 = vmatpush.msra.mxu0 %v446
        %598 = vmatpush.msra.mxu0 %v443
        %599 = vmatpush.msra.mxu0 %v440
        %600 = vmatpush.msra.mxu0 %v437
        %601 = vmatpush.msra.mxu0 %v434
        %602 = vmatpush.msra.mxu0 %v431
        %603 = vmatpush.msra.mxu0 %v428
        %604 = vmatpush.msra.mxu0 %v425
        %605 = vmatpush.msra.mxu0 %v422
        %606 = vmatpush.msra.mxu0 %v419
        %607 = vmatpush.msra.mxu0 %v416
        %608 = vmatpush.msra.mxu0 %v413
        %609 = vmatpush.msra.mxu0 %v410
        %610 = vmatmul.f32.gmra.mxu0 %v392
        %v611 = vpop.f32.mrf.mxu0
        %v612 = vadd.f32 %v460, %v611
        %613 = vmatmul.f32.gmra.mxu0 %v393
        %v614 = vpop.f32.mrf.mxu0
        %v615 = vadd.f32 %v460, %v614
        %616 = vmatmul.f32.gmra.mxu0 %v394
        %v617 = vpop.f32.mrf.mxu0
        %v618 = vadd.f32 %v460, %v617
        %619 = vmatmul.f32.gmra.mxu0 %v395
        %v620 = vpop.f32.mrf.mxu0
        %v621 = vadd.f32 %v460, %v620
        %622 = vmatmul.f32.gmra.mxu0 %v396
        %v623 = vpop.f32.mrf.mxu0
        %v624 = vadd.f32 %v460, %v623
        %625 = vmatmul.f32.gmra.mxu0 %v397
        %v626 = vpop.f32.mrf.mxu0
        %v627 = vadd.f32 %v460, %v626
        %628 = vmatmul.f32.gmra.mxu0 %v398
        %v629 = vpop.f32.mrf.mxu0
        %v630 = vadd.f32 %v460, %v629
        %631 = vmatmul.f32.gmra.mxu0 %v399
        %v632 = vpop.f32.mrf.mxu0
        %v633 = vadd.f32 %v460, %v632
        %634 = vmatmul.f32.gmra.mxu0 %v400
        %v635 = vpop.f32.mrf.mxu0
        %v636 = vadd.f32 %v460, %v635
        %637 = vmatmul.f32.gmra.mxu0 %v401
        %v638 = vpop.f32.mrf.mxu0
        %v639 = vadd.f32 %v460, %v638
        %640 = vmatmul.f32.gmra.mxu0 %v402
        %v641 = vpop.f32.mrf.mxu0
        %v642 = vadd.f32 %v460, %v641
        %643 = vmatmul.f32.gmra.mxu0 %v403
        %v644 = vpop.f32.mrf.mxu0
        %v645 = vadd.f32 %v460, %v644
        %646 = vmatmul.f32.gmra.mxu0 %v404
        %v647 = vpop.f32.mrf.mxu0
        %v648 = vadd.f32 %v460, %v647
        %649 = vmatmul.f32.gmra.mxu0 %v405
        %v650 = vpop.f32.mrf.mxu0
        %v651 = vadd.f32 %v460, %v650
        %652 = vmatmul.f32.gmra.mxu0 %v406
        %v653 = vpop.f32.mrf.mxu0
        %v654 = vadd.f32 %v460, %v653
        %655 = vmatmul.f32.gmra.mxu0 %v407
        %v656 = vpop.f32.mrf.mxu0
        %v657 = vadd.f32 %v460, %v656
        %658 = vdwg.mxu0
        %v659 = vld [vmem:[#allocation8] sm:$0xff]
        %v660 = vld [vmem:[#allocation8 + $0x8] sm:$0xff]
        %v661 = vld [vmem:[#allocation8 + $0x10] sm:$0xff]
        %v662 = vld [vmem:[#allocation8 + $0x18] sm:$0xff]
        %v663 = vld [vmem:[#allocation8 + $0x20] sm:$0xff]
        %v664 = vld [vmem:[#allocation8 + $0x28] sm:$0xff]
        %v665 = vld [vmem:[#allocation8 + $0x30] sm:$0xff]
        %v666 = vld [vmem:[#allocation8 + $0x38] sm:$0xff]
        %v667 = vld [vmem:[#allocation8 + $0x40] sm:$0xff]
        %v668 = vld [vmem:[#allocation8 + $0x48] sm:$0xff]
        %v669 = vld [vmem:[#allocation8 + $0x50] sm:$0xff]
        %v670 = vld [vmem:[#allocation8 + $0x58] sm:$0xff]
        %v671 = vld [vmem:[#allocation8 + $0x60] sm:$0xff]
        %v672 = vld [vmem:[#allocation8 + $0x68] sm:$0xff]
        %v673 = vld [vmem:[#allocation8 + $0x70] sm:$0xff]
        %v674 = vld [vmem:[#allocation8 + $0x78] sm:$0xff]
        %v675 = vld [vmem:[#allocation8 + $0x80] sm:$0xff]
        %v676 = vld [vmem:[#allocation8 + $0x88] sm:$0xff]
        %v677 = vld [vmem:[#allocation8 + $0x90] sm:$0xff]
        %v678 = vld [vmem:[#allocation8 + $0x98] sm:$0xff]
        %v679 = vld [vmem:[#allocation8 + $0xa0] sm:$0xff]
        %v680 = vld [vmem:[#allocation8 + $0xa8] sm:$0xff]
        %v681 = vld [vmem:[#allocation8 + $0xb0] sm:$0xff]
        %v682 = vld [vmem:[#allocation8 + $0xb8] sm:$0xff]
        %v683 = vld [vmem:[#allocation8 + $0xc0] sm:$0xff]
        %v684 = vld [vmem:[#allocation8 + $0xc8] sm:$0xff]
        %v685 = vld [vmem:[#allocation8 + $0xd0] sm:$0xff]
        %v686 = vld [vmem:[#allocation8 + $0xd8] sm:$0xff]
        %v687 = vld [vmem:[#allocation8 + $0xe0] sm:$0xff]
        %v688 = vld [vmem:[#allocation8 + $0xe8] sm:$0xff]
        %v689 = vld [vmem:[#allocation8 + $0xf0] sm:$0xff]
        %v690 = vld [vmem:[#allocation8 + $0xf8] sm:$0xff]
        %v691 = vld [vmem:[#allocation8 + $0x100] sm:$0xff]
        %v692 = vld [vmem:[#allocation8 + $0x108] sm:$0xff]
        %v693 = vld [vmem:[#allocation8 + $0x110] sm:$0xff]
        %v694 = vld [vmem:[#allocation8 + $0x118] sm:$0xff]
        %v695 = vld [vmem:[#allocation8 + $0x120] sm:$0xff]
        %v696 = vld [vmem:[#allocation8 + $0x128] sm:$0xff]
        %v697 = vld [vmem:[#allocation8 + $0x130] sm:$0xff]
        %v698 = vld [vmem:[#allocation8 + $0x138] sm:$0xff]
        %v699 = vld [vmem:[#allocation8 + $0x140] sm:$0xff]
        %v700 = vld [vmem:[#allocation8 + $0x148] sm:$0xff]
        %v701 = vld [vmem:[#allocation8 + $0x150] sm:$0xff]
        %v702 = vld [vmem:[#allocation8 + $0x158] sm:$0xff]
        %v703 = vld [vmem:[#allocation8 + $0x160] sm:$0xff]
        %v704 = vld [vmem:[#allocation8 + $0x168] sm:$0xff]
        %v705 = vld [vmem:[#allocation8 + $0x170] sm:$0xff]
        %v706 = vld [vmem:[#allocation8 + $0x178] sm:$0xff]
        %707 = vmatpush.msra.mxu0 %v704
        %708 = vmatpush.msra.mxu0 %v701
        %709 = vmatpush.msra.mxu0 %v698
        %710 = vmatpush.msra.mxu0 %v695
        %711 = vmatpush.msra.mxu0 %v692
        %712 = vmatpush.msra.mxu0 %v689
        %713 = vmatpush.msra.mxu0 %v686
        %714 = vmatpush.msra.mxu0 %v683
        %715 = vmatpush.msra.mxu0 %v680
        %716 = vmatpush.msra.mxu0 %v677
        %717 = vmatpush.msra.mxu0 %v674
        %718 = vmatpush.msra.mxu0 %v671
        %719 = vmatpush.msra.mxu0 %v668
        %720 = vmatpush.msra.mxu0 %v665
        %721 = vmatpush.msra.mxu0 %v662
        %722 = vmatpush.msra.mxu0 %v659
        %723 = vmatmul.f32.gmra.mxu0 %v376
        %v724 = vpop.f32.mrf.mxu0
        %v725 = vadd.f32 0.0, %v724
        %726 = vmatmul.f32.gmra.mxu0 %v377
        %v727 = vpop.f32.mrf.mxu0
        %v728 = vadd.f32 0.0, %v727
        %729 = vmatmul.f32.gmra.mxu0 %v378
        %v730 = vpop.f32.mrf.mxu0
        %v731 = vadd.f32 0.0, %v730
        %732 = vmatmul.f32.gmra.mxu0 %v379
        %v733 = vpop.f32.mrf.mxu0
        %v734 = vadd.f32 0.0, %v733
        %735 = vmatmul.f32.gmra.mxu0 %v380
        %v736 = vpop.f32.mrf.mxu0
        %v737 = vadd.f32 0.0, %v736
        %738 = vmatmul.f32.gmra.mxu0 %v381
        %v739 = vpop.f32.mrf.mxu0
        %v740 = vadd.f32 0.0, %v739
        %741 = vmatmul.f32.gmra.mxu0 %v382
        %v742 = vpop.f32.mrf.mxu0
        %v743 = vadd.f32 0.0, %v742
        %744 = vmatmul.f32.gmra.mxu0 %v383
        %v745 = vpop.f32.mrf.mxu0
        %v746 = vadd.f32 0.0, %v745
        %747 = vmatmul.f32.gmra.mxu0 %v384
        %v748 = vpop.f32.mrf.mxu0
        %v749 = vadd.f32 0.0, %v748
        %750 = vmatmul.f32.gmra.mxu0 %v385
        %v751 = vpop.f32.mrf.mxu0
        %v752 = vadd.f32 0.0, %v751
        %753 = vmatmul.f32.gmra.mxu0 %v386
        %v754 = vpop.f32.mrf.mxu0
        %v755 = vadd.f32 0.0, %v754
        %756 = vmatmul.f32.gmra.mxu0 %v387
        %v757 = vpop.f32.mrf.mxu0
        %v758 = vadd.f32 0.0, %v757
        %759 = vmatmul.f32.gmra.mxu0 %v388
        %v760 = vpop.f32.mrf.mxu0
        %v761 = vadd.f32 0.0, %v760
        %762 = vmatmul.f32.gmra.mxu0 %v389
        %v763 = vpop.f32.mrf.mxu0
        %v764 = vadd.f32 0.0, %v763
        %765 = vmatmul.f32.gmra.mxu0 %v390
        %v766 = vpop.f32.mrf.mxu0
        %v767 = vadd.f32 0.0, %v766
        %768 = vmatmul.f32.gmra.mxu0 %v391
        %v769 = vpop.f32.mrf.mxu0
        %v770 = vadd.f32 0.0, %v769
        %771 = vdwg.mxu0
        %772 = vmatpush.msra.mxu0 %v705
        %773 = vmatpush.msra.mxu0 %v702
        %774 = vmatpush.msra.mxu0 %v699
        %775 = vmatpush.msra.mxu0 %v696
        %776 = vmatpush.msra.mxu0 %v693
        %777 = vmatpush.msra.mxu0 %v690
        %778 = vmatpush.msra.mxu0 %v687
        %779 = vmatpush.msra.mxu0 %v684
        %780 = vmatpush.msra.mxu0 %v681
        %781 = vmatpush.msra.mxu0 %v678
        %782 = vmatpush.msra.mxu0 %v675
        %783 = vmatpush.msra.mxu0 %v672
        %784 = vmatpush.msra.mxu0 %v669
        %785 = vmatpush.msra.mxu0 %v666
        %786 = vmatpush.msra.mxu0 %v663
        %787 = vmatpush.msra.mxu0 %v660
        %788 = vmatmul.f32.gmra.mxu0 %v376
        %v789 = vpop.f32.mrf.mxu0
        %v790 = vadd.f32 0.0, %v789
        %791 = vmatmul.f32.gmra.mxu0 %v377
        %v792 = vpop.f32.mrf.mxu0
        %v793 = vadd.f32 0.0, %v792
        %794 = vmatmul.f32.gmra.mxu0 %v378
        %v795 = vpop.f32.mrf.mxu0
        %v796 = vadd.f32 0.0, %v795
        %797 = vmatmul.f32.gmra.mxu0 %v379
        %v798 = vpop.f32.mrf.mxu0
        %v799 = vadd.f32 0.0, %v798
        %800 = vmatmul.f32.gmra.mxu0 %v380
        %v801 = vpop.f32.mrf.mxu0
        %v802 = vadd.f32 0.0, %v801
        %803 = vmatmul.f32.gmra.mxu0 %v381
        %v804 = vpop.f32.mrf.mxu0
        %v805 = vadd.f32 0.0, %v804
        %806 = vmatmul.f32.gmra.mxu0 %v382
        %v807 = vpop.f32.mrf.mxu0
        %v808 = vadd.f32 0.0, %v807
        %809 = vmatmul.f32.gmra.mxu0 %v383
        %v810 = vpop.f32.mrf.mxu0
        %v811 = vadd.f32 0.0, %v810
        %812 = vmatmul.f32.gmra.mxu0 %v384
        %v813 = vpop.f32.mrf.mxu0
        %v814 = vadd.f32 0.0, %v813
        %815 = vmatmul.f32.gmra.mxu0 %v385
        %v816 = vpop.f32.mrf.mxu0
        %v817 = vadd.f32 0.0, %v816
        %818 = vmatmul.f32.gmra.mxu0 %v386
        %v819 = vpop.f32.mrf.mxu0
        %v820 = vadd.f32 0.0, %v819
        %821 = vmatmul.f32.gmra.mxu0 %v387
        %v822 = vpop.f32.mrf.mxu0
        %v823 = vadd.f32 0.0, %v822
        %824 = vmatmul.f32.gmra.mxu0 %v388
        %v825 = vpop.f32.mrf.mxu0
        %v826 = vadd.f32 0.0, %v825
        %827 = vmatmul.f32.gmra.mxu0 %v389
        %v828 = vpop.f32.mrf.mxu0
        %v829 = vadd.f32 0.0, %v828
        %830 = vmatmul.f32.gmra.mxu0 %v390
        %v831 = vpop.f32.mrf.mxu0
        %v832 = vadd.f32 0.0, %v831
        %833 = vmatmul.f32.gmra.mxu0 %v391
        %v834 = vpop.f32.mrf.mxu0
        %v835 = vadd.f32 0.0, %v834
        %836 = vdwg.mxu0
        %837 = vmatpush.msra.mxu0 %v706
        %838 = vmatpush.msra.mxu0 %v703
        %839 = vmatpush.msra.mxu0 %v700
        %840 = vmatpush.msra.mxu0 %v697
        %841 = vmatpush.msra.mxu0 %v694
        %842 = vmatpush.msra.mxu0 %v691
        %843 = vmatpush.msra.mxu0 %v688
        %844 = vmatpush.msra.mxu0 %v685
        %845 = vmatpush.msra.mxu0 %v682
        %846 = vmatpush.msra.mxu0 %v679
        %847 = vmatpush.msra.mxu0 %v676
        %848 = vmatpush.msra.mxu0 %v673
        %849 = vmatpush.msra.mxu0 %v670
        %850 = vmatpush.msra.mxu0 %v667
        %851 = vmatpush.msra.mxu0 %v664
        %852 = vmatpush.msra.mxu0 %v661
        %853 = vmatmul.f32.gmra.mxu0 %v376
        %v854 = vpop.f32.mrf.mxu0
        %v855 = vadd.f32 0.0, %v854
        %856 = vmatmul.f32.gmra.mxu0 %v377
        %v857 = vpop.f32.mrf.mxu0
        %v858 = vadd.f32 0.0, %v857
        %859 = vmatmul.f32.gmra.mxu0 %v378
        %v860 = vpop.f32.mrf.mxu0
        %v861 = vadd.f32 0.0, %v860
        %862 = vmatmul.f32.gmra.mxu0 %v379
        %v863 = vpop.f32.mrf.mxu0
        %v864 = vadd.f32 0.0, %v863
        %865 = vmatmul.f32.gmra.mxu0 %v380
        %v866 = vpop.f32.mrf.mxu0
        %v867 = vadd.f32 0.0, %v866
        %868 = vmatmul.f32.gmra.mxu0 %v381
        %v869 = vpop.f32.mrf.mxu0
        %v870 = vadd.f32 0.0, %v869
        %871 = vmatmul.f32.gmra.mxu0 %v382
        %v872 = vpop.f32.mrf.mxu0
        %v873 = vadd.f32 0.0, %v872
        %874 = vmatmul.f32.gmra.mxu0 %v383
        %v875 = vpop.f32.mrf.mxu0
        %v876 = vadd.f32 0.0, %v875
        %877 = vmatmul.f32.gmra.mxu0 %v384
        %v878 = vpop.f32.mrf.mxu0
        %v879 = vadd.f32 0.0, %v878
        %880 = vmatmul.f32.gmra.mxu0 %v385
        %v881 = vpop.f32.mrf.mxu0
        %v882 = vadd.f32 0.0, %v881
        %883 = vmatmul.f32.gmra.mxu0 %v386
        %v884 = vpop.f32.mrf.mxu0
        %v885 = vadd.f32 0.0, %v884
        %886 = vmatmul.f32.gmra.mxu0 %v387
        %v887 = vpop.f32.mrf.mxu0
        %v888 = vadd.f32 0.0, %v887
        %889 = vmatmul.f32.gmra.mxu0 %v388
        %v890 = vpop.f32.mrf.mxu0
        %v891 = vadd.f32 0.0, %v890
        %892 = vmatmul.f32.gmra.mxu0 %v389
        %v893 = vpop.f32.mrf.mxu0
        %v894 = vadd.f32 0.0, %v893
        %895 = vmatmul.f32.gmra.mxu0 %v390
        %v896 = vpop.f32.mrf.mxu0
        %v897 = vadd.f32 0.0, %v896
        %898 = vmatmul.f32.gmra.mxu0 %v391
        %v899 = vpop.f32.mrf.mxu0
        %v900 = vadd.f32 0.0, %v899
        %901 = vdwg.mxu0
        %v902 = vadd.f32 %v482, %v725
        %v903 = vadd.f32 %v485, %v728
        %v904 = vadd.f32 %v488, %v731
        %v905 = vadd.f32 %v491, %v734
        %v906 = vadd.f32 %v494, %v737
        %v907 = vadd.f32 %v497, %v740
        %v908 = vadd.f32 %v500, %v743
        %v909 = vadd.f32 %v503, %v746
        %v910 = vadd.f32 %v506, %v749
        %v911 = vadd.f32 %v509, %v752
        %v912 = vadd.f32 %v512, %v755
        %v913 = vadd.f32 %v515, %v758
        %v914 = vadd.f32 %v518, %v761
        %v915 = vadd.f32 %v521, %v764
        %v916 = vadd.f32 %v524, %v767
        %v917 = vadd.f32 %v527, %v770
        %v918 = vxor.u32 %v902, 2147483648
        %v919 = vxor.u32 %v903, 2147483648
        %v920 = vxor.u32 %v904, 2147483648
        %v921 = vxor.u32 %v905, 2147483648
        %v922 = vxor.u32 %v906, 2147483648
        %v923 = vxor.u32 %v907, 2147483648
        %v924 = vxor.u32 %v908, 2147483648
        %v925 = vxor.u32 %v909, 2147483648
        %v926 = vxor.u32 %v910, 2147483648
        %v927 = vxor.u32 %v911, 2147483648
        %v928 = vxor.u32 %v912, 2147483648
        %v929 = vxor.u32 %v913, 2147483648
        %v930 = vxor.u32 %v914, 2147483648
        %v931 = vxor.u32 %v915, 2147483648
        %v932 = vxor.u32 %v916, 2147483648
        %v933 = vxor.u32 %v917, 2147483648
        %v934 = vmul.f32 %v918, 1.442695
        %v935 = vpow.pop %v934
        %v936 = vmul.f32 %v919, 1.442695
        %v937 = vpow.pop %v936
        %v938 = vmul.f32 %v920, 1.442695
        %v939 = vpow.pop %v938
        %v940 = vmul.f32 %v921, 1.442695
        %v941 = vpow.pop %v940
        %v942 = vmul.f32 %v922, 1.442695
        %v943 = vpow.pop %v942
        %v944 = vmul.f32 %v923, 1.442695
        %v945 = vpow.pop %v944
        %v946 = vmul.f32 %v924, 1.442695
        %v947 = vpow.pop %v946
        %v948 = vmul.f32 %v925, 1.442695
        %v949 = vpow.pop %v948
        %v950 = vmul.f32 %v926, 1.442695
        %v951 = vpow.pop %v950
        %v952 = vmul.f32 %v927, 1.442695
        %v953 = vpow.pop %v952
        %v954 = vmul.f32 %v928, 1.442695
        %v955 = vpow.pop %v954
        %v956 = vmul.f32 %v929, 1.442695
        %v957 = vpow.pop %v956
        %v958 = vmul.f32 %v930, 1.442695
        %v959 = vpow.pop %v958
        %v960 = vmul.f32 %v931, 1.442695
        %v961 = vpow.pop %v960
        %v962 = vmul.f32 %v932, 1.442695
        %v963 = vpow.pop %v962
        %v964 = vmul.f32 %v933, 1.442695
        %v965 = vpow.pop %v964
        %v966 = vadd.f32 %v935, 1.0
        %v967 = vadd.f32 %v937, 1.0
        %v968 = vadd.f32 %v939, 1.0
        %v969 = vadd.f32 %v941, 1.0
        %v970 = vadd.f32 %v943, 1.0
        %v971 = vadd.f32 %v945, 1.0
        %v972 = vadd.f32 %v947, 1.0
        %v973 = vadd.f32 %v949, 1.0
        %v974 = vadd.f32 %v951, 1.0
        %v975 = vadd.f32 %v953, 1.0
        %v976 = vadd.f32 %v955, 1.0
        %v977 = vadd.f32 %v957, 1.0
        %v978 = vadd.f32 %v959, 1.0
        %v979 = vadd.f32 %v961, 1.0
        %v980 = vadd.f32 %v963, 1.0
        %v981 = vadd.f32 %v965, 1.0
        %v982 = vrcp.pop %v966
        %v983 = vmul.f32 %v966, %v982
        %v984 = vsub.f32 1.0, %v983
        %v985 = vmul.f32 %v982, %v984
        %v986 = vadd.f32 %v982, %v985
        %vm987 = vweird.f32 %v966
        %vm988 = vweird.f32 %v982
        %vm989 = vmor %vm987, %vm988
        %v990 = vsel %vm989, %v982, %v986
        %v991 = vand.u32 2147483647, %v966
        %vm992 = vcmp.eq.f32.partialorder %v991, 8.507059e+37
        %v993 = vand.u32 %v966, 2147483648
        %v994 = vor.u32 1.1754944e-38, %v993
        %v995 = vsel %vm992, %v994, %v990
        %v996 = vmul.f32 1.0, %v995
        %v997 = vrcp.pop %v967
        %v998 = vmul.f32 %v967, %v997
        %v999 = vsub.f32 1.0, %v998
        %v1000 = vmul.f32 %v997, %v999
        %v1001 = vadd.f32 %v997, %v1000
        %vm1002 = vweird.f32 %v967
        %vm1003 = vweird.f32 %v997
        %vm1004 = vmor %vm1002, %vm1003
        %v1005 = vsel %vm1004, %v997, %v1001
        %v1006 = vand.u32 2147483647, %v967
        %vm1007 = vcmp.eq.f32.partialorder %v1006, 8.507059e+37
        %v1008 = vand.u32 %v967, 2147483648
        %v1009 = vor.u32 1.1754944e-38, %v1008
        %v1010 = vsel %vm1007, %v1009, %v1005
        %v1011 = vmul.f32 1.0, %v1010
        %v1012 = vrcp.pop %v968
        %v1013 = vmul.f32 %v968, %v1012
        %v1014 = vsub.f32 1.0, %v1013
        %v1015 = vmul.f32 %v1012, %v1014
        %v1016 = vadd.f32 %v1012, %v1015
        %vm1017 = vweird.f32 %v968
        %vm1018 = vweird.f32 %v1012
        %vm1019 = vmor %vm1017, %vm1018
        %v1020 = vsel %vm1019, %v1012, %v1016
        %v1021 = vand.u32 2147483647, %v968
        %vm1022 = vcmp.eq.f32.partialorder %v1021, 8.507059e+37
        %v1023 = vand.u32 %v968, 2147483648
        %v1024 = vor.u32 1.1754944e-38, %v1023
        %v1025 = vsel %vm1022, %v1024, %v1020
        %v1026 = vmul.f32 1.0, %v1025
        %v1027 = vrcp.pop %v969
        %v1028 = vmul.f32 %v969, %v1027
        %v1029 = vsub.f32 1.0, %v1028
        %v1030 = vmul.f32 %v1027, %v1029
        %v1031 = vadd.f32 %v1027, %v1030
        %vm1032 = vweird.f32 %v969
        %vm1033 = vweird.f32 %v1027
        %vm1034 = vmor %vm1032, %vm1033
        %v1035 = vsel %vm1034, %v1027, %v1031
        %v1036 = vand.u32 2147483647, %v969
        %vm1037 = vcmp.eq.f32.partialorder %v1036, 8.507059e+37
        %v1038 = vand.u32 %v969, 2147483648
        %v1039 = vor.u32 1.1754944e-38, %v1038
        %v1040 = vsel %vm1037, %v1039, %v1035
        %v1041 = vmul.f32 1.0, %v1040
        %v1042 = vrcp.pop %v970
        %v1043 = vmul.f32 %v970, %v1042
        %v1044 = vsub.f32 1.0, %v1043
        %v1045 = vmul.f32 %v1042, %v1044
        %v1046 = vadd.f32 %v1042, %v1045
        %vm1047 = vweird.f32 %v970
        %vm1048 = vweird.f32 %v1042
        %vm1049 = vmor %vm1047, %vm1048
        %v1050 = vsel %vm1049, %v1042, %v1046
        %v1051 = vand.u32 2147483647, %v970
        %vm1052 = vcmp.eq.f32.partialorder %v1051, 8.507059e+37
        %v1053 = vand.u32 %v970, 2147483648
        %v1054 = vor.u32 1.1754944e-38, %v1053
        %v1055 = vsel %vm1052, %v1054, %v1050
        %v1056 = vmul.f32 1.0, %v1055
        %v1057 = vrcp.pop %v971
        %v1058 = vmul.f32 %v971, %v1057
        %v1059 = vsub.f32 1.0, %v1058
        %v1060 = vmul.f32 %v1057, %v1059
        %v1061 = vadd.f32 %v1057, %v1060
        %vm1062 = vweird.f32 %v971
        %vm1063 = vweird.f32 %v1057
        %vm1064 = vmor %vm1062, %vm1063
        %v1065 = vsel %vm1064, %v1057, %v1061
        %v1066 = vand.u32 2147483647, %v971
        %vm1067 = vcmp.eq.f32.partialorder %v1066, 8.507059e+37
        %v1068 = vand.u32 %v971, 2147483648
        %v1069 = vor.u32 1.1754944e-38, %v1068
        %v1070 = vsel %vm1067, %v1069, %v1065
        %v1071 = vmul.f32 1.0, %v1070
        %v1072 = vrcp.pop %v972
        %v1073 = vmul.f32 %v972, %v1072
        %v1074 = vsub.f32 1.0, %v1073
        %v1075 = vmul.f32 %v1072, %v1074
        %v1076 = vadd.f32 %v1072, %v1075
        %vm1077 = vweird.f32 %v972
        %vm1078 = vweird.f32 %v1072
        %vm1079 = vmor %vm1077, %vm1078
        %v1080 = vsel %vm1079, %v1072, %v1076
        %v1081 = vand.u32 2147483647, %v972
        %vm1082 = vcmp.eq.f32.partialorder %v1081, 8.507059e+37
        %v1083 = vand.u32 %v972, 2147483648
        %v1084 = vor.u32 1.1754944e-38, %v1083
        %v1085 = vsel %vm1082, %v1084, %v1080
        %v1086 = vmul.f32 1.0, %v1085
        %v1087 = vrcp.pop %v973
        %v1088 = vmul.f32 %v973, %v1087
        %v1089 = vsub.f32 1.0, %v1088
        %v1090 = vmul.f32 %v1087, %v1089
        %v1091 = vadd.f32 %v1087, %v1090
        %vm1092 = vweird.f32 %v973
        %vm1093 = vweird.f32 %v1087
        %vm1094 = vmor %vm1092, %vm1093
        %v1095 = vsel %vm1094, %v1087, %v1091
        %v1096 = vand.u32 2147483647, %v973
        %vm1097 = vcmp.eq.f32.partialorder %v1096, 8.507059e+37
        %v1098 = vand.u32 %v973, 2147483648
        %v1099 = vor.u32 1.1754944e-38, %v1098
        %v1100 = vsel %vm1097, %v1099, %v1095
        %v1101 = vmul.f32 1.0, %v1100
        %v1102 = vrcp.pop %v974
        %v1103 = vmul.f32 %v974, %v1102
        %v1104 = vsub.f32 1.0, %v1103
        %v1105 = vmul.f32 %v1102, %v1104
        %v1106 = vadd.f32 %v1102, %v1105
        %vm1107 = vweird.f32 %v974
        %vm1108 = vweird.f32 %v1102
        %vm1109 = vmor %vm1107, %vm1108
        %v1110 = vsel %vm1109, %v1102, %v1106
        %v1111 = vand.u32 2147483647, %v974
        %vm1112 = vcmp.eq.f32.partialorder %v1111, 8.507059e+37
        %v1113 = vand.u32 %v974, 2147483648
        %v1114 = vor.u32 1.1754944e-38, %v1113
        %v1115 = vsel %vm1112, %v1114, %v1110
        %v1116 = vmul.f32 1.0, %v1115
        %v1117 = vrcp.pop %v975
        %v1118 = vmul.f32 %v975, %v1117
        %v1119 = vsub.f32 1.0, %v1118
        %v1120 = vmul.f32 %v1117, %v1119
        %v1121 = vadd.f32 %v1117, %v1120
        %vm1122 = vweird.f32 %v975
        %vm1123 = vweird.f32 %v1117
        %vm1124 = vmor %vm1122, %vm1123
        %v1125 = vsel %vm1124, %v1117, %v1121
        %v1126 = vand.u32 2147483647, %v975
        %vm1127 = vcmp.eq.f32.partialorder %v1126, 8.507059e+37
        %v1128 = vand.u32 %v975, 2147483648
        %v1129 = vor.u32 1.1754944e-38, %v1128
        %v1130 = vsel %vm1127, %v1129, %v1125
        %v1131 = vmul.f32 1.0, %v1130
        %v1132 = vrcp.pop %v976
        %v1133 = vmul.f32 %v976, %v1132
        %v1134 = vsub.f32 1.0, %v1133
        %v1135 = vmul.f32 %v1132, %v1134
        %v1136 = vadd.f32 %v1132, %v1135
        %vm1137 = vweird.f32 %v976
        %vm1138 = vweird.f32 %v1132
        %vm1139 = vmor %vm1137, %vm1138
        %v1140 = vsel %vm1139, %v1132, %v1136
        %v1141 = vand.u32 2147483647, %v976
        %vm1142 = vcmp.eq.f32.partialorder %v1141, 8.507059e+37
        %v1143 = vand.u32 %v976, 2147483648
        %v1144 = vor.u32 1.1754944e-38, %v1143
        %v1145 = vsel %vm1142, %v1144, %v1140
        %v1146 = vmul.f32 1.0, %v1145
        %v1147 = vrcp.pop %v977
        %v1148 = vmul.f32 %v977, %v1147
        %v1149 = vsub.f32 1.0, %v1148
        %v1150 = vmul.f32 %v1147, %v1149
        %v1151 = vadd.f32 %v1147, %v1150
        %vm1152 = vweird.f32 %v977
        %vm1153 = vweird.f32 %v1147
        %vm1154 = vmor %vm1152, %vm1153
        %v1155 = vsel %vm1154, %v1147, %v1151
        %v1156 = vand.u32 2147483647, %v977
        %vm1157 = vcmp.eq.f32.partialorder %v1156, 8.507059e+37
        %v1158 = vand.u32 %v977, 2147483648
        %v1159 = vor.u32 1.1754944e-38, %v1158
        %v1160 = vsel %vm1157, %v1159, %v1155
        %v1161 = vmul.f32 1.0, %v1160
        %v1162 = vrcp.pop %v978
        %v1163 = vmul.f32 %v978, %v1162
        %v1164 = vsub.f32 1.0, %v1163
        %v1165 = vmul.f32 %v1162, %v1164
        %v1166 = vadd.f32 %v1162, %v1165
        %vm1167 = vweird.f32 %v978
        %vm1168 = vweird.f32 %v1162
        %vm1169 = vmor %vm1167, %vm1168
        %v1170 = vsel %vm1169, %v1162, %v1166
        %v1171 = vand.u32 2147483647, %v978
        %vm1172 = vcmp.eq.f32.partialorder %v1171, 8.507059e+37
        %v1173 = vand.u32 %v978, 2147483648
        %v1174 = vor.u32 1.1754944e-38, %v1173
        %v1175 = vsel %vm1172, %v1174, %v1170
        %v1176 = vmul.f32 1.0, %v1175
        %v1177 = vrcp.pop %v979
        %v1178 = vmul.f32 %v979, %v1177
        %v1179 = vsub.f32 1.0, %v1178
        %v1180 = vmul.f32 %v1177, %v1179
        %v1181 = vadd.f32 %v1177, %v1180
        %vm1182 = vweird.f32 %v979
        %vm1183 = vweird.f32 %v1177
        %vm1184 = vmor %vm1182, %vm1183
        %v1185 = vsel %vm1184, %v1177, %v1181
        %v1186 = vand.u32 2147483647, %v979
        %vm1187 = vcmp.eq.f32.partialorder %v1186, 8.507059e+37
        %v1188 = vand.u32 %v979, 2147483648
        %v1189 = vor.u32 1.1754944e-38, %v1188
        %v1190 = vsel %vm1187, %v1189, %v1185
        %v1191 = vmul.f32 1.0, %v1190
        %v1192 = vrcp.pop %v980
        %v1193 = vmul.f32 %v980, %v1192
        %v1194 = vsub.f32 1.0, %v1193
        %v1195 = vmul.f32 %v1192, %v1194
        %v1196 = vadd.f32 %v1192, %v1195
        %vm1197 = vweird.f32 %v980
        %vm1198 = vweird.f32 %v1192
        %vm1199 = vmor %vm1197, %vm1198
        %v1200 = vsel %vm1199, %v1192, %v1196
        %v1201 = vand.u32 2147483647, %v980
        %vm1202 = vcmp.eq.f32.partialorder %v1201, 8.507059e+37
        %v1203 = vand.u32 %v980, 2147483648
        %v1204 = vor.u32 1.1754944e-38, %v1203
        %v1205 = vsel %vm1202, %v1204, %v1200
        %v1206 = vmul.f32 1.0, %v1205
        %v1207 = vrcp.pop %v981
        %v1208 = vmul.f32 %v981, %v1207
        %v1209 = vsub.f32 1.0, %v1208
        %v1210 = vmul.f32 %v1207, %v1209
        %v1211 = vadd.f32 %v1207, %v1210
        %vm1212 = vweird.f32 %v981
        %vm1213 = vweird.f32 %v1207
        %vm1214 = vmor %vm1212, %vm1213
        %v1215 = vsel %vm1214, %v1207, %v1211
        %v1216 = vand.u32 2147483647, %v981
        %vm1217 = vcmp.eq.f32.partialorder %v1216, 8.507059e+37
        %v1218 = vand.u32 %v981, 2147483648
        %v1219 = vor.u32 1.1754944e-38, %v1218
        %v1220 = vsel %vm1217, %v1219, %v1215
        %v1221 = vmul.f32 1.0, %v1220
        %v1222 = vadd.f32 %v547, %v790
        %v1223 = vadd.f32 %v550, %v793
        %v1224 = vadd.f32 %v553, %v796
        %v1225 = vadd.f32 %v556, %v799
        %v1226 = vadd.f32 %v559, %v802
        %v1227 = vadd.f32 %v562, %v805
        %v1228 = vadd.f32 %v565, %v808
        %v1229 = vadd.f32 %v568, %v811
        %v1230 = vadd.f32 %v571, %v814
        %v1231 = vadd.f32 %v574, %v817
        %v1232 = vadd.f32 %v577, %v820
        %v1233 = vadd.f32 %v580, %v823
        %v1234 = vadd.f32 %v583, %v826
        %v1235 = vadd.f32 %v586, %v829
        %v1236 = vadd.f32 %v589, %v832
        %v1237 = vadd.f32 %v592, %v835
        %v1238 = vxor.u32 %v1222, 2147483648
        %v1239 = vxor.u32 %v1223, 2147483648
        %v1240 = vxor.u32 %v1224, 2147483648
        %v1241 = vxor.u32 %v1225, 2147483648
        %v1242 = vxor.u32 %v1226, 2147483648
        %v1243 = vxor.u32 %v1227, 2147483648
        %v1244 = vxor.u32 %v1228, 2147483648
        %v1245 = vxor.u32 %v1229, 2147483648
        %v1246 = vxor.u32 %v1230, 2147483648
        %v1247 = vxor.u32 %v1231, 2147483648
        %v1248 = vxor.u32 %v1232, 2147483648
        %v1249 = vxor.u32 %v1233, 2147483648
        %v1250 = vxor.u32 %v1234, 2147483648
        %v1251 = vxor.u32 %v1235, 2147483648
        %v1252 = vxor.u32 %v1236, 2147483648
        %v1253 = vxor.u32 %v1237, 2147483648
        %v1254 = vmul.f32 %v1238, 1.442695
        %v1255 = vpow.pop %v1254
        %v1256 = vmul.f32 %v1239, 1.442695
        %v1257 = vpow.pop %v1256
        %v1258 = vmul.f32 %v1240, 1.442695
        %v1259 = vpow.pop %v1258
        %v1260 = vmul.f32 %v1241, 1.442695
        %v1261 = vpow.pop %v1260
        %v1262 = vmul.f32 %v1242, 1.442695
        %v1263 = vpow.pop %v1262
        %v1264 = vmul.f32 %v1243, 1.442695
        %v1265 = vpow.pop %v1264
        %v1266 = vmul.f32 %v1244, 1.442695
        %v1267 = vpow.pop %v1266
        %v1268 = vmul.f32 %v1245, 1.442695
        %v1269 = vpow.pop %v1268
        %v1270 = vmul.f32 %v1246, 1.442695
        %v1271 = vpow.pop %v1270
        %v1272 = vmul.f32 %v1247, 1.442695
        %v1273 = vpow.pop %v1272
        %v1274 = vmul.f32 %v1248, 1.442695
        %v1275 = vpow.pop %v1274
        %v1276 = vmul.f32 %v1249, 1.442695
        %v1277 = vpow.pop %v1276
        %v1278 = vmul.f32 %v1250, 1.442695
        %v1279 = vpow.pop %v1278
        %v1280 = vmul.f32 %v1251, 1.442695
        %v1281 = vpow.pop %v1280
        %v1282 = vmul.f32 %v1252, 1.442695
        %v1283 = vpow.pop %v1282
        %v1284 = vmul.f32 %v1253, 1.442695
        %v1285 = vpow.pop %v1284
        %v1286 = vadd.f32 %v1255, 1.0
        %v1287 = vadd.f32 %v1257, 1.0
        %v1288 = vadd.f32 %v1259, 1.0
        %v1289 = vadd.f32 %v1261, 1.0
        %v1290 = vadd.f32 %v1263, 1.0
        %v1291 = vadd.f32 %v1265, 1.0
        %v1292 = vadd.f32 %v1267, 1.0
        %v1293 = vadd.f32 %v1269, 1.0
        %v1294 = vadd.f32 %v1271, 1.0
        %v1295 = vadd.f32 %v1273, 1.0
        %v1296 = vadd.f32 %v1275, 1.0
        %v1297 = vadd.f32 %v1277, 1.0
        %v1298 = vadd.f32 %v1279, 1.0
        %v1299 = vadd.f32 %v1281, 1.0
        %v1300 = vadd.f32 %v1283, 1.0
        %v1301 = vadd.f32 %v1285, 1.0
        %v1302 = vrcp.pop %v1286
        %v1303 = vmul.f32 %v1286, %v1302
        %v1304 = vsub.f32 1.0, %v1303
        %v1305 = vmul.f32 %v1302, %v1304
        %v1306 = vadd.f32 %v1302, %v1305
        %vm1307 = vweird.f32 %v1286
        %vm1308 = vweird.f32 %v1302
        %vm1309 = vmor %vm1307, %vm1308
        %v1310 = vsel %vm1309, %v1302, %v1306
        %v1311 = vand.u32 2147483647, %v1286
        %vm1312 = vcmp.eq.f32.partialorder %v1311, 8.507059e+37
        %v1313 = vand.u32 %v1286, 2147483648
        %v1314 = vor.u32 1.1754944e-38, %v1313
        %v1315 = vsel %vm1312, %v1314, %v1310
        %v1316 = vmul.f32 1.0, %v1315
        %v1317 = vrcp.pop %v1287
        %v1318 = vmul.f32 %v1287, %v1317
        %v1319 = vsub.f32 1.0, %v1318
        %v1320 = vmul.f32 %v1317, %v1319
        %v1321 = vadd.f32 %v1317, %v1320
        %vm1322 = vweird.f32 %v1287
        %vm1323 = vweird.f32 %v1317
        %vm1324 = vmor %vm1322, %vm1323
        %v1325 = vsel %vm1324, %v1317, %v1321
        %v1326 = vand.u32 2147483647, %v1287
        %vm1327 = vcmp.eq.f32.partialorder %v1326, 8.507059e+37
        %v1328 = vand.u32 %v1287, 2147483648
        %v1329 = vor.u32 1.1754944e-38, %v1328
        %v1330 = vsel %vm1327, %v1329, %v1325
        %v1331 = vmul.f32 1.0, %v1330
        %v1332 = vrcp.pop %v1288
        %v1333 = vmul.f32 %v1288, %v1332
        %v1334 = vsub.f32 1.0, %v1333
        %v1335 = vmul.f32 %v1332, %v1334
        %v1336 = vadd.f32 %v1332, %v1335
        %vm1337 = vweird.f32 %v1288
        %vm1338 = vweird.f32 %v1332
        %vm1339 = vmor %vm1337, %vm1338
        %v1340 = vsel %vm1339, %v1332, %v1336
        %v1341 = vand.u32 2147483647, %v1288
        %vm1342 = vcmp.eq.f32.partialorder %v1341, 8.507059e+37
        %v1343 = vand.u32 %v1288, 2147483648
        %v1344 = vor.u32 1.1754944e-38, %v1343
        %v1345 = vsel %vm1342, %v1344, %v1340
        %v1346 = vmul.f32 1.0, %v1345
        %v1347 = vrcp.pop %v1289
        %v1348 = vmul.f32 %v1289, %v1347
        %v1349 = vsub.f32 1.0, %v1348
        %v1350 = vmul.f32 %v1347, %v1349
        %v1351 = vadd.f32 %v1347, %v1350
        %vm1352 = vweird.f32 %v1289
        %vm1353 = vweird.f32 %v1347
        %vm1354 = vmor %vm1352, %vm1353
        %v1355 = vsel %vm1354, %v1347, %v1351
        %v1356 = vand.u32 2147483647, %v1289
        %vm1357 = vcmp.eq.f32.partialorder %v1356, 8.507059e+37
        %v1358 = vand.u32 %v1289, 2147483648
        %v1359 = vor.u32 1.1754944e-38, %v1358
        %v1360 = vsel %vm1357, %v1359, %v1355
        %v1361 = vmul.f32 1.0, %v1360
        %v1362 = vrcp.pop %v1290
        %v1363 = vmul.f32 %v1290, %v1362
        %v1364 = vsub.f32 1.0, %v1363
        %v1365 = vmul.f32 %v1362, %v1364
        %v1366 = vadd.f32 %v1362, %v1365
        %vm1367 = vweird.f32 %v1290
        %vm1368 = vweird.f32 %v1362
        %vm1369 = vmor %vm1367, %vm1368
        %v1370 = vsel %vm1369, %v1362, %v1366
        %v1371 = vand.u32 2147483647, %v1290
        %vm1372 = vcmp.eq.f32.partialorder %v1371, 8.507059e+37
        %v1373 = vand.u32 %v1290, 2147483648
        %v1374 = vor.u32 1.1754944e-38, %v1373
        %v1375 = vsel %vm1372, %v1374, %v1370
        %v1376 = vmul.f32 1.0, %v1375
        %v1377 = vrcp.pop %v1291
        %v1378 = vmul.f32 %v1291, %v1377
        %v1379 = vsub.f32 1.0, %v1378
        %v1380 = vmul.f32 %v1377, %v1379
        %v1381 = vadd.f32 %v1377, %v1380
        %vm1382 = vweird.f32 %v1291
        %vm1383 = vweird.f32 %v1377
        %vm1384 = vmor %vm1382, %vm1383
        %v1385 = vsel %vm1384, %v1377, %v1381
        %v1386 = vand.u32 2147483647, %v1291
        %vm1387 = vcmp.eq.f32.partialorder %v1386, 8.507059e+37
        %v1388 = vand.u32 %v1291, 2147483648
        %v1389 = vor.u32 1.1754944e-38, %v1388
        %v1390 = vsel %vm1387, %v1389, %v1385
        %v1391 = vmul.f32 1.0, %v1390
        %v1392 = vrcp.pop %v1292
        %v1393 = vmul.f32 %v1292, %v1392
        %v1394 = vsub.f32 1.0, %v1393
        %v1395 = vmul.f32 %v1392, %v1394
        %v1396 = vadd.f32 %v1392, %v1395
        %vm1397 = vweird.f32 %v1292
        %vm1398 = vweird.f32 %v1392
        %vm1399 = vmor %vm1397, %vm1398
        %v1400 = vsel %vm1399, %v1392, %v1396
        %v1401 = vand.u32 2147483647, %v1292
        %vm1402 = vcmp.eq.f32.partialorder %v1401, 8.507059e+37
        %v1403 = vand.u32 %v1292, 2147483648
        %v1404 = vor.u32 1.1754944e-38, %v1403
        %v1405 = vsel %vm1402, %v1404, %v1400
        %v1406 = vmul.f32 1.0, %v1405
        %v1407 = vrcp.pop %v1293
        %v1408 = vmul.f32 %v1293, %v1407
        %v1409 = vsub.f32 1.0, %v1408
        %v1410 = vmul.f32 %v1407, %v1409
        %v1411 = vadd.f32 %v1407, %v1410
        %vm1412 = vweird.f32 %v1293
        %vm1413 = vweird.f32 %v1407
        %vm1414 = vmor %vm1412, %vm1413
        %v1415 = vsel %vm1414, %v1407, %v1411
        %v1416 = vand.u32 2147483647, %v1293
        %vm1417 = vcmp.eq.f32.partialorder %v1416, 8.507059e+37
        %v1418 = vand.u32 %v1293, 2147483648
        %v1419 = vor.u32 1.1754944e-38, %v1418
        %v1420 = vsel %vm1417, %v1419, %v1415
        %v1421 = vmul.f32 1.0, %v1420
        %v1422 = vrcp.pop %v1294
        %v1423 = vmul.f32 %v1294, %v1422
        %v1424 = vsub.f32 1.0, %v1423
        %v1425 = vmul.f32 %v1422, %v1424
        %v1426 = vadd.f32 %v1422, %v1425
        %vm1427 = vweird.f32 %v1294
        %vm1428 = vweird.f32 %v1422
        %vm1429 = vmor %vm1427, %vm1428
        %v1430 = vsel %vm1429, %v1422, %v1426
        %v1431 = vand.u32 2147483647, %v1294
        %vm1432 = vcmp.eq.f32.partialorder %v1431, 8.507059e+37
        %v1433 = vand.u32 %v1294, 2147483648
        %v1434 = vor.u32 1.1754944e-38, %v1433
        %v1435 = vsel %vm1432, %v1434, %v1430
        %v1436 = vmul.f32 1.0, %v1435
        %v1437 = vrcp.pop %v1295
        %v1438 = vmul.f32 %v1295, %v1437
        %v1439 = vsub.f32 1.0, %v1438
        %v1440 = vmul.f32 %v1437, %v1439
        %v1441 = vadd.f32 %v1437, %v1440
        %vm1442 = vweird.f32 %v1295
        %vm1443 = vweird.f32 %v1437
        %vm1444 = vmor %vm1442, %vm1443
        %v1445 = vsel %vm1444, %v1437, %v1441
        %v1446 = vand.u32 2147483647, %v1295
        %vm1447 = vcmp.eq.f32.partialorder %v1446, 8.507059e+37
        %v1448 = vand.u32 %v1295, 2147483648
        %v1449 = vor.u32 1.1754944e-38, %v1448
        %v1450 = vsel %vm1447, %v1449, %v1445
        %v1451 = vmul.f32 1.0, %v1450
        %v1452 = vrcp.pop %v1296
        %v1453 = vmul.f32 %v1296, %v1452
        %v1454 = vsub.f32 1.0, %v1453
        %v1455 = vmul.f32 %v1452, %v1454
        %v1456 = vadd.f32 %v1452, %v1455
        %vm1457 = vweird.f32 %v1296
        %vm1458 = vweird.f32 %v1452
        %vm1459 = vmor %vm1457, %vm1458
        %v1460 = vsel %vm1459, %v1452, %v1456
        %v1461 = vand.u32 2147483647, %v1296
        %vm1462 = vcmp.eq.f32.partialorder %v1461, 8.507059e+37
        %v1463 = vand.u32 %v1296, 2147483648
        %v1464 = vor.u32 1.1754944e-38, %v1463
        %v1465 = vsel %vm1462, %v1464, %v1460
        %v1466 = vmul.f32 1.0, %v1465
        %v1467 = vrcp.pop %v1297
        %v1468 = vmul.f32 %v1297, %v1467
        %v1469 = vsub.f32 1.0, %v1468
        %v1470 = vmul.f32 %v1467, %v1469
        %v1471 = vadd.f32 %v1467, %v1470
        %vm1472 = vweird.f32 %v1297
        %vm1473 = vweird.f32 %v1467
        %vm1474 = vmor %vm1472, %vm1473
        %v1475 = vsel %vm1474, %v1467, %v1471
        %v1476 = vand.u32 2147483647, %v1297
        %vm1477 = vcmp.eq.f32.partialorder %v1476, 8.507059e+37
        %v1478 = vand.u32 %v1297, 2147483648
        %v1479 = vor.u32 1.1754944e-38, %v1478
        %v1480 = vsel %vm1477, %v1479, %v1475
        %v1481 = vmul.f32 1.0, %v1480
        %v1482 = vrcp.pop %v1298
        %v1483 = vmul.f32 %v1298, %v1482
        %v1484 = vsub.f32 1.0, %v1483
        %v1485 = vmul.f32 %v1482, %v1484
        %v1486 = vadd.f32 %v1482, %v1485
        %vm1487 = vweird.f32 %v1298
        %vm1488 = vweird.f32 %v1482
        %vm1489 = vmor %vm1487, %vm1488
        %v1490 = vsel %vm1489, %v1482, %v1486
        %v1491 = vand.u32 2147483647, %v1298
        %vm1492 = vcmp.eq.f32.partialorder %v1491, 8.507059e+37
        %v1493 = vand.u32 %v1298, 2147483648
        %v1494 = vor.u32 1.1754944e-38, %v1493
        %v1495 = vsel %vm1492, %v1494, %v1490
        %v1496 = vmul.f32 1.0, %v1495
        %v1497 = vrcp.pop %v1299
        %v1498 = vmul.f32 %v1299, %v1497
        %v1499 = vsub.f32 1.0, %v1498
        %v1500 = vmul.f32 %v1497, %v1499
        %v1501 = vadd.f32 %v1497, %v1500
        %vm1502 = vweird.f32 %v1299
        %vm1503 = vweird.f32 %v1497
        %vm1504 = vmor %vm1502, %vm1503
        %v1505 = vsel %vm1504, %v1497, %v1501
        %v1506 = vand.u32 2147483647, %v1299
        %vm1507 = vcmp.eq.f32.partialorder %v1506, 8.507059e+37
        %v1508 = vand.u32 %v1299, 2147483648
        %v1509 = vor.u32 1.1754944e-38, %v1508
        %v1510 = vsel %vm1507, %v1509, %v1505
        %v1511 = vmul.f32 1.0, %v1510
        %v1512 = vrcp.pop %v1300
        %v1513 = vmul.f32 %v1300, %v1512
        %v1514 = vsub.f32 1.0, %v1513
        %v1515 = vmul.f32 %v1512, %v1514
        %v1516 = vadd.f32 %v1512, %v1515
        %vm1517 = vweird.f32 %v1300
        %vm1518 = vweird.f32 %v1512
        %vm1519 = vmor %vm1517, %vm1518
        %v1520 = vsel %vm1519, %v1512, %v1516
        %v1521 = vand.u32 2147483647, %v1300
        %vm1522 = vcmp.eq.f32.partialorder %v1521, 8.507059e+37
        %v1523 = vand.u32 %v1300, 2147483648
        %v1524 = vor.u32 1.1754944e-38, %v1523
        %v1525 = vsel %vm1522, %v1524, %v1520
        %v1526 = vmul.f32 1.0, %v1525
        %v1527 = vrcp.pop %v1301
        %v1528 = vmul.f32 %v1301, %v1527
        %v1529 = vsub.f32 1.0, %v1528
        %v1530 = vmul.f32 %v1527, %v1529
        %v1531 = vadd.f32 %v1527, %v1530
        %vm1532 = vweird.f32 %v1301
        %vm1533 = vweird.f32 %v1527
        %vm1534 = vmor %vm1532, %vm1533
        %v1535 = vsel %vm1534, %v1527, %v1531
        %v1536 = vand.u32 2147483647, %v1301
        %vm1537 = vcmp.eq.f32.partialorder %v1536, 8.507059e+37
        %v1538 = vand.u32 %v1301, 2147483648
        %v1539 = vor.u32 1.1754944e-38, %v1538
        %v1540 = vsel %vm1537, %v1539, %v1535
        %v1541 = vmul.f32 1.0, %v1540
        %v1542 = vld [vmem:[%s5] sm:$0x1]
        %v1544 = vperm.slane %v1542, 0
        %v1546 = vadd.f32 %v855, %v1544
        %v1547 = vadd.f32 %v858, %v1544
        %v1548 = vadd.f32 %v861, %v1544
        %v1549 = vadd.f32 %v864, %v1544
        %v1550 = vadd.f32 %v867, %v1544
        %v1551 = vadd.f32 %v870, %v1544
        %v1552 = vadd.f32 %v873, %v1544
        %v1553 = vadd.f32 %v876, %v1544
        %v1554 = vadd.f32 %v879, %v1544
        %v1555 = vadd.f32 %v882, %v1544
        %v1556 = vadd.f32 %v885, %v1544
        %v1557 = vadd.f32 %v888, %v1544
        %v1558 = vadd.f32 %v891, %v1544
        %v1559 = vadd.f32 %v894, %v1544
        %v1560 = vadd.f32 %v897, %v1544
        %v1561 = vadd.f32 %v900, %v1544
        %v1562 = vmul.f32 %v996, %v1546
        %v1563 = vmul.f32 %v1011, %v1547
        %v1564 = vmul.f32 %v1026, %v1548
        %v1565 = vmul.f32 %v1041, %v1549
        %v1566 = vmul.f32 %v1056, %v1550
        %v1567 = vmul.f32 %v1071, %v1551
        %v1568 = vmul.f32 %v1086, %v1552
        %v1569 = vmul.f32 %v1101, %v1553
        %v1570 = vmul.f32 %v1116, %v1554
        %v1571 = vmul.f32 %v1131, %v1555
        %v1572 = vmul.f32 %v1146, %v1556
        %v1573 = vmul.f32 %v1161, %v1557
        %v1574 = vmul.f32 %v1176, %v1558
        %v1575 = vmul.f32 %v1191, %v1559
        %v1576 = vmul.f32 %v1206, %v1560
        %v1577 = vmul.f32 %v1221, %v1561
        %v1578 = vadd.f32 %v612, %v1562
        %v1579 = vadd.f32 %v615, %v1563
        %v1580 = vadd.f32 %v618, %v1564
        %v1581 = vadd.f32 %v621, %v1565
        %v1582 = vadd.f32 %v624, %v1566
        %v1583 = vadd.f32 %v627, %v1567
        %v1584 = vadd.f32 %v630, %v1568
        %v1585 = vadd.f32 %v633, %v1569
        %v1586 = vadd.f32 %v636, %v1570
        %v1587 = vadd.f32 %v639, %v1571
        %v1588 = vadd.f32 %v642, %v1572
        %v1589 = vadd.f32 %v645, %v1573
        %v1590 = vadd.f32 %v648, %v1574
        %v1591 = vadd.f32 %v651, %v1575
        %v1592 = vadd.f32 %v654, %v1576
        %v1593 = vadd.f32 %v657, %v1577
        %v1594 = vtanh.pop %v1578
        %v1595 = vtanh.pop %v1579
        %v1596 = vtanh.pop %v1580
        %v1597 = vtanh.pop %v1581
        %v1598 = vtanh.pop %v1582
        %v1599 = vtanh.pop %v1583
        %v1600 = vtanh.pop %v1584
        %v1601 = vtanh.pop %v1585
        %v1602 = vtanh.pop %v1586
        %v1603 = vtanh.pop %v1587
        %v1604 = vtanh.pop %v1588
        %v1605 = vtanh.pop %v1589
        %v1606 = vtanh.pop %v1590
        %v1607 = vtanh.pop %v1591
        %v1608 = vtanh.pop %v1592
        %v1609 = vtanh.pop %v1593
        %v1610 = vsub.f32 %v376, %v1594
        %v1611 = vsub.f32 %v377, %v1595
        %v1612 = vsub.f32 %v378, %v1596
        %v1613 = vsub.f32 %v379, %v1597
        %v1614 = vsub.f32 %v380, %v1598
        %v1615 = vsub.f32 %v381, %v1599
        %v1616 = vsub.f32 %v382, %v1600
        %v1617 = vsub.f32 %v383, %v1601
        %v1618 = vsub.f32 %v384, %v1602
        %v1619 = vsub.f32 %v385, %v1603
        %v1620 = vsub.f32 %v386, %v1604
        %v1621 = vsub.f32 %v387, %v1605
        %v1622 = vsub.f32 %v388, %v1606
        %v1623 = vsub.f32 %v389, %v1607
        %v1624 = vsub.f32 %v390, %v1608
        %v1625 = vsub.f32 %v391, %v1609
        %v1626 = vmul.f32 %v1316, %v1610
        %v1627 = vmul.f32 %v1331, %v1611
        %v1628 = vmul.f32 %v1346, %v1612
        %v1629 = vmul.f32 %v1361, %v1613
        %v1630 = vmul.f32 %v1376, %v1614
        %v1631 = vmul.f32 %v1391, %v1615
        %v1632 = vmul.f32 %v1406, %v1616
        %v1633 = vmul.f32 %v1421, %v1617
        %v1634 = vmul.f32 %v1436, %v1618
        %v1635 = vmul.f32 %v1451, %v1619
        %v1636 = vmul.f32 %v1466, %v1620
        %v1637 = vmul.f32 %v1481, %v1621
        %v1638 = vmul.f32 %v1496, %v1622
        %v1639 = vmul.f32 %v1511, %v1623
        %v1640 = vmul.f32 %v1526, %v1624
        %v1641 = vmul.f32 %v1541, %v1625
        %v1642 = vadd.f32 %v1594, %v1626
        %v1643 = vadd.f32 %v1595, %v1627
        %v1644 = vadd.f32 %v1596, %v1628
        %v1645 = vadd.f32 %v1597, %v1629
        %v1646 = vadd.f32 %v1598, %v1630
        %v1647 = vadd.f32 %v1599, %v1631
        %v1648 = vadd.f32 %v1600, %v1632
        %v1649 = vadd.f32 %v1601, %v1633
        %v1650 = vadd.f32 %v1602, %v1634
        %v1651 = vadd.f32 %v1603, %v1635
        %v1652 = vadd.f32 %v1604, %v1636
        %v1653 = vadd.f32 %v1605, %v1637
        %v1654 = vadd.f32 %v1606, %v1638
        %v1655 = vadd.f32 %v1607, %v1639
        %v1656 = vadd.f32 %v1608, %v1640
        %v1657 = vadd.f32 %v1609, %v1641
        %1658 = vst [vmem:[%s360] sm:$0xff] %v1642
        %1659 = vst [vmem:[%s360 + $0x8] sm:$0xff] %v1643
        %1660 = vst [vmem:[%s360 + $0x10] sm:$0xff] %v1644
        %1661 = vst [vmem:[%s360 + $0x18] sm:$0xff] %v1645
        %1662 = vst [vmem:[%s360 + $0x20] sm:$0xff] %v1646
        %1663 = vst [vmem:[%s360 + $0x28] sm:$0xff] %v1647
        %1664 = vst [vmem:[%s360 + $0x30] sm:$0xff] %v1648
        %1665 = vst [vmem:[%s360 + $0x38] sm:$0xff] %v1649
        %1666 = vst [vmem:[%s360 + $0x40] sm:$0xff] %v1650
        %1667 = vst [vmem:[%s360 + $0x48] sm:$0xff] %v1651
        %1668 = vst [vmem:[%s360 + $0x50] sm:$0xff] %v1652
        %1669 = vst [vmem:[%s360 + $0x58] sm:$0xff] %v1653
        %1670 = vst [vmem:[%s360 + $0x60] sm:$0xff] %v1654
        %1671 = vst [vmem:[%s360 + $0x68] sm:$0xff] %v1655
        %1672 = vst [vmem:[%s360 + $0x70] sm:$0xff] %v1656
        %1673 = vst [vmem:[%s360 + $0x78] sm:$0xff] %v1657
        %s1674 = sand.u32 %s171, 1
        %s1675 = scalar_lea.sflag [#allocation4], %s1674
        %s1676 = sand.u32 %s171, 1
        %s1677 = smul.addr %s1676, 128
        %s1678 = scalar_lea.vmem [#allocation10], %s1677
        // Predicated region
        $region61: #{tpu_custom_call.1} parent=43 // pred_check
          %p1679 = pneg %p181
        $region62: #{tpu_custom_call.1} parent=43 // pred_check_branch
          %1681 = sbr.rel (%p1679) target = $region64
        $region63: #{tpu_custom_call.1} parent=43 // pred_region
          %s1682 = smul.u32 16, %s27
          %s1683 = ssub.s32 18, %s1682
          %p1684 = scmp.lt.s32.totalorder %s1683, 16
          %s1685 = scalar_select %p1684, %s1683, 16
          %s1686 = smul.u32 8, %s1685
          %s1687 = ssub.s32 128, %s1686
          %s1688 = sshll.u32 %s1687, 4
          %1689 = vsyncadd %s1675, %s1688
          %p1690 = scmp.ne.s32.totalorder 0, %s1686
          %s1691 = smul.addr %s1682, 8
          %s1692 = scalar_lea.hbm %s6, %s1691
          %s1693 = smul.u32 8, %s1685
          %s1694 = sshll.u32 %s1678, 4
          %s1695 = int_to_ptr.vmem [resolvable:$true] %s1694
          %s1696 = sshll.u32 %s1692, 4
          %s1697 = int_to_ptr.hbm [resolvable:$true] %s1696
          %s1698 = sshll.u32 %s1693, 4
          %1702 = dma.vmem_to_hbm [thread:$0]  (%p1690), %s1695, %s1698, %s1697, %s1675, 128, 128, 8
        $region64: #{tpu_custom_call.1} parent=43 // pred_fallthru
          _
      $region44: #{tpu_custom_call.1} parent=5 // pred_fallthru
        _
      %p1703 = scmp.le.s32.totalorder 2, %s22
      // Predicated region
      $region65: #{tpu_custom_call.1} parent=5 // pred_check
        %p1704 = pneg %p1703
      $region66: #{tpu_custom_call.1} parent=5 // pred_check_branch
        %1706 = sbr.rel (%p1704) target = $region68
      $region67: #{tpu_custom_call.1} parent=5 // pred_region
        %s1707 = ssub.s32 %s22, 2
        // Predicated region
        $region69: #{tpu_custom_call.1} parent=67 // pred_check
          %p1708 = pneg %p187
        $region70: #{tpu_custom_call.1} parent=67 // pred_check_branch
          %1710 = sbr.rel (%p1708) target = $region72
        $region71: #{tpu_custom_call.1} parent=67 // pred_region
          %s1711 = sand.u32 %s172, 1
          %s1712 = scalar_lea.sflag [#allocation4], %s1711
          %s1713 = sand.u32 %s172, 1
          %s1714 = smul.addr %s1713, 128
          %s1715 = scalar_lea.vmem [#allocation10], %s1714
          %1717 = dma.done %s1712, 2048
        $region72: #{tpu_custom_call.1} parent=67 // pred_fallthru
          _
      $region68: #{tpu_custom_call.1} parent=5 // pred_fallthru
        _
    $region6: #{tpu_custom_call.1} parent=1 // loop_footer
      %s26 = sadd.s32 1, %s22
    $region7: #{tpu_custom_call.1} parent=1 // loop_footer_branch
      %21 = sbr.rel target = $region3
    $region8: #{tpu_custom_call.1} parent=1 // loop_exit
      _
    %1718 = vsyncpa [#allocation3], 1
    %s1719 = scalar_lea.sflag [#allocation3], 1
    %1720 = vsyncpa %s1719, 1
    %1721 = vsyncpa [#allocation6], 1
    %s1722 = scalar_lea.sflag [#allocation6], 1
    %1723 = vsyncpa %s1722, 1
    %1724 = vsyncpa [#allocation9], 1
    %1725 = vsyncpa [#allocation4], 1
    %s1726 = scalar_lea.sflag [#allocation4], 1
    %1727 = vsyncpa %s1726, 1

// kernel: tpu_custom_call.1
$region0: #{tpu_custom_call.1}
  #allocation0 [shape = 'u32[]', space=smem, size = 0x4, offset = 0x4, fixed_abs, tag = 'smem constant byte address 0x4 - core index']
  #allocation1 [shape = 'u32[72,128]{1,0:T(1,128)}', space=vmem, size = 0x9000, scoped, tag = 'internal scratch']
  %s0 = inlined_call_operand.hbm [shape: f32[144,128], index: 0, kind: input, shape index: {}]
  %s1 = inlined_call_operand.hbm [shape: f32[144,128], index: 1, kind: input, shape index: {}]
  %s2 = inlined_call_operand.hbm [shape: f32[128,384], index: 2, kind: input, shape index: {}]
  %s3 = inlined_call_operand.hbm [shape: f32[128,384], index: 3, kind: input, shape index: {}]
  %s4 = inlined_call_operand.vmem [shape: f32[1,384], index: 4, kind: input, shape index: {}]
  %s5 = inlined_call_operand.vmem [shape: f32[1,128], index: 5, kind: input, shape index: {}]
  %s6 = inlined_call_operand.hbm [shape: f32[144,128], index: 6, kind: output, shape index: {}]
  %s7 = sld [smem:[#allocation0]]
  $region73: #{tpu_custom_call.1} parent=0
    _
  %s9 = ssub.s32 1, %s7
  %s10 = scalar_select 0, %s9, %s7
  $region1: #{tpu_custom_call.1} parent=0
    #allocation2 [shape = 'u8[131072]{0}', space=vmem, size = 0x20000, scoped, tag = 'input window, operand 0']
    #allocation3 [shape = 's32[2]{0}', space=sflag, size = 0x8, scoped, tag = 'scoped memory for tpu_custom_call.1']
    #allocation4 [shape = 's32[2]{0}', space=sflag, size = 0x8, scoped, tag = 'scoped memory for tpu_custom_call.1']
    #allocation5 [shape = 'u8[131072]{0}', space=vmem, size = 0x20000, scoped, tag = 'input window, operand 1']
    #allocation6 [shape = 's32[2]{0}', space=sflag, size = 0x8, scoped, tag = 'scoped memory for tpu_custom_call.1']
    #allocation7 [shape = 'u8[196608]{0}', space=vmem, size = 0x30000, scoped, tag = 'input window, operand 2, single buffered']
    #allocation8 [shape = 'u8[196608]{0}', space=vmem, size = 0x30000, scoped, tag = 'input window, operand 3, single buffered']
    #allocation9 [shape = 's32[1]{0}', space=sflag, size = 0x4, scoped, tag = 'scoped memory for tpu_custom_call.1']
    #allocation10 [shape = 'u8[131072]{0}', space=vmem, size = 0x20000, scoped, tag = 'output window, operand 0']
    %11 = vsyncpa [#allocation3], 0
    %s12 = scalar_lea.sflag [#allocation3], 1
    %13 = vsyncpa %s12, 0
    %14 = vsyncpa [#allocation6], 0
    %s15 = scalar_lea.sflag [#allocation6], 1
    %16 = vsyncpa %s15, 0
    %17 = vsyncpa [#allocation9], 0
    %18 = vsyncpa [#allocation4], 0
    %s19 = scalar_lea.sflag [#allocation4], 1
    %20 = vsyncpa %s19, 0
    loop: start=0, step=1, limit=4
    $region2: #{tpu_custom_call.1} parent=1 // loop_pre_header
      _
    $region3: #{tpu_custom_call.1} parent=1 // loop_header
      %s22 = sphi 0, %s26
      %p23 = scmp.ge.s32.totalorder %s22, 4
      %s32 = sphi 0, %s34
      %s35 = sphi 0, %s32
      %s36 = sphi 0, %s35
      %s52 = sphi 0, %s36
      %s58 = sphi 0, %s60
      %s61 = sphi 0, %s58
      %s62 = sphi 0, %s61
      %s78 = sphi 0, %s62
      %s82 = sphi 0, %s82
      %s84 = sphi 0, %s82
      %s85 = sphi 0, %s84
      %s99 = sphi 0, %s85
      %s103 = sphi 0, %s103
      %s105 = sphi 0, %s103
      %s106 = sphi 0, %s105
      %s120 = sphi 0, %s106
      %s124 = sphi 0, %s124
      %s126 = sphi 0, %s124
      %s127 = sphi 0, %s126
      %s141 = sphi 0, %s127
      %s145 = sphi 0, %s145
      %s147 = sphi 0, %s145
      %s148 = sphi 0, %s147
      %s162 = sphi 0, %s148
      %s168 = sphi 0, %s170
      %s171 = sphi 0, %s168
      %s172 = sphi 0, %s171
      %s188 = sphi 0, %s172
    $region4: #{tpu_custom_call.1} parent=1 // loop_header_branch
      %25 = sbr.rel (%p23) target = $region8
    $region5: #{tpu_custom_call.1} parent=1 // loop_body
      %s27 = ssub.s32 %s22, 1
      %s28 = ssub.s32 %s22, 2
      %s29 = sadd.s32 %s22, 1
      %s30 = ssub.s32 %s22, %s29
      %p31 = scmp.eq.s32.totalorder %s30, 0
      %s33 = sadd.s32 %s32, 1
      %s34 = scalar_select %p31, %s32, %s33
      %p37 = pneg %p31
      %p38 = scmp.eq.s32.totalorder %s22, 1
      %p39 = por %p37, %p38
      %p40 = scmp.ne.s32.totalorder %s32, %s35
      %p41 = scmp.eq.s32.totalorder %s22, 0
      %p42 = por %p40, %p41
      %p43 = scmp.ne.s32.totalorder %s32, %s35
      %p44 = scmp.eq.s32.totalorder %s27, 1
      %p45 = por %p43, %p44
      %p46 = scmp.ne.s32.totalorder %s35, %s36
      %p47 = scmp.eq.s32.totalorder %s27, 0
      %p48 = por %p46, %p47
      %p49 = scmp.ne.s32.totalorder %s35, %s36
      %p50 = scmp.eq.s32.totalorder %s28, 1
      %p51 = por %p49, %p50
      %p53 = scmp.ne.s32.totalorder %s36, %s52
      %p54 = scmp.eq.s32.totalorder %s28, 0
      %p55 = por %p53, %p54
      %s56 = ssub.s32 %s22, %s29
      %p57 = scmp.eq.s32.totalorder %s56, 0
      %s59 = sadd.s32 %s58, 1
      %s60 = scalar_select %p57, %s58, %s59
      %p63 = pneg %p57
      %p64 = scmp.eq.s32.totalorder %s22, 1
      %p65 = por %p63, %p64
      %p66 = scmp.ne.s32.totalorder %s58, %s61
      %p67 = scmp.eq.s32.totalorder %s22, 0
      %p68 = por %p66, %p67
      %p69 = scmp.ne.s32.totalorder %s58, %s61
      %p70 = scmp.eq.s32.totalorder %s27, 1
      %p71 = por %p69, %p70
      %p72 = scmp.ne.s32.totalorder %s61, %s62
      %p73 = scmp.eq.s32.totalorder %s27, 0
      %p74 = por %p72, %p73
      %p75 = scmp.ne.s32.totalorder %s61, %s62
      %p76 = scmp.eq.s32.totalorder %s28, 1
      %p77 = por %p75, %p76
      %p79 = scmp.ne.s32.totalorder %s62, %s78
      %p80 = scmp.eq.s32.totalorder %s28, 0
      %p81 = por %p79, %p80
      %s83 = sadd.s32 %s82, 1
      %p86 = scmp.eq.s32.totalorder %s22, 1
      %p87 = scmp.ne.s32.totalorder %s82, %s84
      %p88 = scmp.eq.s32.totalorder %s22, 0
      %p89 = por %p87, %p88
      %p90 = scmp.ne.s32.totalorder %s82, %s84
      %p91 = scmp.eq.s32.totalorder %s27, 1
      %p92 = por %p90, %p91
      %p93 = scmp.ne.s32.totalorder %s84, %s85
      %p94 = scmp.eq.s32.totalorder %s27, 0
      %p95 = por %p93, %p94
      %p96 = scmp.ne.s32.totalorder %s84, %s85
      %p97 = scmp.eq.s32.totalorder %s28, 1
      %p98 = por %p96, %p97
      %p100 = scmp.ne.s32.totalorder %s85, %s99
      %p101 = scmp.eq.s32.totalorder %s28, 0
      %p102 = por %p100, %p101
      %s104 = sadd.s32 %s103, 1
      %p107 = scmp.eq.s32.totalorder %s22, 1
      %p108 = scmp.ne.s32.totalorder %s103, %s105
      %p109 = scmp.eq.s32.totalorder %s22, 0
      %p110 = por %p108, %p109
      %p111 = scmp.ne.s32.totalorder %s103, %s105
      %p112 = scmp.eq.s32.totalorder %s27, 1
      %p113 = por %p111, %p112
      %p114 = scmp.ne.s32.totalorder %s105, %s106
      %p115 = scmp.eq.s32.totalorder %s27, 0
      %p116 = por %p114, %p115
      %p117 = scmp.ne.s32.totalorder %s105, %s106
      %p118 = scmp.eq.s32.totalorder %s28, 1
      %p119 = por %p117, %p118
      %p121 = scmp.ne.s32.totalorder %s106, %s120
      %p122 = scmp.eq.s32.totalorder %s28, 0
      %p123 = por %p121, %p122
      %s125 = sadd.s32 %s124, 1
      %p128 = scmp.eq.s32.totalorder %s22, 1
      %p129 = scmp.ne.s32.totalorder %s124, %s126
      %p130 = scmp.eq.s32.totalorder %s22, 0
      %p131 = por %p129, %p130
      %p132 = scmp.ne.s32.totalorder %s124, %s126
      %p133 = scmp.eq.s32.totalorder %s27, 1
      %p134 = por %p132, %p133
      %p135 = scmp.ne.s32.totalorder %s126, %s127
      %p136 = scmp.eq.s32.totalorder %s27, 0
      %p137 = por %p135, %p136
      %p138 = scmp.ne.s32.totalorder %s126, %s127
      %p139 = scmp.eq.s32.totalorder %s28, 1
      %p140 = por %p138, %p139
      %p142 = scmp.ne.s32.totalorder %s127, %s141
      %p143 = scmp.eq.s32.totalorder %s28, 0
      %p144 = por %p142, %p143
      %s146 = sadd.s32 %s145, 1
      %p149 = scmp.eq.s32.totalorder %s22, 1
      %p150 = scmp.ne.s32.totalorder %s145, %s147
      %p151 = scmp.eq.s32.totalorder %s22, 0
      %p152 = por %p150, %p151
      %p153 = scmp.ne.s32.totalorder %s145, %s147
      %p154 = scmp.eq.s32.totalorder %s27, 1
      %p155 = por %p153, %p154
      %p156 = scmp.ne.s32.totalorder %s147, %s148
      %p157 = scmp.eq.s32.totalorder %s27, 0
      %p158 = por %p156, %p157
      %p159 = scmp.ne.s32.totalorder %s147, %s148
      %p160 = scmp.eq.s32.totalorder %s28, 1
      %p161 = por %p159, %p160
      %p163 = scmp.ne.s32.totalorder %s148, %s162
      %p164 = scmp.eq.s32.totalorder %s28, 0
      %p165 = por %p163, %p164
      %s166 = ssub.s32 %s22, %s29
      %p167 = scmp.eq.s32.totalorder %s166, 0
      %s169 = sadd.s32 %s168, 1
      %s170 = scalar_select %p167, %s168, %s169
      %p173 = pneg %p167
      %p174 = scmp.eq.s32.totalorder %s22, 1
      %p175 = por %p173, %p174
      %p176 = scmp.ne.s32.totalorder %s168, %s171
      %p177 = scmp.eq.s32.totalorder %s22, 0
      %p178 = por %p176, %p177
      %p179 = scmp.ne.s32.totalorder %s168, %s171
      %p180 = scmp.eq.s32.totalorder %s27, 1
      %p181 = por %p179, %p180
      %p182 = scmp.ne.s32.totalorder %s171, %s172
      %p183 = scmp.eq.s32.totalorder %s27, 0
      %p184 = por %p182, %p183
      %p185 = scmp.ne.s32.totalorder %s171, %s172
      %p186 = scmp.eq.s32.totalorder %s28, 1
      %p187 = por %p185, %p186
      %p189 = scmp.ne.s32.totalorder %s172, %s188
      %p190 = scmp.eq.s32.totalorder %s28, 0
      %p191 = por %p189, %p190
      %p192 = scmp.le.s32.totalorder 1, %s22
      %p193 = scmp.lt.s32.totalorder %s22, 3
      %p194 = pnand %p192, %p193
      %p195 = pneg %p194
      // Predicated region
      $region9: #{tpu_custom_call.1} parent=5 // pred_check
        _
      $region10: #{tpu_custom_call.1} parent=5 // pred_check_branch
        %197 = sbr.rel (%p194) target = $region12
      $region11: #{tpu_custom_call.1} parent=5 // pred_region
        %s198 = ssub.s32 %s22, 1
        // Predicated region
        $region13: #{tpu_custom_call.1} parent=11 // pred_check
          %p199 = pneg %p95
        $region14: #{tpu_custom_call.1} parent=11 // pred_check_branch
          %201 = sbr.rel (%p199) target = $region16
        $region15: #{tpu_custom_call.1} parent=11 // pred_region
          %203 = vsyncadd [#allocation6], 0
          %s204 = sshll.u32 %s2, 4
          %s205 = int_to_ptr.hbm [resolvable:$true] %s204
          %s206 = sshll.u32 [#allocation7], 4
          %s207 = int_to_ptr.vmem [resolvable:$true] %s206
          %212 = dma.hbm_to_vmem [thread:$0]  %s205, 6144, %s207, [#allocation6], 384, 384, 24
        $region16: #{tpu_custom_call.1} parent=11 // pred_fallthru
          _
        // Predicated region
        $region17: #{tpu_custom_call.1} parent=11 // pred_check
          %p213 = pneg %p116
        $region18: #{tpu_custom_call.1} parent=11 // pred_check_branch
          %215 = sbr.rel (%p213) target = $region20
        $region19: #{tpu_custom_call.1} parent=11 // pred_region
          %217 = vsyncadd [#allocation9], 0
          %s218 = sshll.u32 %s3, 4
          %s219 = int_to_ptr.hbm [resolvable:$true] %s218
          %s220 = sshll.u32 [#allocation8], 4
          %s221 = int_to_ptr.vmem [resolvable:$true] %s220
          %226 = dma.hbm_to_vmem [thread:$0]  %s219, 6144, %s221, [#allocation9], 384, 384, 24
        $region20: #{tpu_custom_call.1} parent=11 // pred_fallthru
          _
        // Predicated region
        $region21: #{tpu_custom_call.1} parent=11 // pred_check
          %p227 = pneg %p137
        $region22: #{tpu_custom_call.1} parent=11 // pred_check_branch
          %229 = sbr.rel (%p227) target = $region24
        $region23: #{tpu_custom_call.1} parent=11 // pred_region
          _
        $region24: #{tpu_custom_call.1} parent=11 // pred_fallthru
          _
        // Predicated region
        $region25: #{tpu_custom_call.1} parent=11 // pred_check
          %p230 = pneg %p158
        $region26: #{tpu_custom_call.1} parent=11 // pred_check_branch
          %232 = sbr.rel (%p230) target = $region28
        $region27: #{tpu_custom_call.1} parent=11 // pred_region
          _
        $region28: #{tpu_custom_call.1} parent=11 // pred_fallthru
          _
      $region12: #{tpu_custom_call.1} parent=5 // pred_fallthru
        _
      %p233 = scmp.lt.s32.totalorder %s22, 2
      // Predicated region
      $region29: #{tpu_custom_call.1} parent=5 // pred_check
        %p234 = pneg %p233
      $region30: #{tpu_custom_call.1} parent=5 // pred_check_branch
        %236 = sbr.rel (%p234) target = $region32
      $region31: #{tpu_custom_call.1} parent=5 // pred_region
        // Predicated region
        $region33: #{tpu_custom_call.1} parent=31 // pred_check
          %p237 = pneg %p42
        $region34: #{tpu_custom_call.1} parent=31 // pred_check_branch
          %239 = sbr.rel (%p237) target = $region36
        $region35: #{tpu_custom_call.1} parent=31 // pred_region
          %s240 = sand.u32 %s32, 1
          %s241 = scalar_lea.sflag [#allocation3], %s240
          %s242 = sand.u32 %s32, 1
          %s243 = smul.addr %s242, 128
          %s244 = scalar_lea.vmem [#allocation2], %s243
          %s245 = smul.u32 16, %s22
          %s246 = ssub.s32 18, %s245
          %p247 = scmp.lt.s32.totalorder %s246, 16
          %s248 = scalar_select %p247, %s246, 16
          %s249 = smul.u32 8, %s248
          %s250 = ssub.s32 128, %s249
          %s251 = sshll.u32 %s250, 4
          %252 = vsyncadd %s241, %s251
          %p253 = scmp.ne.s32.totalorder 0, %s249
          %s254 = smul.addr %s245, 8
          %s255 = scalar_lea.hbm %s0, %s254
          %s256 = smul.u32 8, %s248
          %s257 = sshll.u32 %s255, 4
          %s258 = int_to_ptr.hbm [resolvable:$true] %s257
          %s259 = sshll.u32 %s244, 4
          %s260 = int_to_ptr.vmem [resolvable:$true] %s259
          %s261 = sshll.u32 %s256, 4
          %265 = dma.hbm_to_vmem [thread:$0]  (%p253), %s258, %s261, %s260, %s241, 128, 128, 8
        $region36: #{tpu_custom_call.1} parent=31 // pred_fallthru
          _
        // Predicated region
        $region37: #{tpu_custom_call.1} parent=31 // pred_check
          %p266 = pneg %p68
        $region38: #{tpu_custom_call.1} parent=31 // pred_check_branch
          %268 = sbr.rel (%p266) target = $region40
        $region39: #{tpu_custom_call.1} parent=31 // pred_region
          %s269 = sand.u32 %s22, 1
          %s270 = scalar_lea.sflag [#allocation6], %s269
          %s271 = sand.u32 %s58, 1
          %s272 = smul.addr %s271, 128
          %s273 = scalar_lea.vmem [#allocation5], %s272
          %s274 = smul.u32 16, %s22
          %s275 = ssub.s32 18, %s274
          %p276 = scmp.lt.s32.totalorder %s275, 16
          %s277 = scalar_select %p276, %s275, 16
          %s278 = smul.u32 8, %s277
          %s279 = ssub.s32 128, %s278
          %s280 = sshll.u32 %s279, 4
          %281 = vsyncadd %s270, %s280
          %p282 = scmp.ne.s32.totalorder 0, %s278
          %s283 = smul.addr %s274, 8
          %s284 = scalar_lea.hbm %s1, %s283
          %s285 = smul.u32 8, %s277
          %s286 = sshll.u32 %s284, 4
          %s287 = int_to_ptr.hbm [resolvable:$true] %s286
          %s288 = sshll.u32 %s273, 4
          %s289 = int_to_ptr.vmem [resolvable:$true] %s288
          %s290 = sshll.u32 %s285, 4
          %294 = dma.hbm_to_vmem [thread:$0]  (%p282), %s287, %s290, %s289, %s270, 128, 128, 8
        $region40: #{tpu_custom_call.1} parent=31 // pred_fallthru
          _
      $region32: #{tpu_custom_call.1} parent=5 // pred_fallthru
        _
      %p295 = scmp.le.s32.totalorder 1, %s22
      %p296 = scmp.lt.s32.totalorder %s22, 3
      %p297 = pnand %p295, %p296
      %p298 = pneg %p297
      // Predicated region
      $region41: #{tpu_custom_call.1} parent=5 // pred_check
        _
      $region42: #{tpu_custom_call.1} parent=5 // pred_check_branch
        %300 = sbr.rel (%p297) target = $region44
      $region43: #{tpu_custom_call.1} parent=5 // pred_region
        %s301 = ssub.s32 %s22, 1
        %s302 = sand.u32 %s35, 1
        %s303 = scalar_lea.sflag [#allocation3], %s302
        %s304 = sand.u32 %s35, 1
        %s305 = smul.addr %s304, 128
        %s306 = scalar_lea.vmem [#allocation2], %s305
        // Predicated region
        $region45: #{tpu_custom_call.1} parent=43 // pred_check
          %p307 = pneg %p48
        $region46: #{tpu_custom_call.1} parent=43 // pred_check_branch
          %309 = sbr.rel (%p307) target = $region48
        $region47: #{tpu_custom_call.1} parent=43 // pred_region
          %311 = dma.done %s303, 2048
        $region48: #{tpu_custom_call.1} parent=43 // pred_fallthru
          _
        %s312 = sand.u32 %s27, 1
        %s313 = scalar_lea.sflag [#allocation6], %s312
        %s314 = sand.u32 %s61, 1
        %s315 = smul.addr %s314, 128
        %s316 = scalar_lea.vmem [#allocation5], %s315
        // Predicated region
        $region49: #{tpu_custom_call.1} parent=43 // pred_check
          %p317 = pneg %p74
        $region50: #{tpu_custom_call.1} parent=43 // pred_check_branch
          %319 = sbr.rel (%p317) target = $region52
        $region51: #{tpu_custom_call.1} parent=43 // pred_region
          %321 = dma.done %s313, 2048
        $region52: #{tpu_custom_call.1} parent=43 // pred_fallthru
          _
        // Predicated region
        $region53: #{tpu_custom_call.1} parent=43 // pred_check
          %p322 = pneg %p95
        $region54: #{tpu_custom_call.1} parent=43 // pred_check_branch
          %324 = sbr.rel (%p322) target = $region56
        $region55: #{tpu_custom_call.1} parent=43 // pred_region
          %326 = dma.done [#allocation6], 6144
        $region56: #{tpu_custom_call.1} parent=43 // pred_fallthru
          _
        // Predicated region
        $region57: #{tpu_custom_call.1} parent=43 // pred_check
          %p327 = pneg %p116
        $region58: #{tpu_custom_call.1} parent=43 // pred_check_branch
          %329 = sbr.rel (%p327) target = $region60
        $region59: #{tpu_custom_call.1} parent=43 // pred_region
          %331 = dma.done [#allocation9], 6144
        $region60: #{tpu_custom_call.1} parent=43 // pred_fallthru
          _
        %s332 = sand.u32 %s35, 1
        %s333 = scalar_lea.sflag [#allocation3], %s332
        %s334 = sand.u32 %s35, 1
        %s335 = smul.addr %s334, 128
        %s336 = scalar_lea.vmem [#allocation2], %s335
        %p337 = pneg %p48
        %p338 = pneg %p45
        %s339 = sand.u32 %s27, 1
        %s340 = scalar_lea.sflag [#allocation6], %s339
        %s341 = sand.u32 %s61, 1
        %s342 = smul.addr %s341, 128
        %s343 = scalar_lea.vmem [#allocation5], %s342
        %p344 = pneg %p74
        %p345 = pneg %p71
        %p346 = pneg %p95
        %p347 = pneg %p92
        %p348 = pneg %p116
        %p349 = pneg %p113
        %p350 = pneg %p137
        %p351 = pneg %p134
        %p352 = pneg %p158
        %p353 = pneg %p155
        %p354 = pneg %p184
        %p355 = pneg %p181
        %s356 = sand.u32 %s171, 1
        %s357 = scalar_lea.sflag [#allocation4], %s356
        %s358 = sand.u32 %s171, 1
        %s359 = smul.addr %s358, 128
        %s360 = scalar_lea.vmem [#allocation10], %s359
        %s361 = smul.u32 16, %s27
        %s362 = ssub.s32 18, %s361
        %p363 = scmp.lt.s32.totalorder %s362, 16
        %s364 = scalar_select %p363, %s362, 16
        %s365 = smul.u32 8, %s364
        %s366 = smul.u32 16, %s27
        %s367 = ssub.s32 18, %s366
        %p368 = scmp.lt.s32.totalorder %s367, 16
        %s369 = scalar_select %p368, %s367, 16
        %s370 = smul.u32 8, %s369
        %s371 = smul.u32 16, %s27
        %s372 = ssub.s32 18, %s371
        %p373 = scmp.lt.s32.totalorder %s372, 16
        %s374 = scalar_select %p373, %s372, 16
        %s375 = smul.u32 8, %s374
        %v376 = vld [vmem:[%s306] sm:$0xff]
        %v377 = vld [vmem:[%s306 + $0x8] sm:$0xff]
        %v378 = vld [vmem:[%s306 + $0x10] sm:$0xff]
        %v379 = vld [vmem:[%s306 + $0x18] sm:$0xff]
        %v380 = vld [vmem:[%s306 + $0x20] sm:$0xff]
        %v381 = vld [vmem:[%s306 + $0x28] sm:$0xff]
        %v382 = vld [vmem:[%s306 + $0x30] sm:$0xff]
        %v383 = vld [vmem:[%s306 + $0x38] sm:$0xff]
        %v384 = vld [vmem:[%s306 + $0x40] sm:$0xff]
        %v385 = vld [vmem:[%s306 + $0x48] sm:$0xff]
        %v386 = vld [vmem:[%s306 + $0x50] sm:$0xff]
        %v387 = vld [vmem:[%s306 + $0x58] sm:$0xff]
        %v388 = vld [vmem:[%s306 + $0x60] sm:$0xff]
        %v389 = vld [vmem:[%s306 + $0x68] sm:$0xff]
        %v390 = vld [vmem:[%s306 + $0x70] sm:$0xff]
        %v391 = vld [vmem:[%s306 + $0x78] sm:$0xff]
        %v392 = vld [vmem:[%s316] sm:$0xff]
        %v393 = vld [vmem:[%s316 + $0x8] sm:$0xff]
        %v394 = vld [vmem:[%s316 + $0x10] sm:$0xff]
        %v395 = vld [vmem:[%s316 + $0x18] sm:$0xff]
        %v396 = vld [vmem:[%s316 + $0x20] sm:$0xff]
        %v397 = vld [vmem:[%s316 + $0x28] sm:$0xff]
        %v398 = vld [vmem:[%s316 + $0x30] sm:$0xff]
        %v399 = vld [vmem:[%s316 + $0x38] sm:$0xff]
        %v400 = vld [vmem:[%s316 + $0x40] sm:$0xff]
        %v401 = vld [vmem:[%s316 + $0x48] sm:$0xff]
        %v402 = vld [vmem:[%s316 + $0x50] sm:$0xff]
        %v403 = vld [vmem:[%s316 + $0x58] sm:$0xff]
        %v404 = vld [vmem:[%s316 + $0x60] sm:$0xff]
        %v405 = vld [vmem:[%s316 + $0x68] sm:$0xff]
        %v406 = vld [vmem:[%s316 + $0x70] sm:$0xff]
        %v407 = vld [vmem:[%s316 + $0x78] sm:$0xff]
        %v408 = vld [vmem:[#allocation7] sm:$0xff]
        %v409 = vld [vmem:[#allocation7 + $0x8] sm:$0xff]
        %v410 = vld [vmem:[#allocation7 + $0x10] sm:$0xff]
        %v411 = vld [vmem:[#allocation7 + $0x18] sm:$0xff]
        %v412 = vld [vmem:[#allocation7 + $0x20] sm:$0xff]
        %v413 = vld [vmem:[#allocation7 + $0x28] sm:$0xff]
        %v414 = vld [vmem:[#allocation7 + $0x30] sm:$0xff]
        %v415 = vld [vmem:[#allocation7 + $0x38] sm:$0xff]
        %v416 = vld [vmem:[#allocation7 + $0x40] sm:$0xff]
        %v417 = vld [vmem:[#allocation7 + $0x48] sm:$0xff]
        %v418 = vld [vmem:[#allocation7 + $0x50] sm:$0xff]
        %v419 = vld [vmem:[#allocation7 + $0x58] sm:$0xff]
        %v420 = vld [vmem:[#allocation7 + $0x60] sm:$0xff]
        %v421 = vld [vmem:[#allocation7 + $0x68] sm:$0xff]
        %v422 = vld [vmem:[#allocation7 + $0x70] sm:$0xff]
        %v423 = vld [vmem:[#allocation7 + $0x78] sm:$0xff]
        %v424 = vld [vmem:[#allocation7 + $0x80] sm:$0xff]
        %v425 = vld [vmem:[#allocation7 + $0x88] sm:$0xff]
        %v426 = vld [vmem:[#allocation7 + $0x90] sm:$0xff]
        %v427 = vld [vmem:[#allocation7 + $0x98] sm:$0xff]
        %v428 = vld [vmem:[#allocation7 + $0xa0] sm:$0xff]
        %v429 = vld [vmem:[#allocation7 + $0xa8] sm:$0xff]
        %v430 = vld [vmem:[#allocation7 + $0xb0] sm:$0xff]
        %v431 = vld [vmem:[#allocation7 + $0xb8] sm:$0xff]
        %v432 = vld [vmem:[#allocation7 + $0xc0] sm:$0xff]
        %v433 = vld [vmem:[#allocation7 + $0xc8] sm:$0xff]
        %v434 = vld [vmem:[#allocation7 + $0xd0] sm:$0xff]
        %v435 = vld [vmem:[#allocation7 + $0xd8] sm:$0xff]
        %v436 = vld [vmem:[#allocation7 + $0xe0] sm:$0xff]
        %v437 = vld [vmem:[#allocation7 + $0xe8] sm:$0xff]
        %v438 = vld [vmem:[#allocation7 + $0xf0] sm:$0xff]
        %v439 = vld [vmem:[#allocation7 + $0xf8] sm:$0xff]
        %v440 = vld [vmem:[#allocation7 + $0x100] sm:$0xff]
        %v441 = vld [vmem:[#allocation7 + $0x108] sm:$0xff]
        %v442 = vld [vmem:[#allocation7 + $0x110] sm:$0xff]
        %v443 = vld [vmem:[#allocation7 + $0x118] sm:$0xff]
        %v444 = vld [vmem:[#allocation7 + $0x120] sm:$0xff]
        %v445 = vld [vmem:[#allocation7 + $0x128] sm:$0xff]
        %v446 = vld [vmem:[#allocation7 + $0x130] sm:$0xff]
        %v447 = vld [vmem:[#allocation7 + $0x138] sm:$0xff]
        %v448 = vld [vmem:[#allocation7 + $0x140] sm:$0xff]
        %v449 = vld [vmem:[#allocation7 + $0x148] sm:$0xff]
        %v450 = vld [vmem:[#allocation7 + $0x150] sm:$0xff]
        %v451 = vld [vmem:[#allocation7 + $0x158] sm:$0xff]
        %v452 = vld [vmem:[#allocation7 + $0x160] sm:$0xff]
        %v453 = vld [vmem:[#allocation7 + $0x168] sm:$0xff]
        %v454 = vld [vmem:[#allocation7 + $0x170] sm:$0xff]
        %v455 = vld [vmem:[#allocation7 + $0x178] sm:$0xff]
        %v456 = vld [vmem:[%s4] sm:$0x7]
        %v458 = vperm.slane %v456, 0
        %v459 = vperm.slane %v456, 1
        %v460 = vperm.slane %v456, 2
        %464 = vmatpush.msra.mxu0 %v453
        %465 = vmatpush.msra.mxu0 %v450
        %466 = vmatpush.msra.mxu0 %v447
        %467 = vmatpush.msra.mxu0 %v444
        %468 = vmatpush.msra.mxu0 %v441
        %469 = vmatpush.msra.mxu0 %v438
        %470 = vmatpush.msra.mxu0 %v435
        %471 = vmatpush.msra.mxu0 %v432
        %472 = vmatpush.msra.mxu0 %v429
        %473 = vmatpush.msra.mxu0 %v426
        %474 = vmatpush.msra.mxu0 %v423
        %475 = vmatpush.msra.mxu0 %v420
        %476 = vmatpush.msra.mxu0 %v417
        %477 = vmatpush.msra.mxu0 %v414
        %478 = vmatpush.msra.mxu0 %v411
        %479 = vmatpush.msra.mxu0 %v408
        %480 = vmatmul.f32.gmra.mxu0 %v392
        %v481 = vpop.f32.mrf.mxu0
        %v482 = vadd.f32 %v458, %v481
        %483 = vmatmul.f32.gmra.mxu0 %v393
        %v484 = vpop.f32.mrf.mxu0
        %v485 = vadd.f32 %v458, %v484
        %486 = vmatmul.f32.gmra.mxu0 %v394
        %v487 = vpop.f32.mrf.mxu0
        %v488 = vadd.f32 %v458, %v487
        %489 = vmatmul.f32.gmra.mxu0 %v395
        %v490 = vpop.f32.mrf.mxu0
        %v491 = vadd.f32 %v458, %v490
        %492 = vmatmul.f32.gmra.mxu0 %v396
        %v493 = vpop.f32.mrf.mxu0
        %v494 = vadd.f32 %v458, %v493
        %495 = vmatmul.f32.gmra.mxu0 %v397
        %v496 = vpop.f32.mrf.mxu0
        %v497 = vadd.f32 %v458, %v496
        %498 = vmatmul.f32.gmra.mxu0 %v398
        %v499 = vpop.f32.mrf.mxu0
        %v500 = vadd.f32 %v458, %v499
        %501 = vmatmul.f32.gmra.mxu0 %v399
        %v502 = vpop.f32.mrf.mxu0
        %v503 = vadd.f32 %v458, %v502
        %504 = vmatmul.f32.gmra.mxu0 %v400
        %v505 = vpop.f32.mrf.mxu0
        %v506 = vadd.f32 %v458, %v505
        %507 = vmatmul.f32.gmra.mxu0 %v401
        %v508 = vpop.f32.mrf.mxu0
        %v509 = vadd.f32 %v458, %v508
        %510 = vmatmul.f32.gmra.mxu0 %v402
        %v511 = vpop.f32.mrf.mxu0
        %v512 = vadd.f32 %v458, %v511
        %513 = vmatmul.f32.gmra.mxu0 %v403
        %v514 = vpop.f32.mrf.mxu0
        %v515 = vadd.f32 %v458, %v514
        %516 = vmatmul.f32.gmra.mxu0 %v404
        %v517 = vpop.f32.mrf.mxu0
        %v518 = vadd.f32 %v458, %v517
        %519 = vmatmul.f32.gmra.mxu0 %v405
        %v520 = vpop.f32.mrf.mxu0
        %v521 = vadd.f32 %v458, %v520
        %522 = vmatmul.f32.gmra.mxu0 %v406
        %v523 = vpop.f32.mrf.mxu0
        %v524 = vadd.f32 %v458, %v523
        %525 = vmatmul.f32.gmra.mxu0 %v407
        %v526 = vpop.f32.mrf.mxu0
        %v527 = vadd.f32 %v458, %v526
        %528 = vdwg.mxu0
        %529 = vmatpush.msra.mxu0 %v454
        %530 = vmatpush.msra.mxu0 %v451
        %531 = vmatpush.msra.mxu0 %v448
        %532 = vmatpush.msra.mxu0 %v445
        %533 = vmatpush.msra.mxu0 %v442
        %534 = vmatpush.msra.mxu0 %v439
        %535 = vmatpush.msra.mxu0 %v436
        %536 = vmatpush.msra.mxu0 %v433
        %537 = vmatpush.msra.mxu0 %v430
        %538 = vmatpush.msra.mxu0 %v427
        %539 = vmatpush.msra.mxu0 %v424
        %540 = vmatpush.msra.mxu0 %v421
        %541 = vmatpush.msra.mxu0 %v418
        %542 = vmatpush.msra.mxu0 %v415
        %543 = vmatpush.msra.mxu0 %v412
        %544 = vmatpush.msra.mxu0 %v409
        %545 = vmatmul.f32.gmra.mxu0 %v392
        %v546 = vpop.f32.mrf.mxu0
        %v547 = vadd.f32 %v459, %v546
        %548 = vmatmul.f32.gmra.mxu0 %v393
        %v549 = vpop.f32.mrf.mxu0
        %v550 = vadd.f32 %v459, %v549
        %551 = vmatmul.f32.gmra.mxu0 %v394
        %v552 = vpop.f32.mrf.mxu0
        %v553 = vadd.f32 %v459, %v552
        %554 = vmatmul.f32.gmra.mxu0 %v395
        %v555 = vpop.f32.mrf.mxu0
        %v556 = vadd.f32 %v459, %v555
        %557 = vmatmul.f32.gmra.mxu0 %v396
        %v558 = vpop.f32.mrf.mxu0
        %v559 = vadd.f32 %v459, %v558
        %560 = vmatmul.f32.gmra.mxu0 %v397
        %v561 = vpop.f32.mrf.mxu0
        %v562 = vadd.f32 %v459, %v561
        %563 = vmatmul.f32.gmra.mxu0 %v398
        %v564 = vpop.f32.mrf.mxu0
        %v565 = vadd.f32 %v459, %v564
        %566 = vmatmul.f32.gmra.mxu0 %v399
        %v567 = vpop.f32.mrf.mxu0
        %v568 = vadd.f32 %v459, %v567
        %569 = vmatmul.f32.gmra.mxu0 %v400
        %v570 = vpop.f32.mrf.mxu0
        %v571 = vadd.f32 %v459, %v570
        %572 = vmatmul.f32.gmra.mxu0 %v401
        %v573 = vpop.f32.mrf.mxu0
        %v574 = vadd.f32 %v459, %v573
        %575 = vmatmul.f32.gmra.mxu0 %v402
        %v576 = vpop.f32.mrf.mxu0
        %v577 = vadd.f32 %v459, %v576
        %578 = vmatmul.f32.gmra.mxu0 %v403
        %v579 = vpop.f32.mrf.mxu0
        %v580 = vadd.f32 %v459, %v579
        %581 = vmatmul.f32.gmra.mxu0 %v404
        %v582 = vpop.f32.mrf.mxu0
        %v583 = vadd.f32 %v459, %v582
        %584 = vmatmul.f32.gmra.mxu0 %v405
        %v585 = vpop.f32.mrf.mxu0
        %v586 = vadd.f32 %v459, %v585
        %587 = vmatmul.f32.gmra.mxu0 %v406
        %v588 = vpop.f32.mrf.mxu0
        %v589 = vadd.f32 %v459, %v588
        %590 = vmatmul.f32.gmra.mxu0 %v407
        %v591 = vpop.f32.mrf.mxu0
        %v592 = vadd.f32 %v459, %v591
        %593 = vdwg.mxu0
        %594 = vmatpush.msra.mxu0 %v455
        %595 = vmatpush.msra.mxu0 %v452
        %596 = vmatpush.msra.mxu0 %v449
        %597 = vmatpush.msra.mxu0 %v446
        %598 = vmatpush.msra.mxu0 %v443
        %599 = vmatpush.msra.mxu0 %v440
        %600 = vmatpush.msra.mxu0 %v437
        %601 = vmatpush.msra.mxu0 %v434
        %602 = vmatpush.msra.mxu0 %v431
        %603 = vmatpush.msra.mxu0 %v428
        %604 = vmatpush.msra.mxu0 %v425
        %605 = vmatpush.msra.mxu0 %v422
        %606 = vmatpush.msra.mxu0 %v419
        %607 = vmatpush.msra.mxu0 %v416
        %608 = vmatpush.msra.mxu0 %v413
        %609 = vmatpush.msra.mxu0 %v410
        %610 = vmatmul.f32.gmra.mxu0 %v392
        %v611 = vpop.f32.mrf.mxu0
        %v612 = vadd.f32 %v460, %v611
        %613 = vmatmul.f32.gmra.mxu0 %v393
        %v614 = vpop.f32.mrf.mxu0
        %v615 = vadd.f32 %v460, %v614
        %616 = vmatmul.f32.gmra.mxu0 %v394
        %v617 = vpop.f32.mrf.mxu0
        %v618 = vadd.f32 %v460, %v617
        %619 = vmatmul.f32.gmra.mxu0 %v395
        %v620 = vpop.f32.mrf.mxu0
        %v621 = vadd.f32 %v460, %v620
        %622 = vmatmul.f32.gmra.mxu0 %v396
        %v623 = vpop.f32.mrf.mxu0
        %v624 = vadd.f32 %v460, %v623
        %625 = vmatmul.f32.gmra.mxu0 %v397
        %v626 = vpop.f32.mrf.mxu0
        %v627 = vadd.f32 %v460, %v626
        %628 = vmatmul.f32.gmra.mxu0 %v398
        %v629 = vpop.f32.mrf.mxu0
        %v630 = vadd.f32 %v460, %v629
        %631 = vmatmul.f32.gmra.mxu0 %v399
        %v632 = vpop.f32.mrf.mxu0
        %v633 = vadd.f32 %v460, %v632
        %634 = vmatmul.f32.gmra.mxu0 %v400
        %v635 = vpop.f32.mrf.mxu0
        %v636 = vadd.f32 %v460, %v635
        %637 = vmatmul.f32.gmra.mxu0 %v401
        %v638 = vpop.f32.mrf.mxu0
        %v639 = vadd.f32 %v460, %v638
        %640 = vmatmul.f32.gmra.mxu0 %v402
        %v641 = vpop.f32.mrf.mxu0
        %v642 = vadd.f32 %v460, %v641
        %643 = vmatmul.f32.gmra.mxu0 %v403
        %v644 = vpop.f32.mrf.mxu0
        %v645 = vadd.f32 %v460, %v644
        %646 = vmatmul.f32.gmra.mxu0 %v404
        %v647 = vpop.f32.mrf.mxu0
        %v648 = vadd.f32 %v460, %v647
        %649 = vmatmul.f32.gmra.mxu0 %v405
        %v650 = vpop.f32.mrf.mxu0
        %v651 = vadd.f32 %v460, %v650
        %652 = vmatmul.f32.gmra.mxu0 %v406
        %v653 = vpop.f32.mrf.mxu0
        %v654 = vadd.f32 %v460, %v653
        %655 = vmatmul.f32.gmra.mxu0 %v407
        %v656 = vpop.f32.mrf.mxu0
        %v657 = vadd.f32 %v460, %v656
        %658 = vdwg.mxu0
        %v659 = vld [vmem:[#allocation8] sm:$0xff]
        %v660 = vld [vmem:[#allocation8 + $0x8] sm:$0xff]
        %v661 = vld [vmem:[#allocation8 + $0x10] sm:$0xff]
        %v662 = vld [vmem:[#allocation8 + $0x18] sm:$0xff]
        %v663 = vld [vmem:[#allocation8 + $0x20] sm:$0xff]
        %v664 = vld [vmem:[#allocation8 + $0x28] sm:$0xff]
        %v665 = vld [vmem:[#allocation8 + $0x30] sm:$0xff]
        %v666 = vld [vmem:[#allocation8 + $0x38] sm:$0xff]
        %v667 = vld [vmem:[#allocation8 + $0x40] sm:$0xff]
        %v668 = vld [vmem:[#allocation8 + $0x48] sm:$0xff]
        %v669 = vld [vmem:[#allocation8 + $0x50] sm:$0xff]
        %v670 = vld [vmem:[#allocation8 + $0x58] sm:$0xff]
        %v671 = vld [vmem:[#allocation8 + $0x60] sm:$0xff]
        %v672 = vld [vmem:[#allocation8 + $0x68] sm:$0xff]
        %v673 = vld [vmem:[#allocation8 + $0x70] sm:$0xff]
        %v674 = vld [vmem:[#allocation8 + $0x78] sm:$0xff]
        %v675 = vld [vmem:[#allocation8 + $0x80] sm:$0xff]
        %v676 = vld [vmem:[#allocation8 + $0x88] sm:$0xff]
        %v677 = vld [vmem:[#allocation8 + $0x90] sm:$0xff]
        %v678 = vld [vmem:[#allocation8 + $0x98] sm:$0xff]
        %v679 = vld [vmem:[#allocation8 + $0xa0] sm:$0xff]
        %v680 = vld [vmem:[#allocation8 + $0xa8] sm:$0xff]
        %v681 = vld [vmem:[#allocation8 + $0xb0] sm:$0xff]
        %v682 = vld [vmem:[#allocation8 + $0xb8] sm:$0xff]
        %v683 = vld [vmem:[#allocation8 + $0xc0] sm:$0xff]
        %v684 = vld [vmem:[#allocation8 + $0xc8] sm:$0xff]
        %v685 = vld [vmem:[#allocation8 + $0xd0] sm:$0xff]
        %v686 = vld [vmem:[#allocation8 + $0xd8] sm:$0xff]
        %v687 = vld [vmem:[#allocation8 + $0xe0] sm:$0xff]
        %v688 = vld [vmem:[#allocation8 + $0xe8] sm:$0xff]
        %v689 = vld [vmem:[#allocation8 + $0xf0] sm:$0xff]
        %v690 = vld [vmem:[#allocation8 + $0xf8] sm:$0xff]
        %v691 = vld [vmem:[#allocation8 + $0x100] sm:$0xff]
        %v692 = vld [vmem:[#allocation8 + $0x108] sm:$0xff]
        %v693 = vld [vmem:[#allocation8 + $0x110] sm:$0xff]
        %v694 = vld [vmem:[#allocation8 + $0x118] sm:$0xff]
        %v695 = vld [vmem:[#allocation8 + $0x120] sm:$0xff]
        %v696 = vld [vmem:[#allocation8 + $0x128] sm:$0xff]
        %v697 = vld [vmem:[#allocation8 + $0x130] sm:$0xff]
        %v698 = vld [vmem:[#allocation8 + $0x138] sm:$0xff]
        %v699 = vld [vmem:[#allocation8 + $0x140] sm:$0xff]
        %v700 = vld [vmem:[#allocation8 + $0x148] sm:$0xff]
        %v701 = vld [vmem:[#allocation8 + $0x150] sm:$0xff]
        %v702 = vld [vmem:[#allocation8 + $0x158] sm:$0xff]
        %v703 = vld [vmem:[#allocation8 + $0x160] sm:$0xff]
        %v704 = vld [vmem:[#allocation8 + $0x168] sm:$0xff]
        %v705 = vld [vmem:[#allocation8 + $0x170] sm:$0xff]
        %v706 = vld [vmem:[#allocation8 + $0x178] sm:$0xff]
        %707 = vmatpush.msra.mxu0 %v704
        %708 = vmatpush.msra.mxu0 %v701
        %709 = vmatpush.msra.mxu0 %v698
        %710 = vmatpush.msra.mxu0 %v695
        %711 = vmatpush.msra.mxu0 %v692
        %712 = vmatpush.msra.mxu0 %v689
        %713 = vmatpush.msra.mxu0 %v686
        %714 = vmatpush.msra.mxu0 %v683
        %715 = vmatpush.msra.mxu0 %v680
        %716 = vmatpush.msra.mxu0 %v677
        %717 = vmatpush.msra.mxu0 %v674
        %718 = vmatpush.msra.mxu0 %v671
        %719 = vmatpush.msra.mxu0 %v668
        %720 = vmatpush.msra.mxu0 %v665
        %721 = vmatpush.msra.mxu0 %v662
        %722 = vmatpush.msra.mxu0 %v659
        %723 = vmatmul.f32.gmra.mxu0 %v376
        %v724 = vpop.f32.mrf.mxu0
        %v725 = vadd.f32 0.0, %v724
        %726 = vmatmul.f32.gmra.mxu0 %v377
        %v727 = vpop.f32.mrf.mxu0
        %v728 = vadd.f32 0.0, %v727
        %729 = vmatmul.f32.gmra.mxu0 %v378
        %v730 = vpop.f32.mrf.mxu0
        %v731 = vadd.f32 0.0, %v730
        %732 = vmatmul.f32.gmra.mxu0 %v379
        %v733 = vpop.f32.mrf.mxu0
        %v734 = vadd.f32 0.0, %v733
        %735 = vmatmul.f32.gmra.mxu0 %v380
        %v736 = vpop.f32.mrf.mxu0
        %v737 = vadd.f32 0.0, %v736
        %738 = vmatmul.f32.gmra.mxu0 %v381
        %v739 = vpop.f32.mrf.mxu0
        %v740 = vadd.f32 0.0, %v739
        %741 = vmatmul.f32.gmra.mxu0 %v382
        %v742 = vpop.f32.mrf.mxu0
        %v743 = vadd.f32 0.0, %v742
        %744 = vmatmul.f32.gmra.mxu0 %v383
        %v745 = vpop.f32.mrf.mxu0
        %v746 = vadd.f32 0.0, %v745
        %747 = vmatmul.f32.gmra.mxu0 %v384
        %v748 = vpop.f32.mrf.mxu0
        %v749 = vadd.f32 0.0, %v748
        %750 = vmatmul.f32.gmra.mxu0 %v385
        %v751 = vpop.f32.mrf.mxu0
        %v752 = vadd.f32 0.0, %v751
        %753 = vmatmul.f32.gmra.mxu0 %v386
        %v754 = vpop.f32.mrf.mxu0
        %v755 = vadd.f32 0.0, %v754
        %756 = vmatmul.f32.gmra.mxu0 %v387
        %v757 = vpop.f32.mrf.mxu0
        %v758 = vadd.f32 0.0, %v757
        %759 = vmatmul.f32.gmra.mxu0 %v388
        %v760 = vpop.f32.mrf.mxu0
        %v761 = vadd.f32 0.0, %v760
        %762 = vmatmul.f32.gmra.mxu0 %v389
        %v763 = vpop.f32.mrf.mxu0
        %v764 = vadd.f32 0.0, %v763
        %765 = vmatmul.f32.gmra.mxu0 %v390
        %v766 = vpop.f32.mrf.mxu0
        %v767 = vadd.f32 0.0, %v766
        %768 = vmatmul.f32.gmra.mxu0 %v391
        %v769 = vpop.f32.mrf.mxu0
        %v770 = vadd.f32 0.0, %v769
        %771 = vdwg.mxu0
        %772 = vmatpush.msra.mxu0 %v705
        %773 = vmatpush.msra.mxu0 %v702
        %774 = vmatpush.msra.mxu0 %v699
        %775 = vmatpush.msra.mxu0 %v696
        %776 = vmatpush.msra.mxu0 %v693
        %777 = vmatpush.msra.mxu0 %v690
        %778 = vmatpush.msra.mxu0 %v687
        %779 = vmatpush.msra.mxu0 %v684
        %780 = vmatpush.msra.mxu0 %v681
        %781 = vmatpush.msra.mxu0 %v678
        %782 = vmatpush.msra.mxu0 %v675
        %783 = vmatpush.msra.mxu0 %v672
        %784 = vmatpush.msra.mxu0 %v669
        %785 = vmatpush.msra.mxu0 %v666
        %786 = vmatpush.msra.mxu0 %v663
        %787 = vmatpush.msra.mxu0 %v660
        %788 = vmatmul.f32.gmra.mxu0 %v376
        %v789 = vpop.f32.mrf.mxu0
        %v790 = vadd.f32 0.0, %v789
        %791 = vmatmul.f32.gmra.mxu0 %v377
        %v792 = vpop.f32.mrf.mxu0
        %v793 = vadd.f32 0.0, %v792
        %794 = vmatmul.f32.gmra.mxu0 %v378
        %v795 = vpop.f32.mrf.mxu0
        %v796 = vadd.f32 0.0, %v795
        %797 = vmatmul.f32.gmra.mxu0 %v379
        %v798 = vpop.f32.mrf.mxu0
        %v799 = vadd.f32 0.0, %v798
        %800 = vmatmul.f32.gmra.mxu0 %v380
        %v801 = vpop.f32.mrf.mxu0
        %v802 = vadd.f32 0.0, %v801
        %803 = vmatmul.f32.gmra.mxu0 %v381
        %v804 = vpop.f32.mrf.mxu0
        %v805 = vadd.f32 0.0, %v804
        %806 = vmatmul.f32.gmra.mxu0 %v382
        %v807 = vpop.f32.mrf.mxu0
        %v808 = vadd.f32 0.0, %v807
        %809 = vmatmul.f32.gmra.mxu0 %v383
        %v810 = vpop.f32.mrf.mxu0
        %v811 = vadd.f32 0.0, %v810
        %812 = vmatmul.f32.gmra.mxu0 %v384
        %v813 = vpop.f32.mrf.mxu0
        %v814 = vadd.f32 0.0, %v813
        %815 = vmatmul.f32.gmra.mxu0 %v385
        %v816 = vpop.f32.mrf.mxu0
        %v817 = vadd.f32 0.0, %v816
        %818 = vmatmul.f32.gmra.mxu0 %v386
        %v819 = vpop.f32.mrf.mxu0
        %v820 = vadd.f32 0.0, %v819
        %821 = vmatmul.f32.gmra.mxu0 %v387
        %v822 = vpop.f32.mrf.mxu0
        %v823 = vadd.f32 0.0, %v822
        %824 = vmatmul.f32.gmra.mxu0 %v388
        %v825 = vpop.f32.mrf.mxu0
        %v826 = vadd.f32 0.0, %v825
        %827 = vmatmul.f32.gmra.mxu0 %v389
        %v828 = vpop.f32.mrf.mxu0
        %v829 = vadd.f32 0.0, %v828
        %830 = vmatmul.f32.gmra.mxu0 %v390
        %v831 = vpop.f32.mrf.mxu0
        %v832 = vadd.f32 0.0, %v831
        %833 = vmatmul.f32.gmra.mxu0 %v391
        %v834 = vpop.f32.mrf.mxu0
        %v835 = vadd.f32 0.0, %v834
        %836 = vdwg.mxu0
        %837 = vmatpush.msra.mxu0 %v706
        %838 = vmatpush.msra.mxu0 %v703
        %839 = vmatpush.msra.mxu0 %v700
        %840 = vmatpush.msra.mxu0 %v697
        %841 = vmatpush.msra.mxu0 %v694
        %842 = vmatpush.msra.mxu0 %v691
        %843 = vmatpush.msra.mxu0 %v688
        %844 = vmatpush.msra.mxu0 %v685
        %845 = vmatpush.msra.mxu0 %v682
        %846 = vmatpush.msra.mxu0 %v679
        %847 = vmatpush.msra.mxu0 %v676
        %848 = vmatpush.msra.mxu0 %v673
        %849 = vmatpush.msra.mxu0 %v670
        %850 = vmatpush.msra.mxu0 %v667
        %851 = vmatpush.msra.mxu0 %v664
        %852 = vmatpush.msra.mxu0 %v661
        %853 = vmatmul.f32.gmra.mxu0 %v376
        %v854 = vpop.f32.mrf.mxu0
        %v855 = vadd.f32 0.0, %v854
        %856 = vmatmul.f32.gmra.mxu0 %v377
        %v857 = vpop.f32.mrf.mxu0
        %v858 = vadd.f32 0.0, %v857
        %859 = vmatmul.f32.gmra.mxu0 %v378
        %v860 = vpop.f32.mrf.mxu0
        %v861 = vadd.f32 0.0, %v860
        %862 = vmatmul.f32.gmra.mxu0 %v379
        %v863 = vpop.f32.mrf.mxu0
        %v864 = vadd.f32 0.0, %v863
        %865 = vmatmul.f32.gmra.mxu0 %v380
        %v866 = vpop.f32.mrf.mxu0
        %v867 = vadd.f32 0.0, %v866
        %868 = vmatmul.f32.gmra.mxu0 %v381
        %v869 = vpop.f32.mrf.mxu0
        %v870 = vadd.f32 0.0, %v869
        %871 = vmatmul.f32.gmra.mxu0 %v382
        %v872 = vpop.f32.mrf.mxu0
        %v873 = vadd.f32 0.0, %v872
        %874 = vmatmul.f32.gmra.mxu0 %v383
        %v875 = vpop.f32.mrf.mxu0
        %v876 = vadd.f32 0.0, %v875
        %877 = vmatmul.f32.gmra.mxu0 %v384
        %v878 = vpop.f32.mrf.mxu0
        %v879 = vadd.f32 0.0, %v878
        %880 = vmatmul.f32.gmra.mxu0 %v385
        %v881 = vpop.f32.mrf.mxu0
        %v882 = vadd.f32 0.0, %v881
        %883 = vmatmul.f32.gmra.mxu0 %v386
        %v884 = vpop.f32.mrf.mxu0
        %v885 = vadd.f32 0.0, %v884
        %886 = vmatmul.f32.gmra.mxu0 %v387
        %v887 = vpop.f32.mrf.mxu0
        %v888 = vadd.f32 0.0, %v887
        %889 = vmatmul.f32.gmra.mxu0 %v388
        %v890 = vpop.f32.mrf.mxu0
        %v891 = vadd.f32 0.0, %v890
        %892 = vmatmul.f32.gmra.mxu0 %v389
        %v893 = vpop.f32.mrf.mxu0
        %v894 = vadd.f32 0.0, %v893
        %895 = vmatmul.f32.gmra.mxu0 %v390
        %v896 = vpop.f32.mrf.mxu0
        %v897 = vadd.f32 0.0, %v896
        %898 = vmatmul.f32.gmra.mxu0 %v391
        %v899 = vpop.f32.mrf.mxu0
        %v900 = vadd.f32 0.0, %v899
        %901 = vdwg.mxu0
        %v902 = vadd.f32 %v482, %v725
        %v903 = vadd.f32 %v485, %v728
        %v904 = vadd.f32 %v488, %v731
        %v905 = vadd.f32 %v491, %v734
        %v906 = vadd.f32 %v494, %v737
        %v907 = vadd.f32 %v497, %v740
        %v908 = vadd.f32 %v500, %v743
        %v909 = vadd.f32 %v503, %v746
        %v910 = vadd.f32 %v506, %v749
        %v911 = vadd.f32 %v509, %v752
        %v912 = vadd.f32 %v512, %v755
        %v913 = vadd.f32 %v515, %v758
        %v914 = vadd.f32 %v518, %v761
        %v915 = vadd.f32 %v521, %v764
        %v916 = vadd.f32 %v524, %v767
        %v917 = vadd.f32 %v527, %v770
        %v918 = vxor.u32 %v902, 2147483648
        %v919 = vxor.u32 %v903, 2147483648
        %v920 = vxor.u32 %v904, 2147483648
        %v921 = vxor.u32 %v905, 2147483648
        %v922 = vxor.u32 %v906, 2147483648
        %v923 = vxor.u32 %v907, 2147483648
        %v924 = vxor.u32 %v908, 2147483648
        %v925 = vxor.u32 %v909, 2147483648
        %v926 = vxor.u32 %v910, 2147483648
        %v927 = vxor.u32 %v911, 2147483648
        %v928 = vxor.u32 %v912, 2147483648
        %v929 = vxor.u32 %v913, 2147483648
        %v930 = vxor.u32 %v914, 2147483648
        %v931 = vxor.u32 %v915, 2147483648
        %v932 = vxor.u32 %v916, 2147483648
        %v933 = vxor.u32 %v917, 2147483648
        %v934 = vmul.f32 %v918, 1.442695
        %v935 = vpow.pop %v934
        %v936 = vmul.f32 %v919, 1.442695
        %v937 = vpow.pop %v936
        %v938 = vmul.f32 %v920, 1.442695
        %v939 = vpow.pop %v938
        %v940 = vmul.f32 %v921, 1.442695
        %v941 = vpow.pop %v940
        %v942 = vmul.f32 %v922, 1.442695
        %v943 = vpow.pop %v942
        %v944 = vmul.f32 %v923, 1.442695
        %v945 = vpow.pop %v944
        %v946 = vmul.f32 %v924, 1.442695
        %v947 = vpow.pop %v946
        %v948 = vmul.f32 %v925, 1.442695
        %v949 = vpow.pop %v948
        %v950 = vmul.f32 %v926, 1.442695
        %v951 = vpow.pop %v950
        %v952 = vmul.f32 %v927, 1.442695
        %v953 = vpow.pop %v952
        %v954 = vmul.f32 %v928, 1.442695
        %v955 = vpow.pop %v954
        %v956 = vmul.f32 %v929, 1.442695
        %v957 = vpow.pop %v956
        %v958 = vmul.f32 %v930, 1.442695
        %v959 = vpow.pop %v958
        %v960 = vmul.f32 %v931, 1.442695
        %v961 = vpow.pop %v960
        %v962 = vmul.f32 %v932, 1.442695
        %v963 = vpow.pop %v962
        %v964 = vmul.f32 %v933, 1.442695
        %v965 = vpow.pop %v964
        %v966 = vadd.f32 %v935, 1.0
        %v967 = vadd.f32 %v937, 1.0
        %v968 = vadd.f32 %v939, 1.0
        %v969 = vadd.f32 %v941, 1.0
        %v970 = vadd.f32 %v943, 1.0
        %v971 = vadd.f32 %v945, 1.0
        %v972 = vadd.f32 %v947, 1.0
        %v973 = vadd.f32 %v949, 1.0
        %v974 = vadd.f32 %v951, 1.0
        %v975 = vadd.f32 %v953, 1.0
        %v976 = vadd.f32 %v955, 1.0
        %v977 = vadd.f32 %v957, 1.0
        %v978 = vadd.f32 %v959, 1.0
        %v979 = vadd.f32 %v961, 1.0
        %v980 = vadd.f32 %v963, 1.0
        %v981 = vadd.f32 %v965, 1.0
        %v982 = vrcp.pop %v966
        %v983 = vmul.f32 %v966, %v982
        %v984 = vsub.f32 1.0, %v983
        %v985 = vmul.f32 %v982, %v984
        %v986 = vadd.f32 %v982, %v985
        %vm987 = vweird.f32 %v966
        %vm988 = vweird.f32 %v982
        %vm989 = vmor %vm987, %vm988
        %v990 = vsel %vm989, %v982, %v986
        %v991 = vand.u32 2147483647, %v966
        %vm992 = vcmp.eq.f32.partialorder %v991, 8.507059e+37
        %v993 = vand.u32 %v966, 2147483648
        %v994 = vor.u32 1.1754944e-38, %v993
        %v995 = vsel %vm992, %v994, %v990
        %v996 = vmul.f32 1.0, %v995
        %v997 = vrcp.pop %v967
        %v998 = vmul.f32 %v967, %v997
        %v999 = vsub.f32 1.0, %v998
        %v1000 = vmul.f32 %v997, %v999
        %v1001 = vadd.f32 %v997, %v1000
        %vm1002 = vweird.f32 %v967
        %vm1003 = vweird.f32 %v997
        %vm1004 = vmor %vm1002, %vm1003
        %v1005 = vsel %vm1004, %v997, %v1001
        %v1006 = vand.u32 2147483647, %v967
        %vm1007 = vcmp.eq.f32.partialorder %v1006, 8.507059e+37
        %v1008 = vand.u32 %v967, 2147483648
        %v1009 = vor.u32 1.1754944e-38, %v1008
        %v1010 = vsel %vm1007, %v1009, %v1005
        %v1011 = vmul.f32 1.0, %v1010
        %v1012 = vrcp.pop %v968
        %v1013 = vmul.f32 %v968, %v1012
        %v1014 = vsub.f32 1.0, %v1013
        %v1015 = vmul.f32 %v1012, %v1014
        %v1016 = vadd.f32 %v1012, %v1015
        %vm1017 = vweird.f32 %v968
        %vm1018 = vweird.f32 %v1012
        %vm1019 = vmor %vm1017, %vm1018
        %v1020 = vsel %vm1019, %v1012, %v1016
        %v1021 = vand.u32 2147483647, %v968
        %vm1022 = vcmp.eq.f32.partialorder %v1021, 8.507059e+37
        %v1023 = vand.u32 %v968, 2147483648
        %v1024 = vor.u32 1.1754944e-38, %v1023
        %v1025 = vsel %vm1022, %v1024, %v1020
        %v1026 = vmul.f32 1.0, %v1025
        %v1027 = vrcp.pop %v969
        %v1028 = vmul.f32 %v969, %v1027
        %v1029 = vsub.f32 1.0, %v1028
        %v1030 = vmul.f32 %v1027, %v1029
        %v1031 = vadd.f32 %v1027, %v1030
        %vm1032 = vweird.f32 %v969
        %vm1033 = vweird.f32 %v1027
        %vm1034 = vmor %vm1032, %vm1033
        %v1035 = vsel %vm1034, %v1027, %v1031
        %v1036 = vand.u32 2147483647, %v969
        %vm1037 = vcmp.eq.f32.partialorder %v1036, 8.507059e+37
        %v1038 = vand.u32 %v969, 2147483648
        %v1039 = vor.u32 1.1754944e-38, %v1038
        %v1040 = vsel %vm1037, %v1039, %v1035
        %v1041 = vmul.f32 1.0, %v1040
        %v1042 = vrcp.pop %v970
        %v1043 = vmul.f32 %v970, %v1042
        %v1044 = vsub.f32 1.0, %v1043
        %v1045 = vmul.f32 %v1042, %v1044
        %v1046 = vadd.f32 %v1042, %v1045
        %vm1047 = vweird.f32 %v970
        %vm1048 = vweird.f32 %v1042
        %vm1049 = vmor %vm1047, %vm1048
        %v1050 = vsel %vm1049, %v1042, %v1046
        %v1051 = vand.u32 2147483647, %v970
        %vm1052 = vcmp.eq.f32.partialorder %v1051, 8.507059e+37
        %v1053 = vand.u32 %v970, 2147483648
        %v1054 = vor.u32 1.1754944e-38, %v1053
        %v1055 = vsel %vm1052, %v1054, %v1050
        %v1056 = vmul.f32 1.0, %v1055
        %v1057 = vrcp.pop %v971
        %v1058 = vmul.f32 %v971, %v1057
        %v1059 = vsub.f32 1.0, %v1058
        %v1060 = vmul.f32 %v1057, %v1059
        %v1061 = vadd.f32 %v1057, %v1060
        %vm1062 = vweird.f32 %v971
        %vm1063 = vweird.f32 %v1057
        %vm1064 = vmor %vm1062, %vm1063
        %v1065 = vsel %vm1064, %v1057, %v1061
        %v1066 = vand.u32 2147483647, %v971
        %vm1067 = vcmp.eq.f32.partialorder %v1066, 8.507059e+37
        %v1068 = vand.u32 %v971, 2147483648
        %v1069 = vor.u32 1.1754944e-38, %v1068
        %v1070 = vsel %vm1067, %v1069, %v1065
        %v1071 = vmul.f32 1.0, %v1070
        %v1072 = vrcp.pop %v972
        %v1073 = vmul.f32 %v972, %v1072
        %v1074 = vsub.f32 1.0, %v1073
        %v1075 = vmul.f32 %v1072, %v1074
        %v1076 = vadd.f32 %v1072, %v1075
        %vm1077 = vweird.f32 %v972
        %vm1078 = vweird.f32 %v1072
        %vm1079 = vmor %vm1077, %vm1078
        %v1080 = vsel %vm1079, %v1072, %v1076
        %v1081 = vand.u32 2147483647, %v972
        %vm1082 = vcmp.eq.f32.partialorder %v1081, 8.507059e+37
        %v1083 = vand.u32 %v972, 2147483648
        %v1084 = vor.u32 1.1754944e-38, %v1083
        %v1085 = vsel %vm1082, %v1084, %v1080
        %v1086 = vmul.f32 1.0, %v1085
        %v1087 = vrcp.pop %v973
        %v1088 = vmul.f32 %v973, %v1087
        %v1089 = vsub.f32 1.0, %v1088
        %v1090 = vmul.f32 %v1087, %v1089
        %v1091 = vadd.f32 %v1087, %v1090
        %vm1092 = vweird.f32 %v973
        %vm1093 = vweird.f32 %v1087
        %vm1094 = vmor %vm1092, %vm1093
        %v1095 = vsel %vm1094, %v1087, %v1091
        %v1096 = vand.u32 2147483647, %v973
        %vm1097 = vcmp.eq.f32.partialorder %v1096, 8.507059e+37
        %v1098 = vand.u32 %v973, 2147483648
        %v1099 = vor.u32 1.1754944e-38, %v1098
        %v1100 = vsel %vm1097, %v1099, %v1095
        %v1101 = vmul.f32 1.0, %v1100
        %v1102 = vrcp.pop %v974
        %v1103 = vmul.f32 %v974, %v1102
        %v1104 = vsub.f32 1.0, %v1103
        %v1105 = vmul.f32 %v1102, %v1104
        %v1106 = vadd.f32 %v1102, %v1105
        %vm1107 = vweird.f32 %v974
        %vm1108 = vweird.f32 %v1102
        %vm1109 = vmor %vm1107, %vm1108
        %v1110 = vsel %vm1109, %v1102, %v1106
        %v1111 = vand.u32 2147483647, %v974
        %vm1112 = vcmp.eq.f32.partialorder %v1111, 8.507059e+37
        %v1113 = vand.u32 %v974, 2147483648
        %v1114 = vor.u32 1.1754944e-38, %v1113
        %v1115 = vsel %vm1112, %v1114, %v1110
        %v1116 = vmul.f32 1.0, %v1115
        %v1117 = vrcp.pop %v975
        %v1118 = vmul.f32 %v975, %v1117
        %v1119 = vsub.f32 1.0, %v1118
        %v1120 = vmul.f32 %v1117, %v1119
        %v1121 = vadd.f32 %v1117, %v1120
        %vm1122 = vweird.f32 %v975
        %vm1123 = vweird.f32 %v1117
        %vm1124 = vmor %vm1122, %vm1123
        %v1125 = vsel %vm1124, %v1117, %v1121
        %v1126 = vand.u32 2147483647, %v975
        %vm1127 = vcmp.eq.f32.partialorder %v1126, 8.507059e+37
        %v1128 = vand.u32 %v975, 2147483648
        %v1129 = vor.u32 1.1754944e-38, %v1128
        %v1130 = vsel %vm1127, %v1129, %v1125
        %v1131 = vmul.f32 1.0, %v1130
        %v1132 = vrcp.pop %v976
        %v1133 = vmul.f32 %v976, %v1132
        %v1134 = vsub.f32 1.0, %v1133
        %v1135 = vmul.f32 %v1132, %v1134
        %v1136 = vadd.f32 %v1132, %v1135
        %vm1137 = vweird.f32 %v976
        %vm1138 = vweird.f32 %v1132
        %vm1139 = vmor %vm1137, %vm1138
        %v1140 = vsel %vm1139, %v1132, %v1136
        %v1141 = vand.u32 2147483647, %v976
        %vm1142 = vcmp.eq.f32.partialorder %v1141, 8.507059e+37
        %v1143 = vand.u32 %v976, 2147483648
        %v1144 = vor.u32 1.1754944e-38, %v1143
        %v1145 = vsel %vm1142, %v1144, %v1140
        %v1146 = vmul.f32 1.0, %v1145
        %v1147 = vrcp.pop %v977
        %v1148 = vmul.f32 %v977, %v1147
        %v1149 = vsub.f32 1.0, %v1148
        %v1150 = vmul.f32 %v1147, %v1149
        %v1151 = vadd.f32 %v1147, %v1150
        %vm1152 = vweird.f32 %v977
        %vm1153 = vweird.f32 %v1147
        %vm1154 = vmor %vm1152, %vm1153
        %v1155 = vsel %vm1154, %v1147, %v1151
        %v1156 = vand.u32 2147483647, %v977
        %vm1157 = vcmp.eq.f32.partialorder %v1156, 8.507059e+37
        %v1158 = vand.u32 %v977, 2147483648
        %v1159 = vor.u32 1.1754944e-38, %v1158
        %v1160 = vsel %vm1157, %v1159, %v1155
        %v1161 = vmul.f32 1.0, %v1160
        %v1162 = vrcp.pop %v978
        %v1163 = vmul.f32 %v978, %v1162
        %v1164 = vsub.f32 1.0, %v1163
        %v1165 = vmul.f32 %v1162, %v1164
        %v1166 = vadd.f32 %v1162, %v1165
        %vm1167 = vweird.f32 %v978
        %vm1168 = vweird.f32 %v1162
        %vm1169 = vmor %vm1167, %vm1168
        %v1170 = vsel %vm1169, %v1162, %v1166
        %v1171 = vand.u32 2147483647, %v978
        %vm1172 = vcmp.eq.f32.partialorder %v1171, 8.507059e+37
        %v1173 = vand.u32 %v978, 2147483648
        %v1174 = vor.u32 1.1754944e-38, %v1173
        %v1175 = vsel %vm1172, %v1174, %v1170
        %v1176 = vmul.f32 1.0, %v1175
        %v1177 = vrcp.pop %v979
        %v1178 = vmul.f32 %v979, %v1177
        %v1179 = vsub.f32 1.0, %v1178
        %v1180 = vmul.f32 %v1177, %v1179
        %v1181 = vadd.f32 %v1177, %v1180
        %vm1182 = vweird.f32 %v979
        %vm1183 = vweird.f32 %v1177
        %vm1184 = vmor %vm1182, %vm1183
        %v1185 = vsel %vm1184, %v1177, %v1181
        %v1186 = vand.u32 2147483647, %v979
        %vm1187 = vcmp.eq.f32.partialorder %v1186, 8.507059e+37
        %v1188 = vand.u32 %v979, 2147483648
        %v1189 = vor.u32 1.1754944e-38, %v1188
        %v1190 = vsel %vm1187, %v1189, %v1185
        %v1191 = vmul.f32 1.0, %v1190
        %v1192 = vrcp.pop %v980
        %v1193 = vmul.f32 %v980, %v1192
        %v1194 = vsub.f32 1.0, %v1193
        %v1195 = vmul.f32 %v1192, %v1194
        %v1196 = vadd.f32 %v1192, %v1195
        %vm1197 = vweird.f32 %v980
        %vm1198 = vweird.f32 %v1192
        %vm1199 = vmor %vm1197, %vm1198
        %v1200 = vsel %vm1199, %v1192, %v1196
        %v1201 = vand.u32 2147483647, %v980
        %vm1202 = vcmp.eq.f32.partialorder %v1201, 8.507059e+37
        %v1203 = vand.u32 %v980, 2147483648
        %v1204 = vor.u32 1.1754944e-38, %v1203
        %v1205 = vsel %vm1202, %v1204, %v1200
        %v1206 = vmul.f32 1.0, %v1205
        %v1207 = vrcp.pop %v981
        %v1208 = vmul.f32 %v981, %v1207
        %v1209 = vsub.f32 1.0, %v1208
        %v1210 = vmul.f32 %v1207, %v1209
        %v1211 = vadd.f32 %v1207, %v1210
        %vm1212 = vweird.f32 %v981
        %vm1213 = vweird.f32 %v1207
        %vm1214 = vmor %vm1212, %vm1213
        %v1215 = vsel %vm1214, %v1207, %v1211
        %v1216 = vand.u32 2147483647, %v981
        %vm1217 = vcmp.eq.f32.partialorder %v1216, 8.507059e+37
        %v1218 = vand.u32 %v981, 2147483648
        %v1219 = vor.u32 1.1754944e-38, %v1218
        %v1220 = vsel %vm1217, %v1219, %v1215
        %v1221 = vmul.f32 1.0, %v1220
        %v1222 = vadd.f32 %v547, %v790
        %v1223 = vadd.f32 %v550, %v793
        %v1224 = vadd.f32 %v553, %v796
        %v1225 = vadd.f32 %v556, %v799
        %v1226 = vadd.f32 %v559, %v802
        %v1227 = vadd.f32 %v562, %v805
        %v1228 = vadd.f32 %v565, %v808
        %v1229 = vadd.f32 %v568, %v811
        %v1230 = vadd.f32 %v571, %v814
        %v1231 = vadd.f32 %v574, %v817
        %v1232 = vadd.f32 %v577, %v820
        %v1233 = vadd.f32 %v580, %v823
        %v1234 = vadd.f32 %v583, %v826
        %v1235 = vadd.f32 %v586, %v829
        %v1236 = vadd.f32 %v589, %v832
        %v1237 = vadd.f32 %v592, %v835
        %v1238 = vxor.u32 %v1222, 2147483648
        %v1239 = vxor.u32 %v1223, 2147483648
        %v1240 = vxor.u32 %v1224, 2147483648
        %v1241 = vxor.u32 %v1225, 2147483648
        %v1242 = vxor.u32 %v1226, 2147483648
        %v1243 = vxor.u32 %v1227, 2147483648
        %v1244 = vxor.u32 %v1228, 2147483648
        %v1245 = vxor.u32 %v1229, 2147483648
        %v1246 = vxor.u32 %v1230, 2147483648
        %v1247 = vxor.u32 %v1231, 2147483648
        %v1248 = vxor.u32 %v1232, 2147483648
        %v1249 = vxor.u32 %v1233, 2147483648
        %v1250 = vxor.u32 %v1234, 2147483648
        %v1251 = vxor.u32 %v1235, 2147483648
        %v1252 = vxor.u32 %v1236, 2147483648
        %v1253 = vxor.u32 %v1237, 2147483648
        %v1254 = vmul.f32 %v1238, 1.442695
        %v1255 = vpow.pop %v1254
        %v1256 = vmul.f32 %v1239, 1.442695
        %v1257 = vpow.pop %v1256
        %v1258 = vmul.f32 %v1240, 1.442695
        %v1259 = vpow.pop %v1258
        %v1260 = vmul.f32 %v1241, 1.442695
        %v1261 = vpow.pop %v1260
        %v1262 = vmul.f32 %v1242, 1.442695
        %v1263 = vpow.pop %v1262
        %v1264 = vmul.f32 %v1243, 1.442695
        %v1265 = vpow.pop %v1264
        %v1266 = vmul.f32 %v1244, 1.442695
        %v1267 = vpow.pop %v1266
        %v1268 = vmul.f32 %v1245, 1.442695
        %v1269 = vpow.pop %v1268
        %v1270 = vmul.f32 %v1246, 1.442695
        %v1271 = vpow.pop %v1270
        %v1272 = vmul.f32 %v1247, 1.442695
        %v1273 = vpow.pop %v1272
        %v1274 = vmul.f32 %v1248, 1.442695
        %v1275 = vpow.pop %v1274
        %v1276 = vmul.f32 %v1249, 1.442695
        %v1277 = vpow.pop %v1276
        %v1278 = vmul.f32 %v1250, 1.442695
        %v1279 = vpow.pop %v1278
        %v1280 = vmul.f32 %v1251, 1.442695
        %v1281 = vpow.pop %v1280
        %v1282 = vmul.f32 %v1252, 1.442695
        %v1283 = vpow.pop %v1282
        %v1284 = vmul.f32 %v1253, 1.442695
        %v1285 = vpow.pop %v1284
        %v1286 = vadd.f32 %v1255, 1.0
        %v1287 = vadd.f32 %v1257, 1.0
        %v1288 = vadd.f32 %v1259, 1.0
        %v1289 = vadd.f32 %v1261, 1.0
        %v1290 = vadd.f32 %v1263, 1.0
        %v1291 = vadd.f32 %v1265, 1.0
        %v1292 = vadd.f32 %v1267, 1.0
        %v1293 = vadd.f32 %v1269, 1.0
        %v1294 = vadd.f32 %v1271, 1.0
        %v1295 = vadd.f32 %v1273, 1.0
        %v1296 = vadd.f32 %v1275, 1.0
        %v1297 = vadd.f32 %v1277, 1.0
        %v1298 = vadd.f32 %v1279, 1.0
        %v1299 = vadd.f32 %v1281, 1.0
        %v1300 = vadd.f32 %v1283, 1.0
        %v1301 = vadd.f32 %v1285, 1.0
        %v1302 = vrcp.pop %v1286
        %v1303 = vmul.f32 %v1286, %v1302
        %v1304 = vsub.f32 1.0, %v1303
        %v1305 = vmul.f32 %v1302, %v1304
        %v1306 = vadd.f32 %v1302, %v1305
        %vm1307 = vweird.f32 %v1286
        %vm1308 = vweird.f32 %v1302
        %vm1309 = vmor %vm1307, %vm1308
        %v1310 = vsel %vm1309, %v1302, %v1306
        %v1311 = vand.u32 2147483647, %v1286
        %vm1312 = vcmp.eq.f32.partialorder %v1311, 8.507059e+37
        %v1313 = vand.u32 %v1286, 2147483648
        %v1314 = vor.u32 1.1754944e-38, %v1313
        %v1315 = vsel %vm1312, %v1314, %v1310
        %v1316 = vmul.f32 1.0, %v1315
        %v1317 = vrcp.pop %v1287
        %v1318 = vmul.f32 %v1287, %v1317
        %v1319 = vsub.f32 1.0, %v1318
        %v1320 = vmul.f32 %v1317, %v1319
        %v1321 = vadd.f32 %v1317, %v1320
        %vm1322 = vweird.f32 %v1287
        %vm1323 = vweird.f32 %v1317
        %vm1324 = vmor %vm1322, %vm1323
        %v1325 = vsel %vm1324, %v1317, %v1321
        %v1326 = vand.u32 2147483647, %v1287
        %vm1327 = vcmp.eq.f32.partialorder %v1326, 8.507059e+37
        %v1328 = vand.u32 %v1287, 2147483648
        %v1329 = vor.u32 1.1754944e-38, %v1328
        %v1330 = vsel %vm1327, %v1329, %v1325
        %v1331 = vmul.f32 1.0, %v1330
        %v1332 = vrcp.pop %v1288
        %v1333 = vmul.f32 %v1288, %v1332
        %v1334 = vsub.f32 1.0, %v1333
        %v1335 = vmul.f32 %v1332, %v1334
        %v1336 = vadd.f32 %v1332, %v1335
        %vm1337 = vweird.f32 %v1288
        %vm1338 = vweird.f32 %v1332
        %vm1339 = vmor %vm1337, %vm1338
        %v1340 = vsel %vm1339, %v1332, %v1336
        %v1341 = vand.u32 2147483647, %v1288
        %vm1342 = vcmp.eq.f32.partialorder %v1341, 8.507059e+37
        %v1343 = vand.u32 %v1288, 2147483648
        %v1344 = vor.u32 1.1754944e-38, %v1343
        %v1345 = vsel %vm1342, %v1344, %v1340
        %v1346 = vmul.f32 1.0, %v1345
        %v1347 = vrcp.pop %v1289
        %v1348 = vmul.f32 %v1289, %v1347
        %v1349 = vsub.f32 1.0, %v1348
        %v1350 = vmul.f32 %v1347, %v1349
        %v1351 = vadd.f32 %v1347, %v1350
        %vm1352 = vweird.f32 %v1289
        %vm1353 = vweird.f32 %v1347
        %vm1354 = vmor %vm1352, %vm1353
        %v1355 = vsel %vm1354, %v1347, %v1351
        %v1356 = vand.u32 2147483647, %v1289
        %vm1357 = vcmp.eq.f32.partialorder %v1356, 8.507059e+37
        %v1358 = vand.u32 %v1289, 2147483648
        %v1359 = vor.u32 1.1754944e-38, %v1358
        %v1360 = vsel %vm1357, %v1359, %v1355
        %v1361 = vmul.f32 1.0, %v1360
        %v1362 = vrcp.pop %v1290
        %v1363 = vmul.f32 %v1290, %v1362
        %v1364 = vsub.f32 1.0, %v1363
        %v1365 = vmul.f32 %v1362, %v1364
        %v1366 = vadd.f32 %v1362, %v1365
        %vm1367 = vweird.f32 %v1290
        %vm1368 = vweird.f32 %v1362
        %vm1369 = vmor %vm1367, %vm1368
        %v1370 = vsel %vm1369, %v1362, %v1366
        %v1371 = vand.u32 2147483647, %v1290
        %vm1372 = vcmp.eq.f32.partialorder %v1371, 8.507059e+37
        %v1373 = vand.u32 %v1290, 2147483648
        %v1374 = vor.u32 1.1754944e-38, %v1373
        %v1375 = vsel %vm1372, %v1374, %v1370
        %v1376 = vmul.f32 1.0, %v1375
        %v1377 = vrcp.pop %v1291
        %v1378 = vmul.f32 %v1291, %v1377
        %v1379 = vsub.f32 1.0, %v1378
        %v1380 = vmul.f32 %v1377, %v1379
        %v1381 = vadd.f32 %v1377, %v1380
        %vm1382 = vweird.f32 %v1291
        %vm1383 = vweird.f32 %v1377
        %vm1384 = vmor %vm1382, %vm1383
        %v1385 = vsel %vm1384, %v1377, %v1381
        %v1386 = vand.u32 2147483647, %v1291
        %vm1387 = vcmp.eq.f32.partialorder %v1386, 8.507059e+37
        %v1388 = vand.u32 %v1291, 2147483648
        %v1389 = vor.u32 1.1754944e-38, %v1388
        %v1390 = vsel %vm1387, %v1389, %v1385
        %v1391 = vmul.f32 1.0, %v1390
        %v1392 = vrcp.pop %v1292
        %v1393 = vmul.f32 %v1292, %v1392
        %v1394 = vsub.f32 1.0, %v1393
        %v1395 = vmul.f32 %v1392, %v1394
        %v1396 = vadd.f32 %v1392, %v1395
        %vm1397 = vweird.f32 %v1292
        %vm1398 = vweird.f32 %v1392
        %vm1399 = vmor %vm1397, %vm1398
        %v1400 = vsel %vm1399, %v1392, %v1396
        %v1401 = vand.u32 2147483647, %v1292
        %vm1402 = vcmp.eq.f32.partialorder %v1401, 8.507059e+37
        %v1403 = vand.u32 %v1292, 2147483648
        %v1404 = vor.u32 1.1754944e-38, %v1403
        %v1405 = vsel %vm1402, %v1404, %v1400
        %v1406 = vmul.f32 1.0, %v1405
        %v1407 = vrcp.pop %v1293
        %v1408 = vmul.f32 %v1293, %v1407
        %v1409 = vsub.f32 1.0, %v1408
        %v1410 = vmul.f32 %v1407, %v1409
        %v1411 = vadd.f32 %v1407, %v1410
        %vm1412 = vweird.f32 %v1293
        %vm1413 = vweird.f32 %v1407
        %vm1414 = vmor %vm1412, %vm1413
        %v1415 = vsel %vm1414, %v1407, %v1411
        %v1416 = vand.u32 2147483647, %v1293
        %vm1417 = vcmp.eq.f32.partialorder %v1416, 8.507059e+37
        %v1418 = vand.u32 %v1293, 2147483648
        %v1419 = vor.u32 1.1754944e-38, %v1418
        %v1420 = vsel %vm1417, %v1419, %v1415
        %v1421 = vmul.f32 1.0, %v1420
        %v1422 = vrcp.pop %v1294
        %v1423 = vmul.f32 %v1294, %v1422
        %v1424 = vsub.f32 1.0, %v1423
        %v1425 = vmul.f32 %v1422, %v1424
        %v1426 = vadd.f32 %v1422, %v1425
        %vm1427 = vweird.f32 %v1294
        %vm1428 = vweird.f32 %v1422
        %vm1429 = vmor %vm1427, %vm1428
        %v1430 = vsel %vm1429, %v1422, %v1426
        %v1431 = vand.u32 2147483647, %v1294
        %vm1432 = vcmp.eq.f32.partialorder %v1431, 8.507059e+37
        %v1433 = vand.u32 %v1294, 2147483648
        %v1434 = vor.u32 1.1754944e-38, %v1433
        %v1435 = vsel %vm1432, %v1434, %v1430
        %v1436 = vmul.f32 1.0, %v1435
        %v1437 = vrcp.pop %v1295
        %v1438 = vmul.f32 %v1295, %v1437
        %v1439 = vsub.f32 1.0, %v1438
        %v1440 = vmul.f32 %v1437, %v1439
        %v1441 = vadd.f32 %v1437, %v1440
        %vm1442 = vweird.f32 %v1295
        %vm1443 = vweird.f32 %v1437
        %vm1444 = vmor %vm1442, %vm1443
        %v1445 = vsel %vm1444, %v1437, %v1441
        %v1446 = vand.u32 2147483647, %v1295
        %vm1447 = vcmp.eq.f32.partialorder %v1446, 8.507059e+37
        %v1448 = vand.u32 %v1295, 2147483648
        %v1449 = vor.u32 1.1754944e-38, %v1448
        %v1450 = vsel %vm1447, %v1449, %v1445
        %v1451 = vmul.f32 1.0, %v1450
        %v1452 = vrcp.pop %v1296
        %v1453 = vmul.f32 %v1296, %v1452
        %v1454 = vsub.f32 1.0, %v1453
        %v1455 = vmul.f32 %v1452, %v1454
        %v1456 = vadd.f32 %v1452, %v1455
        %vm1457 = vweird.f32 %v1296
        %vm1458 = vweird.f32 %v1452
        %vm1459 = vmor %vm1457, %vm1458
        %v1460 = vsel %vm1459, %v1452, %v1456
        %v1461 = vand.u32 2147483647, %v1296
        %vm1462 = vcmp.eq.f32.partialorder %v1461, 8.507059e+37
        %v1463 = vand.u32 %v1296, 2147483648
        %v1464 = vor.u32 1.1754944e-38, %v1463
        %v1465 = vsel %vm1462, %v1464, %v1460
        %v1466 = vmul.f32 1.0, %v1465
        %v1467 = vrcp.pop %v1297
        %v1468 = vmul.f32 %v1297, %v1467
        %v1469 = vsub.f32 1.0, %v1468
        %v1470 = vmul.f32 %v1467, %v1469
        %v1471 = vadd.f32 %v1467, %v1470
        %vm1472 = vweird.f32 %v1297
        %vm1473 = vweird.f32 %v1467
        %vm1474 = vmor %vm1472, %vm1473
        %v1475 = vsel %vm1474, %v1467, %v1471
        %v1476 = vand.u32 2147483647, %v1297
        %vm1477 = vcmp.eq.f32.partialorder %v1476, 8.507059e+37
        %v1478 = vand.u32 %v1297, 2147483648
        %v1479 = vor.u32 1.1754944e-38, %v1478
        %v1480 = vsel %vm1477, %v1479, %v1475
        %v1481 = vmul.f32 1.0, %v1480
        %v1482 = vrcp.pop %v1298
        %v1483 = vmul.f32 %v1298, %v1482
        %v1484 = vsub.f32 1.0, %v1483
        %v1485 = vmul.f32 %v1482, %v1484
        %v1486 = vadd.f32 %v1482, %v1485
        %vm1487 = vweird.f32 %v1298
        %vm1488 = vweird.f32 %v1482
        %vm1489 = vmor %vm1487, %vm1488
        %v1490 = vsel %vm1489, %v1482, %v1486
        %v1491 = vand.u32 2147483647, %v1298
        %vm1492 = vcmp.eq.f32.partialorder %v1491, 8.507059e+37
        %v1493 = vand.u32 %v1298, 2147483648
        %v1494 = vor.u32 1.1754944e-38, %v1493
        %v1495 = vsel %vm1492, %v1494, %v1490
        %v1496 = vmul.f32 1.0, %v1495
        %v1497 = vrcp.pop %v1299
        %v1498 = vmul.f32 %v1299, %v1497
        %v1499 = vsub.f32 1.0, %v1498
        %v1500 = vmul.f32 %v1497, %v1499
        %v1501 = vadd.f32 %v1497, %v1500
        %vm1502 = vweird.f32 %v1299
        %vm1503 = vweird.f32 %v1497
        %vm1504 = vmor %vm1502, %vm1503
        %v1505 = vsel %vm1504, %v1497, %v1501
        %v1506 = vand.u32 2147483647, %v1299
        %vm1507 = vcmp.eq.f32.partialorder %v1506, 8.507059e+37
        %v1508 = vand.u32 %v1299, 2147483648
        %v1509 = vor.u32 1.1754944e-38, %v1508
        %v1510 = vsel %vm1507, %v1509, %v1505
        %v1511 = vmul.f32 1.0, %v1510
        %v1512 = vrcp.pop %v1300
        %v1513 = vmul.f32 %v1300, %v1512
        %v1514 = vsub.f32 1.0, %v1513
        %v1515 = vmul.f32 %v1512, %v1514
        %v1516 = vadd.f32 %v1512, %v1515
        %vm1517 = vweird.f32 %v1300
        %vm1518 = vweird.f32 %v1512
        %vm1519 = vmor %vm1517, %vm1518
        %v1520 = vsel %vm1519, %v1512, %v1516
        %v1521 = vand.u32 2147483647, %v1300
        %vm1522 = vcmp.eq.f32.partialorder %v1521, 8.507059e+37
        %v1523 = vand.u32 %v1300, 2147483648
        %v1524 = vor.u32 1.1754944e-38, %v1523
        %v1525 = vsel %vm1522, %v1524, %v1520
        %v1526 = vmul.f32 1.0, %v1525
        %v1527 = vrcp.pop %v1301
        %v1528 = vmul.f32 %v1301, %v1527
        %v1529 = vsub.f32 1.0, %v1528
        %v1530 = vmul.f32 %v1527, %v1529
        %v1531 = vadd.f32 %v1527, %v1530
        %vm1532 = vweird.f32 %v1301
        %vm1533 = vweird.f32 %v1527
        %vm1534 = vmor %vm1532, %vm1533
        %v1535 = vsel %vm1534, %v1527, %v1531
        %v1536 = vand.u32 2147483647, %v1301
        %vm1537 = vcmp.eq.f32.partialorder %v1536, 8.507059e+37
        %v1538 = vand.u32 %v1301, 2147483648
        %v1539 = vor.u32 1.1754944e-38, %v1538
        %v1540 = vsel %vm1537, %v1539, %v1535
        %v1541 = vmul.f32 1.0, %v1540
        %v1542 = vld [vmem:[%s5] sm:$0x1]
        %v1544 = vperm.slane %v1542, 0
        %v1546 = vadd.f32 %v855, %v1544
        %v1547 = vadd.f32 %v858, %v1544
        %v1548 = vadd.f32 %v861, %v1544
        %v1549 = vadd.f32 %v864, %v1544
        %v1550 = vadd.f32 %v867, %v1544
        %v1551 = vadd.f32 %v870, %v1544
        %v1552 = vadd.f32 %v873, %v1544
        %v1553 = vadd.f32 %v876, %v1544
        %v1554 = vadd.f32 %v879, %v1544
        %v1555 = vadd.f32 %v882, %v1544
        %v1556 = vadd.f32 %v885, %v1544
        %v1557 = vadd.f32 %v888, %v1544
        %v1558 = vadd.f32 %v891, %v1544
        %v1559 = vadd.f32 %v894, %v1544
        %v1560 = vadd.f32 %v897, %v1544
        %v1561 = vadd.f32 %v900, %v1544
        %v1562 = vmul.f32 %v996, %v1546
        %v1563 = vmul.f32 %v1011, %v1547
        %v1564 = vmul.f32 %v1026, %v1548
        %v1565 = vmul.f32 %v1041, %v1549
        %v1566 = vmul.f32 %v1056, %v1550
        %v1567 = vmul.f32 %v1071, %v1551
        %v1568 = vmul.f32 %v1086, %v1552
        %v1569 = vmul.f32 %v1101, %v1553
        %v1570 = vmul.f32 %v1116, %v1554
        %v1571 = vmul.f32 %v1131, %v1555
        %v1572 = vmul.f32 %v1146, %v1556
        %v1573 = vmul.f32 %v1161, %v1557
        %v1574 = vmul.f32 %v1176, %v1558
        %v1575 = vmul.f32 %v1191, %v1559
        %v1576 = vmul.f32 %v1206, %v1560
        %v1577 = vmul.f32 %v1221, %v1561
        %v1578 = vadd.f32 %v612, %v1562
        %v1579 = vadd.f32 %v615, %v1563
        %v1580 = vadd.f32 %v618, %v1564
        %v1581 = vadd.f32 %v621, %v1565
        %v1582 = vadd.f32 %v624, %v1566
        %v1583 = vadd.f32 %v627, %v1567
        %v1584 = vadd.f32 %v630, %v1568
        %v1585 = vadd.f32 %v633, %v1569
        %v1586 = vadd.f32 %v636, %v1570
        %v1587 = vadd.f32 %v639, %v1571
        %v1588 = vadd.f32 %v642, %v1572
        %v1589 = vadd.f32 %v645, %v1573
        %v1590 = vadd.f32 %v648, %v1574
        %v1591 = vadd.f32 %v651, %v1575
        %v1592 = vadd.f32 %v654, %v1576
        %v1593 = vadd.f32 %v657, %v1577
        %v1594 = vtanh.pop %v1578
        %v1595 = vtanh.pop %v1579
        %v1596 = vtanh.pop %v1580
        %v1597 = vtanh.pop %v1581
        %v1598 = vtanh.pop %v1582
        %v1599 = vtanh.pop %v1583
        %v1600 = vtanh.pop %v1584
        %v1601 = vtanh.pop %v1585
        %v1602 = vtanh.pop %v1586
        %v1603 = vtanh.pop %v1587
        %v1604 = vtanh.pop %v1588
        %v1605 = vtanh.pop %v1589
        %v1606 = vtanh.pop %v1590
        %v1607 = vtanh.pop %v1591
        %v1608 = vtanh.pop %v1592
        %v1609 = vtanh.pop %v1593
        %v1610 = vsub.f32 %v376, %v1594
        %v1611 = vsub.f32 %v377, %v1595
        %v1612 = vsub.f32 %v378, %v1596
        %v1613 = vsub.f32 %v379, %v1597
        %v1614 = vsub.f32 %v380, %v1598
        %v1615 = vsub.f32 %v381, %v1599
        %v1616 = vsub.f32 %v382, %v1600
        %v1617 = vsub.f32 %v383, %v1601
        %v1618 = vsub.f32 %v384, %v1602
        %v1619 = vsub.f32 %v385, %v1603
        %v1620 = vsub.f32 %v386, %v1604
        %v1621 = vsub.f32 %v387, %v1605
        %v1622 = vsub.f32 %v388, %v1606
        %v1623 = vsub.f32 %v389, %v1607
        %v1624 = vsub.f32 %v390, %v1608
        %v1625 = vsub.f32 %v391, %v1609
        %v1626 = vmul.f32 %v1316, %v1610
        %v1627 = vmul.f32 %v1331, %v1611
        %v1628 = vmul.f32 %v1346, %v1612
        %v1629 = vmul.f32 %v1361, %v1613
        %v1630 = vmul.f32 %v1376, %v1614
        %v1631 = vmul.f32 %v1391, %v1615
        %v1632 = vmul.f32 %v1406, %v1616
        %v1633 = vmul.f32 %v1421, %v1617
        %v1634 = vmul.f32 %v1436, %v1618
        %v1635 = vmul.f32 %v1451, %v1619
        %v1636 = vmul.f32 %v1466, %v1620
        %v1637 = vmul.f32 %v1481, %v1621
        %v1638 = vmul.f32 %v1496, %v1622
        %v1639 = vmul.f32 %v1511, %v1623
        %v1640 = vmul.f32 %v1526, %v1624
        %v1641 = vmul.f32 %v1541, %v1625
        %v1642 = vadd.f32 %v1594, %v1626
        %v1643 = vadd.f32 %v1595, %v1627
        %v1644 = vadd.f32 %v1596, %v1628
        %v1645 = vadd.f32 %v1597, %v1629
        %v1646 = vadd.f32 %v1598, %v1630
        %v1647 = vadd.f32 %v1599, %v1631
        %v1648 = vadd.f32 %v1600, %v1632
        %v1649 = vadd.f32 %v1601, %v1633
        %v1650 = vadd.f32 %v1602, %v1634
        %v1651 = vadd.f32 %v1603, %v1635
        %v1652 = vadd.f32 %v1604, %v1636
        %v1653 = vadd.f32 %v1605, %v1637
        %v1654 = vadd.f32 %v1606, %v1638
        %v1655 = vadd.f32 %v1607, %v1639
        %v1656 = vadd.f32 %v1608, %v1640
        %v1657 = vadd.f32 %v1609, %v1641
        %1658 = vst [vmem:[%s360] sm:$0xff] %v1642
        %1659 = vst [vmem:[%s360 + $0x8] sm:$0xff] %v1643
        %1660 = vst [vmem:[%s360 + $0x10] sm:$0xff] %v1644
        %1661 = vst [vmem:[%s360 + $0x18] sm:$0xff] %v1645
        %1662 = vst [vmem:[%s360 + $0x20] sm:$0xff] %v1646
        %1663 = vst [vmem:[%s360 + $0x28] sm:$0xff] %v1647
        %1664 = vst [vmem:[%s360 + $0x30] sm:$0xff] %v1648
        %1665 = vst [vmem:[%s360 + $0x38] sm:$0xff] %v1649
        %1666 = vst [vmem:[%s360 + $0x40] sm:$0xff] %v1650
        %1667 = vst [vmem:[%s360 + $0x48] sm:$0xff] %v1651
        %1668 = vst [vmem:[%s360 + $0x50] sm:$0xff] %v1652
        %1669 = vst [vmem:[%s360 + $0x58] sm:$0xff] %v1653
        %1670 = vst [vmem:[%s360 + $0x60] sm:$0xff] %v1654
        %1671 = vst [vmem:[%s360 + $0x68] sm:$0xff] %v1655
        %1672 = vst [vmem:[%s360 + $0x70] sm:$0xff] %v1656
        %1673 = vst [vmem:[%s360 + $0x78] sm:$0xff] %v1657
        %s1674 = sand.u32 %s171, 1
        %s1675 = scalar_lea.sflag [#allocation4], %s1674
        %s1676 = sand.u32 %s171, 1
        %s1677 = smul.addr %s1676, 128
        %s1678 = scalar_lea.vmem [#allocation10], %s1677
        // Predicated region
        $region61: #{tpu_custom_call.1} parent=43 // pred_check
          %p1679 = pneg %p181
        $region62: #{tpu_custom_call.1} parent=43 // pred_check_branch
          %1681 = sbr.rel (%p1679) target = $region64
        $region63: #{tpu_custom_call.1} parent=43 // pred_region
          %s1682 = smul.u32 16, %s27
          %s1683 = ssub.s32 18, %s1682
          %p1684 = scmp.lt.s32.totalorder %s1683, 16
          %s1685 = scalar_select %p1684, %s1683, 16
          %s1686 = smul.u32 8, %s1685
          %s1687 = ssub.s32 128, %s1686
          %s1688 = sshll.u32 %s1687, 4
          %1689 = vsyncadd %s1675, %s1688
          %p1690 = scmp.ne.s32.totalorder 0, %s1686
          %s1691 = smul.addr %s1682, 8
          %s1692 = scalar_lea.hbm %s6, %s1691
          %s1693 = smul.u32 8, %s1685
          %s1694 = sshll.u32 %s1678, 4
          %s1695 = int_to_ptr.vmem [resolvable:$true] %s1694
          %s1696 = sshll.u32 %s1692, 4
          %s1697 = int_to_ptr.hbm [resolvable:$true] %s1696
          %s1698 = sshll.u32 %s1693, 4
          %1702 = dma.vmem_to_hbm [thread:$0]  (%p1690), %s1695, %s1698, %s1697, %s1675, 128, 128, 8
        $region64: #{tpu_custom_call.1} parent=43 // pred_fallthru
          _
      $region44: #{tpu_custom_call.1} parent=5 // pred_fallthru
        _
      %p1703 = scmp.le.s32.totalorder 2, %s22
      // Predicated region
      $region65: #{tpu_custom_call.1} parent=5 // pred_check
        %p1704 = pneg %p1703
      $region66: #{tpu_custom_call.1} parent=5 // pred_check_branch
        %1706 = sbr.rel (%p1704) target = $region68
      $region67: #{tpu_custom_call.1} parent=5 // pred_region
        %s1707 = ssub.s32 %s22, 2
        // Predicated region
        $region69: #{tpu_custom_call.1} parent=67 // pred_check
          %p1708 = pneg %p187
        $region70: #{tpu_custom_call.1} parent=67 // pred_check_branch
          %1710 = sbr.rel (%p1708) target = $region72
        $region71: #{tpu_custom_call.1} parent=67 // pred_region
          %s1711 = sand.u32 %s172, 1
          %s1712 = scalar_lea.sflag [#allocation4], %s1711
          %s1713 = sand.u32 %s172, 1
          %s1714 = smul.addr %s1713, 128
          %s1715 = scalar_lea.vmem [#allocation10], %s1714
          %1717 = dma.done %s1712, 2048
        $region72: #{tpu_custom_call.1} parent=67 // pred_fallthru
          _
      $region68: #{tpu_custom_call.1} parent=5 // pred_fallthru
        _
    $region6: #{tpu_custom_call.1} parent=1 // loop_footer
      %s26 = sadd.s32 1, %s22
    $region7: #{tpu_custom_call.1} parent=1 // loop_footer_branch
      %21 = sbr.rel target = $region3
    $region8: #{tpu_custom_call.1} parent=1 // loop_exit
      _
    %1718 = vsyncpa [#allocation3], 1
    %s1719 = scalar_lea.sflag [#allocation3], 1
    %1720 = vsyncpa %s1719, 1
    %1721 = vsyncpa [#allocation6], 1
    %s1722 = scalar_lea.sflag [#allocation6], 1
    %1723 = vsyncpa %s1722, 1
    %1724 = vsyncpa [#allocation9], 1
    %1725 = vsyncpa [#allocation4], 1
    %s1726 = scalar_lea.sflag [#allocation4], 1
    %1727 = vsyncpa %s1726, 1

</llo_original>
